<compile_context>
chip_gen: v7x
topology: tpu7x:2x2x1
jax: 0.10.0
libtpu: 0.0.40
codegen_flags: <defaults>
</compile_context>

<pallas_src>
import functools

import numpy as np

import jax
import jax.numpy as jnp
from jax.experimental import pallas as pl
from jax.experimental.pallas import tpu as pltpu

MATMUL_DTYPE = jnp.bfloat16   # MXU input dtype (accumulation stays f32)
BN_EPS = 1e-4                 # SCN BatchNormLeakyReLU default


# ---------------------------------------------------------------------------
# The fused forward kernel (all activations are (rows, 128) f32 values)
# ---------------------------------------------------------------------------

def _concat_unet_kernel(x_ref, bn_ref, sel_ref, w_ref, o_ref, *,
                        leakiness, eps, n_hi, n_lo):
    f32 = jnp.float32
    bnv = bn_ref[...]                              # (12, 128) f32

    def mmf(a, b):
        return jnp.dot(a, b, preferred_element_type=f32)

    def wblk(i):                                   # static 128-row slice of slab
        return w_ref[128 * i:128 * (i + 1), :]

    def bn_relu(a, idx, n_sites, cgroup):
        """BatchNorm (batch stats over all sites) + (Leaky)ReLU, lane-dense.

        a: (R, 128) with lane = w*cgroup + c.  One-pass stats; the sum over the
        W lane-groups is a butterfly of rolls (stride = cgroup).
        gamma/beta rows in bnv are already tiled to the (w, c) lane layout.
        """
        g = bnv[2 * idx:2 * idx + 1, :]            # (1, 128)
        b = bnv[2 * idx + 1:2 * idx + 2, :]
        s1 = jnp.sum(a, axis=0, keepdims=True)           # per-(w,c) sums
        s2 = jnp.sum(a * a, axis=0, keepdims=True)
        sh = cgroup
        while sh < 128:                                  # sum over w positions
            s1 = s1 + pltpu.roll(s1, shift=sh, axis=1)
            s2 = s2 + pltpu.roll(s2, shift=sh, axis=1)
            sh *= 2
        inv_n = 1.0 / n_sites
        mean = s1 * inv_n
        var = s2 * inv_n - mean * mean
        scale = jax.lax.rsqrt(var + eps) * g
        shift = b - mean * scale
        y = a * scale + shift
        if leakiness == 0.0:                             # trace-time specialization
            return jnp.maximum(y, 0.0)
        return jnp.where(y >= 0.0, y, leakiness * y)

    def conv3x3(a, blk, s_dn, s_up):
        """3x3 'same' conv: 3 band-weight dots (kx folded in lanes) + 2 row-shift
        dots (ky folded on the MXU, zero rows at the H boundary)."""
        ab = a.astype(MATMUL_DTYPE)
        t0 = mmf(ab, wblk(blk))          # tap ky=0, needs in[h-1]
        t1 = mmf(ab, wblk(blk + 1))      # tap ky=1
        t2 = mmf(ab, wblk(blk + 2))      # tap ky=2, needs in[h+1]
        return mmf(s_dn, t0) + t1 + mmf(s_up, t2)

    def conv2x2_down(a, blk, e0, e1):
        """2x2 stride-2 conv: band dots per ky, then even/odd row selection on MXU."""
        ab = a.astype(MATMUL_DTYPE)
        return mmf(e0, mmf(ab, wblk(blk))) + mmf(e1, mmf(ab, wblk(blk + 1)))

    def deconv2x2_up(a, blk, e0t, e1t):
        """2x2 stride-2 deconv: kx/co interleave is in the band-weight columns,
        the ky row interleave is a scatter matmul on the MXU."""
        ab = a.astype(MATMUL_DTYPE)
        return mmf(e0t, mmf(ab, wblk(blk))) + mmf(e1t, mmf(ab, wblk(blk + 1)))

    # --- row-mixing matrices (0/1, f32), static slices of the packed buffer
    s_dn = sel_ref[0:32, :]             # (32, 32)  out[h] <- in[h-1]   (outer)
    s_up = sel_ref[32:64, :]            # (32, 32)  out[h] <- in[h+1]   (outer)
    e0 = sel_ref[64:80, :]              # (16, 32)  even rows
    e1 = sel_ref[80:96, :]              # (16, 32)  odd rows
    s_dni = sel_ref[96:112, 0:16]       # (16, 16)  inner-U shifts
    s_upi = sel_ref[112:128, 0:16]
    e0t = sel_ref[128:160, 0:16]        # (32, 16)  row scatter i -> 2i
    e1t = sel_ref[160:192, 0:16]        # (32, 16)  row scatter i -> 2i+1

    x = x_ref[...]                                                    # (32, 128)

    # outer U, first rep (add_noise=True; NoiseTable is identity with d_noise=0)
    x0 = conv3x3(bn_relu(x, 0, n_hi, 8), 0, s_dn, s_up)               # 4 -> 8

    # ConcatTable branch: down / inner-U / up
    d = conv2x2_down(bn_relu(x0, 1, n_hi, 8), 3, e0, e1)              # 8 -> 16, /2
    d1 = conv3x3(bn_relu(d, 2, n_lo, 16), 5, s_dni, s_upi)            # inner U, 16 -> 16
    up = deconv2x2_up(bn_relu(d1, 3, n_lo, 16), 8, e0t, e1t)          # 16 -> 8, x2

    # JoinTable([identity=x0, branch=up]) + post-join BN/conv, with the concat
    # folded into two split weight sets (BN is per-channel -> exact).
    y1 = conv3x3(bn_relu(x0, 4, n_hi, 8), 10, s_dn, s_up)             # wl[:, :, :8]
    y2 = conv3x3(bn_relu(up, 5, n_hi, 8), 13, s_dn, s_up)             # wl[:, :, 8:]

    o_ref[...] = y1 + y2                                              # (32, 128) f32


# ---------------------------------------------------------------------------
# Host-side packing helpers (band weights, row-mixing matrices, BN tables)
# ---------------------------------------------------------------------------

def _t_conv3(wd):
    """T[wi, wo, kx] = 1 iff wi == wo + kx - 1 (3-tap 'same' band, W padding)."""
    t = np.zeros((wd, wd, 3), np.float32)
    for wo in range(wd):
        for kx in range(3):
            wi = wo + kx - 1
            if 0 <= wi < wd:
                t[wi, wo, kx] = 1.0
    return t


def _t_down(wd):
    """T[wi, j, kx] = 1 iff wi == 2j + kx (2x2 stride-2 downsample)."""
    t = np.zeros((wd, wd // 2, 2), np.float32)
    for j in range(wd // 2):
        for kx in range(2):
            t[2 * j + kx, j, kx] = 1.0
    return t


def _t_up(wd):
    """T[j, wo, kx] = 1 iff wo == 2j + kx (2x2 stride-2 deconv)."""
    t = np.zeros((wd, 2 * wd, 2), np.float32)
    for j in range(wd):
        for kx in range(2):
            t[j, 2 * j + kx, kx] = 1.0
    return t


def _fold(t, wk):
    """Band weight: T (A,B,K) 0/1 scatter, wk (K,Ci,Co) -> (A*Ci, B*Co)."""
    a_dim, b_dim, _ = t.shape
    ci, co = wk.shape[1], wk.shape[2]
    return jnp.einsum("abk,kio->aibo", jnp.asarray(t), wk).reshape(a_dim * ci, b_dim * co)


def _shift_rows(n, hh, dh):
    """Per-image row shift (out row h takes in row h+dh; zero at H boundary)."""
    s = np.zeros((n * hh, n * hh), np.float32)
    for b in range(n):
        for r in range(hh):
            ri = r + dh
            if 0 <= ri < hh:
                s[b * hh + r, b * hh + ri] = 1.0
    return s


def _parity_rows(n, hh, parity):
    """Per-image stride-2 row selector: out row i takes in row 2i+parity."""
    s = np.zeros((n * hh // 2, n * hh), np.float32)
    for b in range(n):
        for i in range(hh // 2):
            s[b * (hh // 2) + i, b * hh + 2 * i + parity] = 1.0
    return s


# ---------------------------------------------------------------------------
# Wrapper: pack 4 buffers + single pallas_call
# ---------------------------------------------------------------------------

def concat_unet_forward(x_nhwc, p, *, leakiness=0.0, eps=BN_EPS):
    N, H, W, Cin = x_nhwc.shape
    p0 = p["w0"].shape[-1]        # 8
    p1 = p["wd"].shape[-1]        # 16
    h, w = H // 2, W // 2
    C0 = p0                       # lane layout channel count for the outer level
    assert W * C0 == 128 and w * p1 == 128 and N * H == 32 and Cin <= C0

    # --- input: zero-pad channels 4->8, lane-dense (N*H, W*C0) = (32, 128)
    xf = x_nhwc.astype(jnp.float32)
    xpad = jnp.concatenate([xf, jnp.zeros((N, H, W, C0 - Cin), jnp.float32)], axis=-1)
    x_in = xpad.reshape(N * H, W * C0)

    # --- band ("lane-folded") weight slab: 16 blocks of (128, 128) bf16
    w0p = jnp.zeros((3, 3, C0, p0), jnp.float32).at[:, :, :Cin, :].set(
        p["w0"].astype(jnp.float32))                       # pad dummy input channels
    wla = p["wl"][:, :, :p0, :].astype(jnp.float32)        # post-join, x0 channels
    wlb = p["wl"][:, :, p0:, :].astype(jnp.float32)        # post-join, up channels
    t3o, t3i, t2d, t2u = _t_conv3(W), _t_conv3(w), _t_down(W), _t_up(w)
    blocks = []
    blocks += [_fold(t3o, w0p[ky]) for ky in range(3)]                     # 0..2
    blocks += [_fold(t2d, p["wd"][ky].astype(jnp.float32)) for ky in range(2)]   # 3..4
    blocks += [_fold(t3i, p["wm"][ky].astype(jnp.float32)) for ky in range(3)]   # 5..7
    blocks += [_fold(t2u, p["wu"][ky].astype(jnp.float32)) for ky in range(2)]   # 8..9
    blocks += [_fold(t3o, wla[ky]) for ky in range(3)]                     # 10..12
    blocks += [_fold(t3o, wlb[ky]) for ky in range(3)]                     # 13..15
    wslab = jnp.concatenate(blocks, axis=0).astype(MATMUL_DTYPE)           # (2048, 128)

    # --- row-mixing matrices packed as one (192, 32) f32 buffer
    sel = np.zeros((192, 32), np.float32)
    sel[0:32, :32] = _shift_rows(N, H, -1)
    sel[32:64, :32] = _shift_rows(N, H, +1)
    sel[64:80, :32] = _parity_rows(N, H, 0)
    sel[80:96, :32] = _parity_rows(N, H, 1)
    sel[96:112, :16] = _shift_rows(N, h, -1)
    sel[112:128, :16] = _shift_rows(N, h, +1)
    sel[128:160, :16] = _parity_rows(N, H, 0).T
    sel[160:192, :16] = _parity_rows(N, H, 1).T
    sel = jnp.asarray(sel)

    # --- BN gamma/beta pre-tiled to each stage's lane layout: (12, 128) f32
    g0 = jnp.zeros((C0,), jnp.float32).at[:Cin].set(p["bn0_g"].astype(jnp.float32))
    b0 = jnp.zeros((C0,), jnp.float32).at[:Cin].set(p["bn0_b"].astype(jnp.float32))
    tile = lambda v, r: jnp.tile(v.astype(jnp.float32), r)
    bn_tab = jnp.stack([
        tile(g0, W), tile(b0, W),                                   # bn0 (dummy ch -> 0)
        tile(p["bn1_g"], W), tile(p["bn1_b"], W),                   # bn1
        tile(p["bn2_g"], w), tile(p["bn2_b"], w),                   # bn2
        tile(p["bn3_g"], w), tile(p["bn3_b"], w),                   # bn3
        tile(p["bn4_g"][:p0], W), tile(p["bn4_b"][:p0], W),         # bn4 / x0 part
        tile(p["bn4_g"][p0:], W), tile(p["bn4_b"][p0:], W),         # bn4 / up part
    ], axis=0)                                                      # (12, 128)

    inputs = (x_in, bn_tab, sel, wslab)
    kernel = functools.partial(_concat_unet_kernel, leakiness=leakiness, eps=eps,
                               n_hi=float(N * H * W), n_lo=float(N * h * w))

    out2d = pl.pallas_call(
        kernel,
        out_shape=jax.ShapeDtypeStruct((N * H, W * p0), jnp.float32),
        grid=(1,),
        in_specs=[pl.BlockSpec(a.shape, lambda i, _r=a.ndim: (0,) * _r) for a in inputs],
        out_specs=pl.BlockSpec((N * H, W * p0), lambda i: (0, 0)),
        compiler_params=pltpu.CompilerParams(
            dimension_semantics=("arbitrary",),
        ),
        cost_estimate=pl.CostEstimate(flops=17_000_000, transcendentals=768,
                                      bytes_accessed=600_000),
    )(*inputs)
    return out2d.reshape(N, H, W, p0)


# ---------------------------------------------------------------------------
# Deterministic parameter init (synthetic; no checkpoint loading)
# ---------------------------------------------------------------------------

def init_params(key, n_in=4, nplanes=(8, 16)):
    p0, p1 = nplanes
    keys = jax.random.split(key, 16)
    nrm = lambda k, shp, s: (s * jax.random.normal(k, shp)).astype(jnp.float32)
    return {
        "bn0_g": 1.0 + nrm(keys[0], (n_in,), 0.1), "bn0_b": nrm(keys[1], (n_in,), 0.1),
        "w0": nrm(keys[2], (3, 3, n_in, p0), 0.2),
        "bn1_g": 1.0 + nrm(keys[3], (p0,), 0.1), "bn1_b": nrm(keys[4], (p0,), 0.1),
        "wd": nrm(keys[5], (2, 2, p0, p1), 0.2),
        "bn2_g": 1.0 + nrm(keys[6], (p1,), 0.1), "bn2_b": nrm(keys[7], (p1,), 0.1),
        "wm": nrm(keys[8], (3, 3, p1, p1), 0.2),
        "bn3_g": 1.0 + nrm(keys[9], (p1,), 0.1), "bn3_b": nrm(keys[10], (p1,), 0.1),
        "wu": nrm(keys[11], (2, 2, p1, p0), 0.2),
        "bn4_g": 1.0 + nrm(keys[12], (2 * p0,), 0.1), "bn4_b": nrm(keys[13], (2 * p0,), 0.1),
        "wl": nrm(keys[14], (3, 3, 2 * p0, p0), 0.2),
    }


if __name__ == "__main__":
    key = jax.random.PRNGKey(0)
    k_x, k_p = jax.random.split(key)

    # Input in PyTorch NCHW convention: (batch=2, channels=4, H=16, W=16)
    x_nchw = jax.random.normal(k_x, (2, 4, 16, 16), dtype=jnp.float32)
    x_nhwc = jnp.transpose(x_nchw, (0, 2, 3, 1))   # NHWC for the kernel

    params = init_params(k_p, n_in=4, nplanes=(8, 16))

    fwd = jax.jit(concat_unet_forward)
    out = jax.block_until_ready(fwd(x_nhwc, params))

    assert out.shape == (2, 16, 16, 8), out.shape
    assert jnp.all(jnp.isfinite(out))
    print("KERNEL_OK")
</pallas_src>

<mosaic_0001>
module attributes {stable_mosaic.version = 11 : i64} {
  func.func @_concat_unet_kernel(%arg0: i32, %arg1: memref<32x128xf32, #tpu.memory_space<vmem>>, %arg2: memref<12x128xf32, #tpu.memory_space<vmem>>, %arg3: memref<192x32xf32, #tpu.memory_space<vmem>>, %arg4: memref<2048x128xbf16, #tpu.memory_space<vmem>>, %arg5: memref<32x128xf32, #tpu.memory_space<vmem>>) attributes {dimension_semantics = [#tpu.dimension_semantics<arbitrary>], iteration_bounds = array<i64: 1>, scalar_prefetch = 0 : i64, scratch_operands = 0 : i64, tpu.core_type = #tpu.core_type<tc>, window_params = [{pipeline_mode = #tpu.pipeline_mode<synchronous>, transform_indices = @transform_0, window_bounds = array<i64: 32, 128>}, {pipeline_mode = #tpu.pipeline_mode<synchronous>, transform_indices = @transform_1, window_bounds = array<i64: 12, 128>}, {pipeline_mode = #tpu.pipeline_mode<synchronous>, transform_indices = @transform_2, window_bounds = array<i64: 192, 32>}, {pipeline_mode = #tpu.pipeline_mode<synchronous>, transform_indices = @transform_3, window_bounds = array<i64: 2048, 128>}, {pipeline_mode = #tpu.pipeline_mode<synchronous>, transform_indices = @transform_4, window_bounds = array<i64: 32, 128>}]} {
    %c0 = arith.constant 0 : index
    %c0_0 = arith.constant 0 : index
    %0 = vector.load %arg2[%c0, %c0_0] : memref<12x128xf32, #tpu.memory_space<vmem>>, vector<12x128xf32>
    %c0_1 = arith.constant 0 : index
    %c0_2 = arith.constant 0 : index
    %1 = vector.load %arg3[%c0_1, %c0_2] : memref<192x32xf32, #tpu.memory_space<vmem>>, vector<32x32xf32>
    %c32 = arith.constant 32 : index
    %c0_3 = arith.constant 0 : index
    %2 = vector.load %arg3[%c32, %c0_3] : memref<192x32xf32, #tpu.memory_space<vmem>>, vector<32x32xf32>
    %c64 = arith.constant 64 : index
    %c0_4 = arith.constant 0 : index
    %3 = vector.load %arg3[%c64, %c0_4] : memref<192x32xf32, #tpu.memory_space<vmem>>, vector<16x32xf32>
    %c80 = arith.constant 80 : index
    %c0_5 = arith.constant 0 : index
    %4 = vector.load %arg3[%c80, %c0_5] : memref<192x32xf32, #tpu.memory_space<vmem>>, vector<16x32xf32>
    %c96 = arith.constant 96 : index
    %c0_6 = arith.constant 0 : index
    %5 = vector.load %arg3[%c96, %c0_6] : memref<192x32xf32, #tpu.memory_space<vmem>>, vector<16x16xf32>
    %c112 = arith.constant 112 : index
    %c0_7 = arith.constant 0 : index
    %6 = vector.load %arg3[%c112, %c0_7] : memref<192x32xf32, #tpu.memory_space<vmem>>, vector<16x16xf32>
    %c128 = arith.constant 128 : index
    %c0_8 = arith.constant 0 : index
    %7 = vector.load %arg3[%c128, %c0_8] : memref<192x32xf32, #tpu.memory_space<vmem>>, vector<32x16xf32>
    %c160 = arith.constant 160 : index
    %c0_9 = arith.constant 0 : index
    %8 = vector.load %arg3[%c160, %c0_9] : memref<192x32xf32, #tpu.memory_space<vmem>>, vector<32x16xf32>
    %c0_10 = arith.constant 0 : index
    %c0_11 = arith.constant 0 : index
    %9 = vector.load %arg1[%c0_10, %c0_11] : memref<32x128xf32, #tpu.memory_space<vmem>>, vector<32x128xf32>
    %10 = vector.extract_strided_slice %0 {offsets = [0, 0], sizes = [1, 128], strides = [1, 1]} : vector<12x128xf32> to vector<1x128xf32>
    %11 = vector.extract_strided_slice %0 {offsets = [1, 0], sizes = [1, 128], strides = [1, 1]} : vector<12x128xf32> to vector<1x128xf32>
    %cst = arith.constant dense<0.000000e+00> : vector<128xf32>
    %12 = vector.multi_reduction <add>, %9, %cst [0] : vector<32x128xf32> to vector<128xf32>
    %13 = vector.shape_cast %12 : vector<128xf32> to vector<1x128xf32>
    %14 = arith.mulf %9, %9 : vector<32x128xf32>
    %cst_12 = arith.constant dense<0.000000e+00> : vector<128xf32>
    %15 = vector.multi_reduction <add>, %14, %cst_12 [0] : vector<32x128xf32> to vector<128xf32>
    %16 = vector.shape_cast %15 : vector<128xf32> to vector<1x128xf32>
    %c8_i32 = arith.constant 8 : i32
    %17 = tpu.dynamic_rotate %13 by %c8_i32 dim 1 : vector<1x128xf32>, i32 -> vector<1x128xf32>
    %18 = arith.addf %13, %17 : vector<1x128xf32>
    %c8_i32_13 = arith.constant 8 : i32
    %19 = tpu.dynamic_rotate %16 by %c8_i32_13 dim 1 : vector<1x128xf32>, i32 -> vector<1x128xf32>
    %20 = arith.addf %16, %19 : vector<1x128xf32>
    %c16_i32 = arith.constant 16 : i32
    %21 = tpu.dynamic_rotate %18 by %c16_i32 dim 1 : vector<1x128xf32>, i32 -> vector<1x128xf32>
    %22 = arith.addf %18, %21 : vector<1x128xf32>
    %c16_i32_14 = arith.constant 16 : i32
    %23 = tpu.dynamic_rotate %20 by %c16_i32_14 dim 1 : vector<1x128xf32>, i32 -> vector<1x128xf32>
    %24 = arith.addf %20, %23 : vector<1x128xf32>
    %c32_i32 = arith.constant 32 : i32
    %25 = tpu.dynamic_rotate %22 by %c32_i32 dim 1 : vector<1x128xf32>, i32 -> vector<1x128xf32>
    %26 = arith.addf %22, %25 : vector<1x128xf32>
    %c32_i32_15 = arith.constant 32 : i32
    %27 = tpu.dynamic_rotate %24 by %c32_i32_15 dim 1 : vector<1x128xf32>, i32 -> vector<1x128xf32>
    %28 = arith.addf %24, %27 : vector<1x128xf32>
    %c64_i32 = arith.constant 64 : i32
    %29 = tpu.dynamic_rotate %26 by %c64_i32 dim 1 : vector<1x128xf32>, i32 -> vector<1x128xf32>
    %30 = arith.addf %26, %29 : vector<1x128xf32>
    %c64_i32_16 = arith.constant 64 : i32
    %31 = tpu.dynamic_rotate %28 by %c64_i32_16 dim 1 : vector<1x128xf32>, i32 -> vector<1x128xf32>
    %32 = arith.addf %28, %31 : vector<1x128xf32>
    %cst_17 = arith.constant 0.001953125 : f32
    %33 = vector.broadcast %cst_17 : f32 to vector<1x128xf32>
    %34 = arith.mulf %30, %33 : vector<1x128xf32>
    %cst_18 = arith.constant 0.001953125 : f32
    %35 = vector.broadcast %cst_18 : f32 to vector<1x128xf32>
    %36 = arith.mulf %32, %35 : vector<1x128xf32>
    %37 = arith.mulf %34, %34 : vector<1x128xf32>
    %38 = arith.subf %36, %37 : vector<1x128xf32>
    %cst_19 = arith.constant 9.99999974E-5 : f32
    %39 = vector.broadcast %cst_19 : f32 to vector<1x128xf32>
    %40 = arith.addf %38, %39 : vector<1x128xf32>
    %41 = math.rsqrt %40 : vector<1x128xf32>
    %42 = arith.mulf %41, %10 : vector<1x128xf32>
    %43 = arith.mulf %34, %42 : vector<1x128xf32>
    %44 = arith.subf %11, %43 : vector<1x128xf32>
    %45 = vector.broadcast %42 : vector<1x128xf32> to vector<32x128xf32>
    %46 = arith.mulf %9, %45 : vector<32x128xf32>
    %47 = vector.broadcast %44 : vector<1x128xf32> to vector<32x128xf32>
    %48 = arith.addf %46, %47 : vector<32x128xf32>
    %cst_20 = arith.constant 0.000000e+00 : f32
    %49 = vector.broadcast %cst_20 : f32 to vector<32x128xf32>
    %50 = arith.maximumf %48, %49 : vector<32x128xf32>
    %51 = arith.truncf %50 : vector<32x128xf32> to vector<32x128xbf16>
    %c0_21 = arith.constant 0 : index
    %c0_22 = arith.constant 0 : index
    %52 = vector.load %arg4[%c0_21, %c0_22] : memref<2048x128xbf16, #tpu.memory_space<vmem>>, vector<128x128xbf16>
    %cst_23 = arith.constant dense<0.000000e+00> : vector<32x128xf32>
    %53 = tpu.matmul %51, %52, %cst_23 {dimension_numbers = #tpu.dot_dimension_numbers<[1], [0], [0], [1], [0, 0, 1, 1], [], []>} : vector<32x128xbf16>, vector<128x128xbf16>, vector<32x128xf32> -> vector<32x128xf32>
    %c128_24 = arith.constant 128 : index
    %c0_25 = arith.constant 0 : index
    %54 = vector.load %arg4[%c128_24, %c0_25] : memref<2048x128xbf16, #tpu.memory_space<vmem>>, vector<128x128xbf16>
    %cst_26 = arith.constant dense<0.000000e+00> : vector<32x128xf32>
    %55 = tpu.matmul %51, %54, %cst_26 {dimension_numbers = #tpu.dot_dimension_numbers<[1], [0], [0], [1], [0, 0, 1, 1], [], []>} : vector<32x128xbf16>, vector<128x128xbf16>, vector<32x128xf32> -> vector<32x128xf32>
    %c256 = arith.constant 256 : index
    %c0_27 = arith.constant 0 : index
    %56 = vector.load %arg4[%c256, %c0_27] : memref<2048x128xbf16, #tpu.memory_space<vmem>>, vector<128x128xbf16>
    %cst_28 = arith.constant dense<0.000000e+00> : vector<32x128xf32>
    %57 = tpu.matmul %51, %56, %cst_28 {dimension_numbers = #tpu.dot_dimension_numbers<[1], [0], [0], [1], [0, 0, 1, 1], [], []>} : vector<32x128xbf16>, vector<128x128xbf16>, vector<32x128xf32> -> vector<32x128xf32>
    %cst_29 = arith.constant dense<0.000000e+00> : vector<32x128xf32>
    %58 = tpu.matmul %1, %53, %cst_29 {dimension_numbers = #tpu.dot_dimension_numbers<[1], [0], [0], [1], [0, 0, 1, 1], [], []>} : vector<32x32xf32>, vector<32x128xf32>, vector<32x128xf32> -> vector<32x128xf32>
    %59 = arith.addf %58, %55 : vector<32x128xf32>
    %cst_30 = arith.constant dense<0.000000e+00> : vector<32x128xf32>
    %60 = tpu.matmul %2, %57, %cst_30 {dimension_numbers = #tpu.dot_dimension_numbers<[1], [0], [0], [1], [0, 0, 1, 1], [], []>} : vector<32x32xf32>, vector<32x128xf32>, vector<32x128xf32> -> vector<32x128xf32>
    %61 = arith.addf %59, %60 : vector<32x128xf32>
    %62 = vector.extract_strided_slice %0 {offsets = [2, 0], sizes = [1, 128], strides = [1, 1]} : vector<12x128xf32> to vector<1x128xf32>
    %63 = vector.extract_strided_slice %0 {offsets = [3, 0], sizes = [1, 128], strides = [1, 1]} : vector<12x128xf32> to vector<1x128xf32>
    %cst_31 = arith.constant dense<0.000000e+00> : vector<128xf32>
    %64 = vector.multi_reduction <add>, %61, %cst_31 [0] : vector<32x128xf32> to vector<128xf32>
    %65 = vector.shape_cast %64 : vector<128xf32> to vector<1x128xf32>
    %66 = arith.mulf %61, %61 : vector<32x128xf32>
    %cst_32 = arith.constant dense<0.000000e+00> : vector<128xf32>
    %67 = vector.multi_reduction <add>, %66, %cst_32 [0] : vector<32x128xf32> to vector<128xf32>
    %68 = vector.shape_cast %67 : vector<128xf32> to vector<1x128xf32>
    %c8_i32_33 = arith.constant 8 : i32
    %69 = tpu.dynamic_rotate %65 by %c8_i32_33 dim 1 : vector<1x128xf32>, i32 -> vector<1x128xf32>
    %70 = arith.addf %65, %69 : vector<1x128xf32>
    %c8_i32_34 = arith.constant 8 : i32
    %71 = tpu.dynamic_rotate %68 by %c8_i32_34 dim 1 : vector<1x128xf32>, i32 -> vector<1x128xf32>
    %72 = arith.addf %68, %71 : vector<1x128xf32>
    %c16_i32_35 = arith.constant 16 : i32
    %73 = tpu.dynamic_rotate %70 by %c16_i32_35 dim 1 : vector<1x128xf32>, i32 -> vector<1x128xf32>
    %74 = arith.addf %70, %73 : vector<1x128xf32>
    %c16_i32_36 = arith.constant 16 : i32
    %75 = tpu.dynamic_rotate %72 by %c16_i32_36 dim 1 : vector<1x128xf32>, i32 -> vector<1x128xf32>
    %76 = arith.addf %72, %75 : vector<1x128xf32>
    %c32_i32_37 = arith.constant 32 : i32
    %77 = tpu.dynamic_rotate %74 by %c32_i32_37 dim 1 : vector<1x128xf32>, i32 -> vector<1x128xf32>
    %78 = arith.addf %74, %77 : vector<1x128xf32>
    %c32_i32_38 = arith.constant 32 : i32
    %79 = tpu.dynamic_rotate %76 by %c32_i32_38 dim 1 : vector<1x128xf32>, i32 -> vector<1x128xf32>
    %80 = arith.addf %76, %79 : vector<1x128xf32>
    %c64_i32_39 = arith.constant 64 : i32
    %81 = tpu.dynamic_rotate %78 by %c64_i32_39 dim 1 : vector<1x128xf32>, i32 -> vector<1x128xf32>
    %82 = arith.addf %78, %81 : vector<1x128xf32>
    %c64_i32_40 = arith.constant 64 : i32
    %83 = tpu.dynamic_rotate %80 by %c64_i32_40 dim 1 : vector<1x128xf32>, i32 -> vector<1x128xf32>
    %84 = arith.addf %80, %83 : vector<1x128xf32>
    %cst_41 = arith.constant 0.001953125 : f32
    %85 = vector.broadcast %cst_41 : f32 to vector<1x128xf32>
    %86 = arith.mulf %82, %85 : vector<1x128xf32>
    %cst_42 = arith.constant 0.001953125 : f32
    %87 = vector.broadcast %cst_42 : f32 to vector<1x128xf32>
    %88 = arith.mulf %84, %87 : vector<1x128xf32>
    %89 = arith.mulf %86, %86 : vector<1x128xf32>
    %90 = arith.subf %88, %89 : vector<1x128xf32>
    %cst_43 = arith.constant 9.99999974E-5 : f32
    %91 = vector.broadcast %cst_43 : f32 to vector<1x128xf32>
    %92 = arith.addf %90, %91 : vector<1x128xf32>
    %93 = math.rsqrt %92 : vector<1x128xf32>
    %94 = arith.mulf %93, %62 : vector<1x128xf32>
    %95 = arith.mulf %86, %94 : vector<1x128xf32>
    %96 = arith.subf %63, %95 : vector<1x128xf32>
    %97 = vector.broadcast %94 : vector<1x128xf32> to vector<32x128xf32>
    %98 = arith.mulf %61, %97 : vector<32x128xf32>
    %99 = vector.broadcast %96 : vector<1x128xf32> to vector<32x128xf32>
    %100 = arith.addf %98, %99 : vector<32x128xf32>
    %cst_44 = arith.constant 0.000000e+00 : f32
    %101 = vector.broadcast %cst_44 : f32 to vector<32x128xf32>
    %102 = arith.maximumf %100, %101 : vector<32x128xf32>
    %103 = arith.truncf %102 : vector<32x128xf32> to vector<32x128xbf16>
    %c384 = arith.constant 384 : index
    %c0_45 = arith.constant 0 : index
    %104 = vector.load %arg4[%c384, %c0_45] : memref<2048x128xbf16, #tpu.memory_space<vmem>>, vector<128x128xbf16>
    %cst_46 = arith.constant dense<0.000000e+00> : vector<32x128xf32>
    %105 = tpu.matmul %103, %104, %cst_46 {dimension_numbers = #tpu.dot_dimension_numbers<[1], [0], [0], [1], [0, 0, 1, 1], [], []>} : vector<32x128xbf16>, vector<128x128xbf16>, vector<32x128xf32> -> vector<32x128xf32>
    %cst_47 = arith.constant dense<0.000000e+00> : vector<16x128xf32>
    %106 = tpu.matmul %3, %105, %cst_47 {dimension_numbers = #tpu.dot_dimension_numbers<[1], [0], [0], [1], [0, 0, 1, 1], [], []>} : vector<16x32xf32>, vector<32x128xf32>, vector<16x128xf32> -> vector<16x128xf32>
    %c512 = arith.constant 512 : index
    %c0_48 = arith.constant 0 : index
    %107 = vector.load %arg4[%c512, %c0_48] : memref<2048x128xbf16, #tpu.memory_space<vmem>>, vector<128x128xbf16>
    %cst_49 = arith.constant dense<0.000000e+00> : vector<32x128xf32>
    %108 = tpu.matmul %103, %107, %cst_49 {dimension_numbers = #tpu.dot_dimension_numbers<[1], [0], [0], [1], [0, 0, 1, 1], [], []>} : vector<32x128xbf16>, vector<128x128xbf16>, vector<32x128xf32> -> vector<32x128xf32>
    %cst_50 = arith.constant dense<0.000000e+00> : vector<16x128xf32>
    %109 = tpu.matmul %4, %108, %cst_50 {dimension_numbers = #tpu.dot_dimension_numbers<[1], [0], [0], [1], [0, 0, 1, 1], [], []>} : vector<16x32xf32>, vector<32x128xf32>, vector<16x128xf32> -> vector<16x128xf32>
    %110 = arith.addf %106, %109 : vector<16x128xf32>
    %111 = vector.extract_strided_slice %0 {offsets = [4, 0], sizes = [1, 128], strides = [1, 1]} : vector<12x128xf32> to vector<1x128xf32>
    %112 = vector.extract_strided_slice %0 {offsets = [5, 0], sizes = [1, 128], strides = [1, 1]} : vector<12x128xf32> to vector<1x128xf32>
    %cst_51 = arith.constant dense<0.000000e+00> : vector<128xf32>
    %113 = vector.multi_reduction <add>, %110, %cst_51 [0] : vector<16x128xf32> to vector<128xf32>
    %114 = vector.shape_cast %113 : vector<128xf32> to vector<1x128xf32>
    %115 = arith.mulf %110, %110 : vector<16x128xf32>
    %cst_52 = arith.constant dense<0.000000e+00> : vector<128xf32>
    %116 = vector.multi_reduction <add>, %115, %cst_52 [0] : vector<16x128xf32> to vector<128xf32>
    %117 = vector.shape_cast %116 : vector<128xf32> to vector<1x128xf32>
    %c16_i32_53 = arith.constant 16 : i32
    %118 = tpu.dynamic_rotate %114 by %c16_i32_53 dim 1 : vector<1x128xf32>, i32 -> vector<1x128xf32>
    %119 = arith.addf %114, %118 : vector<1x128xf32>
    %c16_i32_54 = arith.constant 16 : i32
    %120 = tpu.dynamic_rotate %117 by %c16_i32_54 dim 1 : vector<1x128xf32>, i32 -> vector<1x128xf32>
    %121 = arith.addf %117, %120 : vector<1x128xf32>
    %c32_i32_55 = arith.constant 32 : i32
    %122 = tpu.dynamic_rotate %119 by %c32_i32_55 dim 1 : vector<1x128xf32>, i32 -> vector<1x128xf32>
    %123 = arith.addf %119, %122 : vector<1x128xf32>
    %c32_i32_56 = arith.constant 32 : i32
    %124 = tpu.dynamic_rotate %121 by %c32_i32_56 dim 1 : vector<1x128xf32>, i32 -> vector<1x128xf32>
    %125 = arith.addf %121, %124 : vector<1x128xf32>
    %c64_i32_57 = arith.constant 64 : i32
    %126 = tpu.dynamic_rotate %123 by %c64_i32_57 dim 1 : vector<1x128xf32>, i32 -> vector<1x128xf32>
    %127 = arith.addf %123, %126 : vector<1x128xf32>
    %c64_i32_58 = arith.constant 64 : i32
    %128 = tpu.dynamic_rotate %125 by %c64_i32_58 dim 1 : vector<1x128xf32>, i32 -> vector<1x128xf32>
    %129 = arith.addf %125, %128 : vector<1x128xf32>
    %cst_59 = arith.constant 7.812500e-03 : f32
    %130 = vector.broadcast %cst_59 : f32 to vector<1x128xf32>
    %131 = arith.mulf %127, %130 : vector<1x128xf32>
    %cst_60 = arith.constant 7.812500e-03 : f32
    %132 = vector.broadcast %cst_60 : f32 to vector<1x128xf32>
    %133 = arith.mulf %129, %132 : vector<1x128xf32>
    %134 = arith.mulf %131, %131 : vector<1x128xf32>
    %135 = arith.subf %133, %134 : vector<1x128xf32>
    %cst_61 = arith.constant 9.99999974E-5 : f32
    %136 = vector.broadcast %cst_61 : f32 to vector<1x128xf32>
    %137 = arith.addf %135, %136 : vector<1x128xf32>
    %138 = math.rsqrt %137 : vector<1x128xf32>
    %139 = arith.mulf %138, %111 : vector<1x128xf32>
    %140 = arith.mulf %131, %139 : vector<1x128xf32>
    %141 = arith.subf %112, %140 : vector<1x128xf32>
    %142 = vector.broadcast %139 : vector<1x128xf32> to vector<16x128xf32>
    %143 = arith.mulf %110, %142 : vector<16x128xf32>
    %144 = vector.broadcast %141 : vector<1x128xf32> to vector<16x128xf32>
    %145 = arith.addf %143, %144 : vector<16x128xf32>
    %cst_62 = arith.constant 0.000000e+00 : f32
    %146 = vector.broadcast %cst_62 : f32 to vector<16x128xf32>
    %147 = arith.maximumf %145, %146 : vector<16x128xf32>
    %148 = arith.truncf %147 : vector<16x128xf32> to vector<16x128xbf16>
    %c640 = arith.constant 640 : index
    %c0_63 = arith.constant 0 : index
    %149 = vector.load %arg4[%c640, %c0_63] : memref<2048x128xbf16, #tpu.memory_space<vmem>>, vector<128x128xbf16>
    %cst_64 = arith.constant dense<0.000000e+00> : vector<16x128xf32>
    %150 = tpu.matmul %148, %149, %cst_64 {dimension_numbers = #tpu.dot_dimension_numbers<[1], [0], [0], [1], [0, 0, 1, 1], [], []>} : vector<16x128xbf16>, vector<128x128xbf16>, vector<16x128xf32> -> vector<16x128xf32>
    %c768 = arith.constant 768 : index
    %c0_65 = arith.constant 0 : index
    %151 = vector.load %arg4[%c768, %c0_65] : memref<2048x128xbf16, #tpu.memory_space<vmem>>, vector<128x128xbf16>
    %cst_66 = arith.constant dense<0.000000e+00> : vector<16x128xf32>
    %152 = tpu.matmul %148, %151, %cst_66 {dimension_numbers = #tpu.dot_dimension_numbers<[1], [0], [0], [1], [0, 0, 1, 1], [], []>} : vector<16x128xbf16>, vector<128x128xbf16>, vector<16x128xf32> -> vector<16x128xf32>
    %c896 = arith.constant 896 : index
    %c0_67 = arith.constant 0 : index
    %153 = vector.load %arg4[%c896, %c0_67] : memref<2048x128xbf16, #tpu.memory_space<vmem>>, vector<128x128xbf16>
    %cst_68 = arith.constant dense<0.000000e+00> : vector<16x128xf32>
    %154 = tpu.matmul %148, %153, %cst_68 {dimension_numbers = #tpu.dot_dimension_numbers<[1], [0], [0], [1], [0, 0, 1, 1], [], []>} : vector<16x128xbf16>, vector<128x128xbf16>, vector<16x128xf32> -> vector<16x128xf32>
    %cst_69 = arith.constant dense<0.000000e+00> : vector<16x128xf32>
    %155 = tpu.matmul %5, %150, %cst_69 {dimension_numbers = #tpu.dot_dimension_numbers<[1], [0], [0], [1], [0, 0, 1, 1], [], []>} : vector<16x16xf32>, vector<16x128xf32>, vector<16x128xf32> -> vector<16x128xf32>
    %156 = arith.addf %155, %152 : vector<16x128xf32>
    %cst_70 = arith.constant dense<0.000000e+00> : vector<16x128xf32>
    %157 = tpu.matmul %6, %154, %cst_70 {dimension_numbers = #tpu.dot_dimension_numbers<[1], [0], [0], [1], [0, 0, 1, 1], [], []>} : vector<16x16xf32>, vector<16x128xf32>, vector<16x128xf32> -> vector<16x128xf32>
    %158 = arith.addf %156, %157 : vector<16x128xf32>
    %159 = vector.extract_strided_slice %0 {offsets = [6, 0], sizes = [1, 128], strides = [1, 1]} : vector<12x128xf32> to vector<1x128xf32>
    %160 = vector.extract_strided_slice %0 {offsets = [7, 0], sizes = [1, 128], strides = [1, 1]} : vector<12x128xf32> to vector<1x128xf32>
    %cst_71 = arith.constant dense<0.000000e+00> : vector<128xf32>
    %161 = vector.multi_reduction <add>, %158, %cst_71 [0] : vector<16x128xf32> to vector<128xf32>
    %162 = vector.shape_cast %161 : vector<128xf32> to vector<1x128xf32>
    %163 = arith.mulf %158, %158 : vector<16x128xf32>
    %cst_72 = arith.constant dense<0.000000e+00> : vector<128xf32>
    %164 = vector.multi_reduction <add>, %163, %cst_72 [0] : vector<16x128xf32> to vector<128xf32>
    %165 = vector.shape_cast %164 : vector<128xf32> to vector<1x128xf32>
    %c16_i32_73 = arith.constant 16 : i32
    %166 = tpu.dynamic_rotate %162 by %c16_i32_73 dim 1 : vector<1x128xf32>, i32 -> vector<1x128xf32>
    %167 = arith.addf %162, %166 : vector<1x128xf32>
    %c16_i32_74 = arith.constant 16 : i32
    %168 = tpu.dynamic_rotate %165 by %c16_i32_74 dim 1 : vector<1x128xf32>, i32 -> vector<1x128xf32>
    %169 = arith.addf %165, %168 : vector<1x128xf32>
    %c32_i32_75 = arith.constant 32 : i32
    %170 = tpu.dynamic_rotate %167 by %c32_i32_75 dim 1 : vector<1x128xf32>, i32 -> vector<1x128xf32>
    %171 = arith.addf %167, %170 : vector<1x128xf32>
    %c32_i32_76 = arith.constant 32 : i32
    %172 = tpu.dynamic_rotate %169 by %c32_i32_76 dim 1 : vector<1x128xf32>, i32 -> vector<1x128xf32>
    %173 = arith.addf %169, %172 : vector<1x128xf32>
    %c64_i32_77 = arith.constant 64 : i32
    %174 = tpu.dynamic_rotate %171 by %c64_i32_77 dim 1 : vector<1x128xf32>, i32 -> vector<1x128xf32>
    %175 = arith.addf %171, %174 : vector<1x128xf32>
    %c64_i32_78 = arith.constant 64 : i32
    %176 = tpu.dynamic_rotate %173 by %c64_i32_78 dim 1 : vector<1x128xf32>, i32 -> vector<1x128xf32>
    %177 = arith.addf %173, %176 : vector<1x128xf32>
    %cst_79 = arith.constant 7.812500e-03 : f32
    %178 = vector.broadcast %cst_79 : f32 to vector<1x128xf32>
    %179 = arith.mulf %175, %178 : vector<1x128xf32>
    %cst_80 = arith.constant 7.812500e-03 : f32
    %180 = vector.broadcast %cst_80 : f32 to vector<1x128xf32>
    %181 = arith.mulf %177, %180 : vector<1x128xf32>
    %182 = arith.mulf %179, %179 : vector<1x128xf32>
    %183 = arith.subf %181, %182 : vector<1x128xf32>
    %cst_81 = arith.constant 9.99999974E-5 : f32
    %184 = vector.broadcast %cst_81 : f32 to vector<1x128xf32>
    %185 = arith.addf %183, %184 : vector<1x128xf32>
    %186 = math.rsqrt %185 : vector<1x128xf32>
    %187 = arith.mulf %186, %159 : vector<1x128xf32>
    %188 = arith.mulf %179, %187 : vector<1x128xf32>
    %189 = arith.subf %160, %188 : vector<1x128xf32>
    %190 = vector.broadcast %187 : vector<1x128xf32> to vector<16x128xf32>
    %191 = arith.mulf %158, %190 : vector<16x128xf32>
    %192 = vector.broadcast %189 : vector<1x128xf32> to vector<16x128xf32>
    %193 = arith.addf %191, %192 : vector<16x128xf32>
    %cst_82 = arith.constant 0.000000e+00 : f32
    %194 = vector.broadcast %cst_82 : f32 to vector<16x128xf32>
    %195 = arith.maximumf %193, %194 : vector<16x128xf32>
    %196 = arith.truncf %195 : vector<16x128xf32> to vector<16x128xbf16>
    %c1024 = arith.constant 1024 : index
    %c0_83 = arith.constant 0 : index
    %197 = vector.load %arg4[%c1024, %c0_83] : memref<2048x128xbf16, #tpu.memory_space<vmem>>, vector<128x128xbf16>
    %cst_84 = arith.constant dense<0.000000e+00> : vector<16x128xf32>
    %198 = tpu.matmul %196, %197, %cst_84 {dimension_numbers = #tpu.dot_dimension_numbers<[1], [0], [0], [1], [0, 0, 1, 1], [], []>} : vector<16x128xbf16>, vector<128x128xbf16>, vector<16x128xf32> -> vector<16x128xf32>
    %cst_85 = arith.constant dense<0.000000e+00> : vector<32x128xf32>
    %199 = tpu.matmul %7, %198, %cst_85 {dimension_numbers = #tpu.dot_dimension_numbers<[1], [0], [0], [1], [0, 0, 1, 1], [], []>} : vector<32x16xf32>, vector<16x128xf32>, vector<32x128xf32> -> vector<32x128xf32>
    %c1152 = arith.constant 1152 : index
    %c0_86 = arith.constant 0 : index
    %200 = vector.load %arg4[%c1152, %c0_86] : memref<2048x128xbf16, #tpu.memory_space<vmem>>, vector<128x128xbf16>
    %cst_87 = arith.constant dense<0.000000e+00> : vector<16x128xf32>
    %201 = tpu.matmul %196, %200, %cst_87 {dimension_numbers = #tpu.dot_dimension_numbers<[1], [0], [0], [1], [0, 0, 1, 1], [], []>} : vector<16x128xbf16>, vector<128x128xbf16>, vector<16x128xf32> -> vector<16x128xf32>
    %cst_88 = arith.constant dense<0.000000e+00> : vector<32x128xf32>
    %202 = tpu.matmul %8, %201, %cst_88 {dimension_numbers = #tpu.dot_dimension_numbers<[1], [0], [0], [1], [0, 0, 1, 1], [], []>} : vector<32x16xf32>, vector<16x128xf32>, vector<32x128xf32> -> vector<32x128xf32>
    %203 = arith.addf %199, %202 : vector<32x128xf32>
    %204 = vector.extract_strided_slice %0 {offsets = [8, 0], sizes = [1, 128], strides = [1, 1]} : vector<12x128xf32> to vector<1x128xf32>
    %205 = vector.extract_strided_slice %0 {offsets = [9, 0], sizes = [1, 128], strides = [1, 1]} : vector<12x128xf32> to vector<1x128xf32>
    %cst_89 = arith.constant dense<0.000000e+00> : vector<128xf32>
    %206 = vector.multi_reduction <add>, %61, %cst_89 [0] : vector<32x128xf32> to vector<128xf32>
    %207 = vector.shape_cast %206 : vector<128xf32> to vector<1x128xf32>
    %208 = arith.mulf %61, %61 : vector<32x128xf32>
    %cst_90 = arith.constant dense<0.000000e+00> : vector<128xf32>
    %209 = vector.multi_reduction <add>, %208, %cst_90 [0] : vector<32x128xf32> to vector<128xf32>
    %210 = vector.shape_cast %209 : vector<128xf32> to vector<1x128xf32>
    %c8_i32_91 = arith.constant 8 : i32
    %211 = tpu.dynamic_rotate %207 by %c8_i32_91 dim 1 : vector<1x128xf32>, i32 -> vector<1x128xf32>
    %212 = arith.addf %207, %211 : vector<1x128xf32>
    %c8_i32_92 = arith.constant 8 : i32
    %213 = tpu.dynamic_rotate %210 by %c8_i32_92 dim 1 : vector<1x128xf32>, i32 -> vector<1x128xf32>
    %214 = arith.addf %210, %213 : vector<1x128xf32>
    %c16_i32_93 = arith.constant 16 : i32
    %215 = tpu.dynamic_rotate %212 by %c16_i32_93 dim 1 : vector<1x128xf32>, i32 -> vector<1x128xf32>
    %216 = arith.addf %212, %215 : vector<1x128xf32>
    %c16_i32_94 = arith.constant 16 : i32
    %217 = tpu.dynamic_rotate %214 by %c16_i32_94 dim 1 : vector<1x128xf32>, i32 -> vector<1x128xf32>
    %218 = arith.addf %214, %217 : vector<1x128xf32>
    %c32_i32_95 = arith.constant 32 : i32
    %219 = tpu.dynamic_rotate %216 by %c32_i32_95 dim 1 : vector<1x128xf32>, i32 -> vector<1x128xf32>
    %220 = arith.addf %216, %219 : vector<1x128xf32>
    %c32_i32_96 = arith.constant 32 : i32
    %221 = tpu.dynamic_rotate %218 by %c32_i32_96 dim 1 : vector<1x128xf32>, i32 -> vector<1x128xf32>
    %222 = arith.addf %218, %221 : vector<1x128xf32>
    %c64_i32_97 = arith.constant 64 : i32
    %223 = tpu.dynamic_rotate %220 by %c64_i32_97 dim 1 : vector<1x128xf32>, i32 -> vector<1x128xf32>
    %224 = arith.addf %220, %223 : vector<1x128xf32>
    %c64_i32_98 = arith.constant 64 : i32
    %225 = tpu.dynamic_rotate %222 by %c64_i32_98 dim 1 : vector<1x128xf32>, i32 -> vector<1x128xf32>
    %226 = arith.addf %222, %225 : vector<1x128xf32>
    %cst_99 = arith.constant 0.001953125 : f32
    %227 = vector.broadcast %cst_99 : f32 to vector<1x128xf32>
    %228 = arith.mulf %224, %227 : vector<1x128xf32>
    %cst_100 = arith.constant 0.001953125 : f32
    %229 = vector.broadcast %cst_100 : f32 to vector<1x128xf32>
    %230 = arith.mulf %226, %229 : vector<1x128xf32>
    %231 = arith.mulf %228, %228 : vector<1x128xf32>
    %232 = arith.subf %230, %231 : vector<1x128xf32>
    %cst_101 = arith.constant 9.99999974E-5 : f32
    %233 = vector.broadcast %cst_101 : f32 to vector<1x128xf32>
    %234 = arith.addf %232, %233 : vector<1x128xf32>
    %235 = math.rsqrt %234 : vector<1x128xf32>
    %236 = arith.mulf %235, %204 : vector<1x128xf32>
    %237 = arith.mulf %228, %236 : vector<1x128xf32>
    %238 = arith.subf %205, %237 : vector<1x128xf32>
    %239 = vector.broadcast %236 : vector<1x128xf32> to vector<32x128xf32>
    %240 = arith.mulf %61, %239 : vector<32x128xf32>
    %241 = vector.broadcast %238 : vector<1x128xf32> to vector<32x128xf32>
    %242 = arith.addf %240, %241 : vector<32x128xf32>
    %cst_102 = arith.constant 0.000000e+00 : f32
    %243 = vector.broadcast %cst_102 : f32 to vector<32x128xf32>
    %244 = arith.maximumf %242, %243 : vector<32x128xf32>
    %245 = arith.truncf %244 : vector<32x128xf32> to vector<32x128xbf16>
    %c1280 = arith.constant 1280 : index
    %c0_103 = arith.constant 0 : index
    %246 = vector.load %arg4[%c1280, %c0_103] : memref<2048x128xbf16, #tpu.memory_space<vmem>>, vector<128x128xbf16>
    %cst_104 = arith.constant dense<0.000000e+00> : vector<32x128xf32>
    %247 = tpu.matmul %245, %246, %cst_104 {dimension_numbers = #tpu.dot_dimension_numbers<[1], [0], [0], [1], [0, 0, 1, 1], [], []>} : vector<32x128xbf16>, vector<128x128xbf16>, vector<32x128xf32> -> vector<32x128xf32>
    %c1408 = arith.constant 1408 : index
    %c0_105 = arith.constant 0 : index
    %248 = vector.load %arg4[%c1408, %c0_105] : memref<2048x128xbf16, #tpu.memory_space<vmem>>, vector<128x128xbf16>
    %cst_106 = arith.constant dense<0.000000e+00> : vector<32x128xf32>
    %249 = tpu.matmul %245, %248, %cst_106 {dimension_numbers = #tpu.dot_dimension_numbers<[1], [0], [0], [1], [0, 0, 1, 1], [], []>} : vector<32x128xbf16>, vector<128x128xbf16>, vector<32x128xf32> -> vector<32x128xf32>
    %c1536 = arith.constant 1536 : index
    %c0_107 = arith.constant 0 : index
    %250 = vector.load %arg4[%c1536, %c0_107] : memref<2048x128xbf16, #tpu.memory_space<vmem>>, vector<128x128xbf16>
    %cst_108 = arith.constant dense<0.000000e+00> : vector<32x128xf32>
    %251 = tpu.matmul %245, %250, %cst_108 {dimension_numbers = #tpu.dot_dimension_numbers<[1], [0], [0], [1], [0, 0, 1, 1], [], []>} : vector<32x128xbf16>, vector<128x128xbf16>, vector<32x128xf32> -> vector<32x128xf32>
    %cst_109 = arith.constant dense<0.000000e+00> : vector<32x128xf32>
    %252 = tpu.matmul %1, %247, %cst_109 {dimension_numbers = #tpu.dot_dimension_numbers<[1], [0], [0], [1], [0, 0, 1, 1], [], []>} : vector<32x32xf32>, vector<32x128xf32>, vector<32x128xf32> -> vector<32x128xf32>
    %253 = arith.addf %252, %249 : vector<32x128xf32>
    %cst_110 = arith.constant dense<0.000000e+00> : vector<32x128xf32>
    %254 = tpu.matmul %2, %251, %cst_110 {dimension_numbers = #tpu.dot_dimension_numbers<[1], [0], [0], [1], [0, 0, 1, 1], [], []>} : vector<32x32xf32>, vector<32x128xf32>, vector<32x128xf32> -> vector<32x128xf32>
    %255 = arith.addf %253, %254 : vector<32x128xf32>
    %256 = vector.extract_strided_slice %0 {offsets = [10, 0], sizes = [1, 128], strides = [1, 1]} : vector<12x128xf32> to vector<1x128xf32>
    %257 = vector.extract_strided_slice %0 {offsets = [11, 0], sizes = [1, 128], strides = [1, 1]} : vector<12x128xf32> to vector<1x128xf32>
    %cst_111 = arith.constant dense<0.000000e+00> : vector<128xf32>
    %258 = vector.multi_reduction <add>, %203, %cst_111 [0] : vector<32x128xf32> to vector<128xf32>
    %259 = vector.shape_cast %258 : vector<128xf32> to vector<1x128xf32>
    %260 = arith.mulf %203, %203 : vector<32x128xf32>
    %cst_112 = arith.constant dense<0.000000e+00> : vector<128xf32>
    %261 = vector.multi_reduction <add>, %260, %cst_112 [0] : vector<32x128xf32> to vector<128xf32>
    %262 = vector.shape_cast %261 : vector<128xf32> to vector<1x128xf32>
    %c8_i32_113 = arith.constant 8 : i32
    %263 = tpu.dynamic_rotate %259 by %c8_i32_113 dim 1 : vector<1x128xf32>, i32 -> vector<1x128xf32>
    %264 = arith.addf %259, %263 : vector<1x128xf32>
    %c8_i32_114 = arith.constant 8 : i32
    %265 = tpu.dynamic_rotate %262 by %c8_i32_114 dim 1 : vector<1x128xf32>, i32 -> vector<1x128xf32>
    %266 = arith.addf %262, %265 : vector<1x128xf32>
    %c16_i32_115 = arith.constant 16 : i32
    %267 = tpu.dynamic_rotate %264 by %c16_i32_115 dim 1 : vector<1x128xf32>, i32 -> vector<1x128xf32>
    %268 = arith.addf %264, %267 : vector<1x128xf32>
    %c16_i32_116 = arith.constant 16 : i32
    %269 = tpu.dynamic_rotate %266 by %c16_i32_116 dim 1 : vector<1x128xf32>, i32 -> vector<1x128xf32>
    %270 = arith.addf %266, %269 : vector<1x128xf32>
    %c32_i32_117 = arith.constant 32 : i32
    %271 = tpu.dynamic_rotate %268 by %c32_i32_117 dim 1 : vector<1x128xf32>, i32 -> vector<1x128xf32>
    %272 = arith.addf %268, %271 : vector<1x128xf32>
    %c32_i32_118 = arith.constant 32 : i32
    %273 = tpu.dynamic_rotate %270 by %c32_i32_118 dim 1 : vector<1x128xf32>, i32 -> vector<1x128xf32>
    %274 = arith.addf %270, %273 : vector<1x128xf32>
    %c64_i32_119 = arith.constant 64 : i32
    %275 = tpu.dynamic_rotate %272 by %c64_i32_119 dim 1 : vector<1x128xf32>, i32 -> vector<1x128xf32>
    %276 = arith.addf %272, %275 : vector<1x128xf32>
    %c64_i32_120 = arith.constant 64 : i32
    %277 = tpu.dynamic_rotate %274 by %c64_i32_120 dim 1 : vector<1x128xf32>, i32 -> vector<1x128xf32>
    %278 = arith.addf %274, %277 : vector<1x128xf32>
    %cst_121 = arith.constant 0.001953125 : f32
    %279 = vector.broadcast %cst_121 : f32 to vector<1x128xf32>
    %280 = arith.mulf %276, %279 : vector<1x128xf32>
    %cst_122 = arith.constant 0.001953125 : f32
    %281 = vector.broadcast %cst_122 : f32 to vector<1x128xf32>
    %282 = arith.mulf %278, %281 : vector<1x128xf32>
    %283 = arith.mulf %280, %280 : vector<1x128xf32>
    %284 = arith.subf %282, %283 : vector<1x128xf32>
    %cst_123 = arith.constant 9.99999974E-5 : f32
    %285 = vector.broadcast %cst_123 : f32 to vector<1x128xf32>
    %286 = arith.addf %284, %285 : vector<1x128xf32>
    %287 = math.rsqrt %286 : vector<1x128xf32>
    %288 = arith.mulf %287, %256 : vector<1x128xf32>
    %289 = arith.mulf %280, %288 : vector<1x128xf32>
    %290 = arith.subf %257, %289 : vector<1x128xf32>
    %291 = vector.broadcast %288 : vector<1x128xf32> to vector<32x128xf32>
    %292 = arith.mulf %203, %291 : vector<32x128xf32>
    %293 = vector.broadcast %290 : vector<1x128xf32> to vector<32x128xf32>
    %294 = arith.addf %292, %293 : vector<32x128xf32>
    %cst_124 = arith.constant 0.000000e+00 : f32
    %295 = vector.broadcast %cst_124 : f32 to vector<32x128xf32>
    %296 = arith.maximumf %294, %295 : vector<32x128xf32>
    %297 = arith.truncf %296 : vector<32x128xf32> to vector<32x128xbf16>
    %c1664 = arith.constant 1664 : index
    %c0_125 = arith.constant 0 : index
    %298 = vector.load %arg4[%c1664, %c0_125] : memref<2048x128xbf16, #tpu.memory_space<vmem>>, vector<128x128xbf16>
    %cst_126 = arith.constant dense<0.000000e+00> : vector<32x128xf32>
    %299 = tpu.matmul %297, %298, %cst_126 {dimension_numbers = #tpu.dot_dimension_numbers<[1], [0], [0], [1], [0, 0, 1, 1], [], []>} : vector<32x128xbf16>, vector<128x128xbf16>, vector<32x128xf32> -> vector<32x128xf32>
    %c1792 = arith.constant 1792 : index
    %c0_127 = arith.constant 0 : index
    %300 = vector.load %arg4[%c1792, %c0_127] : memref<2048x128xbf16, #tpu.memory_space<vmem>>, vector<128x128xbf16>
    %cst_128 = arith.constant dense<0.000000e+00> : vector<32x128xf32>
    %301 = tpu.matmul %297, %300, %cst_128 {dimension_numbers = #tpu.dot_dimension_numbers<[1], [0], [0], [1], [0, 0, 1, 1], [], []>} : vector<32x128xbf16>, vector<128x128xbf16>, vector<32x128xf32> -> vector<32x128xf32>
    %c1920 = arith.constant 1920 : index
    %c0_129 = arith.constant 0 : index
    %302 = vector.load %arg4[%c1920, %c0_129] : memref<2048x128xbf16, #tpu.memory_space<vmem>>, vector<128x128xbf16>
    %cst_130 = arith.constant dense<0.000000e+00> : vector<32x128xf32>
    %303 = tpu.matmul %297, %302, %cst_130 {dimension_numbers = #tpu.dot_dimension_numbers<[1], [0], [0], [1], [0, 0, 1, 1], [], []>} : vector<32x128xbf16>, vector<128x128xbf16>, vector<32x128xf32> -> vector<32x128xf32>
    %cst_131 = arith.constant dense<0.000000e+00> : vector<32x128xf32>
    %304 = tpu.matmul %1, %299, %cst_131 {dimension_numbers = #tpu.dot_dimension_numbers<[1], [0], [0], [1], [0, 0, 1, 1], [], []>} : vector<32x32xf32>, vector<32x128xf32>, vector<32x128xf32> -> vector<32x128xf32>
    %305 = arith.addf %304, %301 : vector<32x128xf32>
    %cst_132 = arith.constant dense<0.000000e+00> : vector<32x128xf32>
    %306 = tpu.matmul %2, %303, %cst_132 {dimension_numbers = #tpu.dot_dimension_numbers<[1], [0], [0], [1], [0, 0, 1, 1], [], []>} : vector<32x32xf32>, vector<32x128xf32>, vector<32x128xf32> -> vector<32x128xf32>
    %307 = arith.addf %305, %306 : vector<32x128xf32>
    %308 = arith.addf %255, %307 : vector<32x128xf32>
    %c0_133 = arith.constant 0 : index
    %c0_134 = arith.constant 0 : index
    %309 = vector.load %arg5[%c0_133, %c0_134] : memref<32x128xf32, #tpu.memory_space<vmem>>, vector<32x128xf32>
    tpu.vector_store %arg5[%c0_133, %c0_134], %308 {strides = array<i32>} : memref<32x128xf32, #tpu.memory_space<vmem>>, vector<32x128xf32>,
    return
  }
  func.func @transform_0(%arg0: i32) -> (i32, i32) {
    %c0_i32 = arith.constant 0 : i32
    %c0_i32_0 = arith.constant 0 : i32
    %c0_i32_1 = arith.constant 0 : i32
    return %c0_i32, %c0_i32_0 : i32, i32
  }
  func.func @transform_1(%arg0: i32) -> (i32, i32) {
    %c0_i32 = arith.constant 0 : i32
    %c0_i32_0 = arith.constant 0 : i32
    %c0_i32_1 = arith.constant 0 : i32
    return %c0_i32, %c0_i32_0 : i32, i32
  }
  func.func @transform_2(%arg0: i32) -> (i32, i32) {
    %c0_i32 = arith.constant 0 : i32
    %c0_i32_0 = arith.constant 0 : i32
    %c0_i32_1 = arith.constant 0 : i32
    return %c0_i32, %c0_i32_0 : i32, i32
  }
  func.func @transform_3(%arg0: i32) -> (i32, i32) {
    %c0_i32 = arith.constant 0 : i32
    %c0_i32_0 = arith.constant 0 : i32
    %c0_i32_1 = arith.constant 0 : i32
    return %c0_i32, %c0_i32_0 : i32, i32
  }
  func.func @transform_4(%arg0: i32) -> (i32, i32) {
    %c0_i32 = arith.constant 0 : i32
    %c0_i32_0 = arith.constant 0 : i32
    %c0_i32_1 = arith.constant 0 : i32
    return %c0_i32, %c0_i32_0 : i32, i32
  }
}

</mosaic_0001>

<llo_original>
// kernel: tile.95
$region0: #{tile.95}
  #allocation0 [shape = 's32[1]{0}', space=sflag, size = 0x4, scoped, tag = 'scoped memory for tile.95']
  %s0 = inlined_call_operand.vmem [shape: f32[8], index: 0, kind: input, shape index: {}]
  %s1 = inlined_call_operand.vmem [shape: f32[16,8], index: 1, kind: output, shape index: {}]
  // Predicated region
  $region2: #{tile.95} parent=0 // pred_check
    _
  $region3: #{tile.95} parent=0 // pred_check_branch
    %3 = sbr.rel (0) target = $region5
  $region4: #{tile.95} parent=0 // pred_region
    _
  $region5: #{tile.95} parent=0 // pred_fallthru
    _
  %v4 = vld [vmem:[%s0] ss:$0 sm:$0xff]
  %5 = vst [vmem:[%s1] sm:$0xff] %v4
  %s6 = scalar_lea.vmem %s1, 8
  %7 = vst [vmem:[%s6] sm:$0xff] %v4

// kernel: tile.116
$region0: #{tile.116}
  %s0 = inlined_call_operand.vmem [shape: f32[16,8], index: 0, kind: input, shape index: {}]
  %s1 = inlined_call_operand.vmem [shape: f32[1,128], index: 1, kind: output, shape index: {}]
  $region1: #{tile.116} parent=0
    #allocation0 [shape = 'u8[4096]{0}', space=vmem, size = 0x1000, scoped, tag = 'scoped mem for output reshape']
    %v2 = vld [vmem:[%s0] sm:$0x1]
    %vm3 = vcmask 64512
    %4 = vst.msk [vmem:[#allocation0] sm:$0x1] %vm3, %v2
    %s5 = scalar_lea.vmem %s0, 15
    %v6 = vld [vmem:[%s5] sm:$0x1]
    %7 = vrot.lane.b32.xlu0 %v6, 120
    %v8 = vpop.permute.xlu0 %7
    %vm9 = vcmask 1048512
    %10 = vst.msk [vmem:[#allocation0] sm:$0x1] %vm9, %v8
    %s11 = scalar_lea.vmem %s0, 14
    %v12 = vld [vmem:[%s11] sm:$0x1]
    %13 = vrot.lane.b32.xlu0 %v12, 112
    %v14 = vpop.permute.xlu0 %13
    %vm15 = vcmask 982912
    %16 = vst.msk [vmem:[#allocation0] sm:$0x1] %vm15, %v14
    %s17 = scalar_lea.vmem %s0, 13
    %v18 = vld [vmem:[%s17] sm:$0x1]
    %19 = vrot.lane.b32.xlu0 %v18, 104
    %v20 = vpop.permute.xlu0 %19
    %vm21 = vcmask 917312
    %22 = vst.msk [vmem:[#allocation0] sm:$0x1] %vm21, %v20
    %s23 = scalar_lea.vmem %s0, 12
    %v24 = vld [vmem:[%s23] sm:$0x1]
    %25 = vrot.lane.b32.xlu0 %v24, 96
    %v26 = vpop.permute.xlu0 %25
    %vm27 = vcmask 851712
    %28 = vst.msk [vmem:[#allocation0] sm:$0x1] %vm27, %v26
    %s29 = scalar_lea.vmem %s0, 11
    %v30 = vld [vmem:[%s29] sm:$0x1]
    %31 = vrot.lane.b32.xlu0 %v30, 88
    %v32 = vpop.permute.xlu0 %31
    %vm33 = vcmask 786112
    %34 = vst.msk [vmem:[#allocation0] sm:$0x1] %vm33, %v32
    %s35 = scalar_lea.vmem %s0, 10
    %v36 = vld [vmem:[%s35] sm:$0x1]
    %37 = vrot.lane.b32.xlu0 %v36, 80
    %v38 = vpop.permute.xlu0 %37
    %vm39 = vcmask 720512
    %40 = vst.msk [vmem:[#allocation0] sm:$0x1] %vm39, %v38
    %s41 = scalar_lea.vmem %s0, 9
    %v42 = vld [vmem:[%s41] sm:$0x1]
    %43 = vrot.lane.b32.xlu0 %v42, 72
    %v44 = vpop.permute.xlu0 %43
    %vm45 = vcmask 654912
    %46 = vst.msk [vmem:[#allocation0] sm:$0x1] %vm45, %v44
    %s47 = scalar_lea.vmem %s0, 8
    %v48 = vld [vmem:[%s47] sm:$0x1]
    %49 = vrot.lane.b32.xlu0 %v48, 64
    %v50 = vpop.permute.xlu0 %49
    %vm51 = vcmask 589312
    %52 = vst.msk [vmem:[#allocation0] sm:$0x1] %vm51, %v50
    %s53 = scalar_lea.vmem %s0, 7
    %v54 = vld [vmem:[%s53] sm:$0x1]
    %55 = vrot.lane.b32.xlu0 %v54, 56
    %v56 = vpop.permute.xlu0 %55
    %vm57 = vcmask 523712
    %58 = vst.msk [vmem:[#allocation0] sm:$0x1] %vm57, %v56
    %s59 = scalar_lea.vmem %s0, 6
    %v60 = vld [vmem:[%s59] sm:$0x1]
    %61 = vrot.lane.b32.xlu0 %v60, 48
    %v62 = vpop.permute.xlu0 %61
    %vm63 = vcmask 458112
    %64 = vst.msk [vmem:[#allocation0] sm:$0x1] %vm63, %v62
    %s65 = scalar_lea.vmem %s0, 5
    %v66 = vld [vmem:[%s65] sm:$0x1]
    %67 = vrot.lane.b32.xlu0 %v66, 40
    %v68 = vpop.permute.xlu0 %67
    %vm69 = vcmask 392512
    %70 = vst.msk [vmem:[#allocation0] sm:$0x1] %vm69, %v68
    %s71 = scalar_lea.vmem %s0, 4
    %v72 = vld [vmem:[%s71] sm:$0x1]
    %73 = vrot.lane.b32.xlu0 %v72, 32
    %v74 = vpop.permute.xlu0 %73
    %vm75 = vcmask 326912
    %76 = vst.msk [vmem:[#allocation0] sm:$0x1] %vm75, %v74
    %s77 = scalar_lea.vmem %s0, 3
    %v78 = vld [vmem:[%s77] sm:$0x1]
    %79 = vrot.lane.b32.xlu0 %v78, 24
    %v80 = vpop.permute.xlu0 %79
    %vm81 = vcmask 261312
    %82 = vst.msk [vmem:[#allocation0] sm:$0x1] %vm81, %v80
    %s83 = scalar_lea.vmem %s0, 2
    %v84 = vld [vmem:[%s83] sm:$0x1]
    %85 = vrot.lane.b32.xlu0 %v84, 16
    %v86 = vpop.permute.xlu0 %85
    %vm87 = vcmask 195712
    %88 = vst.msk [vmem:[#allocation0] sm:$0x1] %vm87, %v86
    %s89 = scalar_lea.vmem %s0, 1
    %v90 = vld [vmem:[%s89] sm:$0x1]
    %91 = vrot.lane.b32.xlu0 %v90, 8
    %v92 = vpop.permute.xlu0 %91
    %vm93 = vcmask 130112
    %94 = vst.msk [vmem:[#allocation0] sm:$0x1] %vm93, %v92
    %s96 = sshllo.u32 0, 1
    %v98 = vld [vmem:[#allocation0] sm:%s96]
    %s99 = sshllo.u32 0, 1
    %100 = vst [vmem:[%s1] sm:%s99] %v98

// kernel: tile.79
$region0: #{tile.79}
  #allocation0 [shape = 's32[1]{0}', space=sflag, size = 0x4, scoped, tag = 'scoped memory for tile.79']
  %s0 = inlined_call_operand.vmem [shape: f32[16], index: 0, kind: input, shape index: {}]
  %s1 = inlined_call_operand.vmem [shape: f32[8,16], index: 1, kind: output, shape index: {}]
  // Predicated region
  $region2: #{tile.79} parent=0 // pred_check
    _
  $region3: #{tile.79} parent=0 // pred_check_branch
    %3 = sbr.rel (0) target = $region5
  $region4: #{tile.79} parent=0 // pred_region
    _
  $region5: #{tile.79} parent=0 // pred_fallthru
    _
  %v4 = vld [vmem:[%s0] ss:$0 sm:$0xff]
  %5 = vst [vmem:[%s1] sm:$0xff] %v4

// kernel: tile.112
$region0: #{tile.112}
  %s0 = inlined_call_operand.vmem [shape: f32[8,16], index: 0, kind: input, shape index: {}]
  %s1 = inlined_call_operand.vmem [shape: f32[1,128], index: 1, kind: output, shape index: {}]
  $region1: #{tile.112} parent=0
    #allocation0 [shape = 'u8[4096]{0}', space=vmem, size = 0x1000, scoped, tag = 'scoped mem for output reshape']
    %v2 = vld [vmem:[%s0] sm:$0x1]
    %vm3 = vcmask 130048
    %4 = vst.msk [vmem:[#allocation0] sm:$0x1] %vm3, %v2
    %s5 = scalar_lea.vmem %s0, 7
    %v6 = vld [vmem:[%s5] sm:$0x1]
    %7 = vrot.lane.b32.xlu0 %v6, 112
    %v8 = vpop.permute.xlu0 %7
    %vm9 = vcmask 1048448
    %10 = vst.msk [vmem:[#allocation0] sm:$0x1] %vm9, %v8
    %s11 = scalar_lea.vmem %s0, 6
    %v12 = vld [vmem:[%s11] sm:$0x1]
    %13 = vrot.lane.b32.xlu0 %v12, 96
    %v14 = vpop.permute.xlu0 %13
    %vm15 = vcmask 917248
    %16 = vst.msk [vmem:[#allocation0] sm:$0x1] %vm15, %v14
    %s17 = scalar_lea.vmem %s0, 5
    %v18 = vld [vmem:[%s17] sm:$0x1]
    %19 = vrot.lane.b32.xlu0 %v18, 80
    %v20 = vpop.permute.xlu0 %19
    %vm21 = vcmask 786048
    %22 = vst.msk [vmem:[#allocation0] sm:$0x1] %vm21, %v20
    %s23 = scalar_lea.vmem %s0, 4
    %v24 = vld [vmem:[%s23] sm:$0x1]
    %25 = vrot.lane.b32.xlu0 %v24, 64
    %v26 = vpop.permute.xlu0 %25
    %vm27 = vcmask 654848
    %28 = vst.msk [vmem:[#allocation0] sm:$0x1] %vm27, %v26
    %s29 = scalar_lea.vmem %s0, 3
    %v30 = vld [vmem:[%s29] sm:$0x1]
    %31 = vrot.lane.b32.xlu0 %v30, 48
    %v32 = vpop.permute.xlu0 %31
    %vm33 = vcmask 523648
    %34 = vst.msk [vmem:[#allocation0] sm:$0x1] %vm33, %v32
    %s35 = scalar_lea.vmem %s0, 2
    %v36 = vld [vmem:[%s35] sm:$0x1]
    %37 = vrot.lane.b32.xlu0 %v36, 32
    %v38 = vpop.permute.xlu0 %37
    %vm39 = vcmask 392448
    %40 = vst.msk [vmem:[#allocation0] sm:$0x1] %vm39, %v38
    %s41 = scalar_lea.vmem %s0, 1
    %v42 = vld [vmem:[%s41] sm:$0x1]
    %43 = vrot.lane.b32.xlu0 %v42, 16
    %v44 = vpop.permute.xlu0 %43
    %vm45 = vcmask 261248
    %46 = vst.msk [vmem:[#allocation0] sm:$0x1] %vm45, %v44
    %s48 = sshllo.u32 0, 1
    %v50 = vld [vmem:[#allocation0] sm:%s48]
    %s51 = sshllo.u32 0, 1
    %52 = vst [vmem:[%s1] sm:%s51] %v50

// kernel: concat_unet_forward.1
$region0: #{concat_unet_forward.1}
  #allocation0 [shape = 'u32[]', space=smem, size = 0x4, offset = 0x4, fixed_abs, tag = 'smem constant byte address 0x4 - core index']
  #allocation1 [shape = 'u32[144,128]{1,0:T(1,128)}', space=vmem, size = 0x12000, scoped, tag = 'internal scratch']
  %s0 = inlined_call_operand.vmem [shape: f32[32,128], index: 0, kind: input, shape index: {}]
  %s1 = inlined_call_operand.vmem [shape: f32[12,128], index: 1, kind: input, shape index: {}]
  %s2 = inlined_call_operand.vmem [shape: f32[192,32], index: 2, kind: input, shape index: {}]
  %s3 = inlined_call_operand.vmem [shape: bf16[2048,128], index: 3, kind: input, shape index: {}]
  %s4 = inlined_call_operand.vmem [shape: f32[32,128], index: 4, kind: output, shape index: {}]
  %s5 = sld [smem:[#allocation0]]
  $region26: #{concat_unet_forward.1} parent=0
    _
  %s7 = ssub.s32 1, %s5
  %s8 = scalar_select 0, %s7, %s5
  // Predicated region
  $region2: #{concat_unet_forward.1} parent=0 // pred_check
    _
  $region3: #{concat_unet_forward.1} parent=0 // pred_check_branch
    %10 = sbr.rel (0) target = $region5
  $region4: #{concat_unet_forward.1} parent=0 // pred_region
    _
  $region5: #{concat_unet_forward.1} parent=0 // pred_fallthru
    _
  // Predicated region
  $region6: #{concat_unet_forward.1} parent=0 // pred_check
    _
  $region7: #{concat_unet_forward.1} parent=0 // pred_check_branch
    %12 = sbr.rel (0) target = $region9
  $region8: #{concat_unet_forward.1} parent=0 // pred_region
    _
  $region9: #{concat_unet_forward.1} parent=0 // pred_fallthru
    _
  // Predicated region
  $region10: #{concat_unet_forward.1} parent=0 // pred_check
    _
  $region11: #{concat_unet_forward.1} parent=0 // pred_check_branch
    %14 = sbr.rel (0) target = $region13
  $region12: #{concat_unet_forward.1} parent=0 // pred_region
    _
  $region13: #{concat_unet_forward.1} parent=0 // pred_fallthru
    _
  // Predicated region
  $region14: #{concat_unet_forward.1} parent=0 // pred_check
    _
  $region15: #{concat_unet_forward.1} parent=0 // pred_check_branch
    %16 = sbr.rel (0) target = $region17
  $region16: #{concat_unet_forward.1} parent=0 // pred_region
    _
  $region17: #{concat_unet_forward.1} parent=0 // pred_fallthru
    _
  %v18 = vld [vmem:[%s1] sm:$0xff]
  %v19 = vld [vmem:[%s1 + $0x8] sm:$0xf]
  %v20 = vld [vmem:[%s2] sm:$0xff]
  %v21 = vld [vmem:[%s2 + $0x8] sm:$0xff]
  %v22 = vld [vmem:[%s2 + $0x10] sm:$0xff]
  %v23 = vld [vmem:[%s2 + $0x18] sm:$0xff]
  %v24 = vld [vmem:[%s2 + $0x20] sm:$0xff]
  %v25 = vld [vmem:[%s2 + $0x28] sm:$0xff]
  %v26 = vld [vmem:[%s2 + $0x30] sm:$0xff]
  %v27 = vld [vmem:[%s2 + $0x38] sm:$0xff]
  %v28 = vld [vmem:[%s2 + $0x40] sm:$0xff]
  %v29 = vld [vmem:[%s2 + $0x48] sm:$0xff]
  %v30 = vld [vmem:[%s2 + $0x50] sm:$0xff]
  %v31 = vld [vmem:[%s2 + $0x58] sm:$0xff]
  %v32 = vld [vmem:[%s2 + $0x60] sm:$0xff]
  %v33 = vld [vmem:[%s2 + $0x68] sm:$0xff]
  %v34 = vld [vmem:[%s2 + $0x70] sm:$0xff]
  %v35 = vld [vmem:[%s2 + $0x78] sm:$0xff]
  %v36 = vld [vmem:[%s2 + $0x80] sm:$0xff]
  %v37 = vld [vmem:[%s2 + $0x88] sm:$0xff]
  %v38 = vld [vmem:[%s2 + $0x90] sm:$0xff]
  %v39 = vld [vmem:[%s2 + $0x98] sm:$0xff]
  %v40 = vld [vmem:[%s2 + $0xa0] sm:$0xff]
  %v41 = vld [vmem:[%s2 + $0xa8] sm:$0xff]
  %v42 = vld [vmem:[%s2 + $0xb0] sm:$0xff]
  %v43 = vld [vmem:[%s2 + $0xb8] sm:$0xff]
  %v44 = vld [vmem:[%s0] sm:$0xff]
  %v45 = vld [vmem:[%s0 + $0x8] sm:$0xff]
  %v46 = vld [vmem:[%s0 + $0x10] sm:$0xff]
  %v47 = vld [vmem:[%s0 + $0x18] sm:$0xff]
  %v48 = vadd.f32 %v44, %v45
  %v49 = vadd.f32 %v48, %v46
  %v50 = vadd.f32 %v49, %v47
  %v51 = vrot.slane %v50, 4
  %v52 = vadd.f32 %v50, %v51
  %v53 = vrot.slane %v52, 2
  %v54 = vadd.f32 %v52, %v53
  %v55 = vrot.slane %v54, 1
  %v56 = vadd.f32 %v54, %v55
  %v57 = vmul.f32 %v44, %v44
  %v58 = vmul.f32 %v45, %v45
  %v59 = vmul.f32 %v46, %v46
  %v60 = vmul.f32 %v47, %v47
  %v61 = vadd.f32 %v57, %v58
  %v62 = vadd.f32 %v61, %v59
  %v63 = vadd.f32 %v62, %v60
  %v64 = vrot.slane %v63, 4
  %v65 = vadd.f32 %v63, %v64
  %v66 = vrot.slane %v65, 2
  %v67 = vadd.f32 %v65, %v66
  %v68 = vrot.slane %v67, 1
  %v69 = vadd.f32 %v67, %v68
  %70 = vrot.lane.b32.xlu0 %v56, 8
  %v71 = vpop.permute.xlu0 %70
  %v72 = vadd.f32 %v56, %v71
  %73 = vrot.lane.b32.xlu0 %v69, 8
  %v74 = vpop.permute.xlu0 %73
  %v75 = vadd.f32 %v69, %v74
  %76 = vrot.lane.b32.xlu0 %v72, 16
  %v77 = vpop.permute.xlu0 %76
  %v78 = vadd.f32 %v72, %v77
  %79 = vrot.lane.b32.xlu0 %v75, 16
  %v80 = vpop.permute.xlu0 %79
  %v81 = vadd.f32 %v75, %v80
  %82 = vrot.lane.b32.xlu0 %v78, 32
  %v83 = vpop.permute.xlu0 %82
  %v84 = vadd.f32 %v78, %v83
  %85 = vrot.lane.b32.xlu0 %v81, 32
  %v86 = vpop.permute.xlu0 %85
  %v87 = vadd.f32 %v81, %v86
  %88 = vrot.lane.b32.xlu0 %v84, 64
  %v89 = vpop.permute.xlu0 %88
  %v90 = vadd.f32 %v84, %v89
  %91 = vrot.lane.b32.xlu0 %v87, 64
  %v92 = vpop.permute.xlu0 %91
  %v93 = vadd.f32 %v87, %v92
  %v94 = vmul.f32 %v90, 0.001953125
  %v95 = vmul.f32 %v93, 0.001953125
  %v96 = vmul.f32 %v94, %v94
  %v97 = vsub.f32 %v95, %v96
  %v98 = vadd.f32 %v97, 0.0001
  %v99 = vrsqrt.pop %v98
  %v100 = vmul.f32 %v99, %v18
  %v101 = vmul.f32 %v94, %v100
  %v103 = vrot.slane %v101, 7
  %v105 = vsub.f32 %v18, %v103
  %v106 = vlaneseq
  %v107 = vshrl.u32 %v106, 7
  %v108 = vsub.s32 0, %v107
  %v109 = vrot.slane %v100, %v108
  %v110 = vmul.f32 %v44, %v109
  %v111 = vmul.f32 %v45, %v109
  %v112 = vmul.f32 %v46, %v109
  %v113 = vmul.f32 %v47, %v109
  %v114 = vlaneseq
  %v115 = vshrl.u32 %v114, 7
  %v116 = vsub.s32 1, %v115
  %v117 = vrot.slane %v105, %v116
  %v118 = vadd.f32 %v110, %v117
  %v119 = vadd.f32 %v111, %v117
  %v120 = vadd.f32 %v112, %v117
  %v121 = vadd.f32 %v113, %v117
  %v122 = vmax.f32 %v118, 0.0
  %v123 = vmax.f32 %v119, 0.0
  %v124 = vmax.f32 %v120, 0.0
  %v125 = vmax.f32 %v121, 0.0
  %v126 = vpack.c.bf16 %v123, %v122
  %v127 = vpack.c.bf16 %v125, %v124
  %v128 = vld [vmem:[%s3] sm:$0xf]
  %v129 = vld [vmem:[%s3 + $0x4] sm:$0xf]
  %v130 = vld [vmem:[%s3 + $0x8] sm:$0xf]
  %v131 = vld [vmem:[%s3 + $0xc] sm:$0xf]
  %v132 = vld [vmem:[%s3 + $0x10] sm:$0xf]
  %v133 = vld [vmem:[%s3 + $0x14] sm:$0xf]
  %v134 = vld [vmem:[%s3 + $0x18] sm:$0xf]
  %v135 = vld [vmem:[%s3 + $0x1c] sm:$0xf]
  %v136 = vld [vmem:[%s3 + $0x20] sm:$0xf]
  %v137 = vld [vmem:[%s3 + $0x24] sm:$0xf]
  %v138 = vld [vmem:[%s3 + $0x28] sm:$0xf]
  %v139 = vld [vmem:[%s3 + $0x2c] sm:$0xf]
  %v140 = vld [vmem:[%s3 + $0x30] sm:$0xf]
  %v141 = vld [vmem:[%s3 + $0x34] sm:$0xf]
  %v142 = vld [vmem:[%s3 + $0x38] sm:$0xf]
  %v143 = vld [vmem:[%s3 + $0x3c] sm:$0xf]
  %v160 = vunpack.c.l.b16 %v128
  %v161 = vunpack.c.l.b16 %v129
  %v162 = vunpack.c.l.b16 %v130
  %v163 = vunpack.c.l.b16 %v131
  %v164 = vunpack.c.l.b16 %v132
  %v165 = vunpack.c.l.b16 %v133
  %v166 = vunpack.c.l.b16 %v134
  %v167 = vunpack.c.l.b16 %v135
  %v168 = vunpack.c.l.b16 %v136
  %v169 = vunpack.c.l.b16 %v137
  %v170 = vunpack.c.l.b16 %v138
  %v171 = vunpack.c.l.b16 %v139
  %v172 = vunpack.c.l.b16 %v140
  %v173 = vunpack.c.l.b16 %v141
  %v174 = vunpack.c.l.b16 %v142
  %v175 = vunpack.c.l.b16 %v143
  %v176 = vpack.c.b16 %v161, %v160
  %v177 = vpack.c.b16 %v163, %v162
  %v178 = vpack.c.b16 %v165, %v164
  %v179 = vpack.c.b16 %v167, %v166
  %v180 = vpack.c.b16 %v169, %v168
  %v181 = vpack.c.b16 %v171, %v170
  %v182 = vpack.c.b16 %v173, %v172
  %v183 = vpack.c.b16 %v175, %v174
  %192 = vmatprep.subr.bf16.mxu0 0
  %193 = vmatpush1.bf16.msra.mxu0 %v176
  %194 = vmatprep.subr.bf16.mxu0 0
  %195 = vmatpush1.bf16.msra.mxu0 %v177
  %196 = vmatprep.subr.bf16.mxu0 0
  %197 = vmatpush1.bf16.msra.mxu0 %v178
  %198 = vmatprep.subr.bf16.mxu0 0
  %199 = vmatpush1.bf16.msra.mxu0 %v179
  %200 = vmatprep.subr.bf16.mxu0 0
  %201 = vmatpush1.bf16.msra.mxu0 %v180
  %202 = vmatprep.subr.bf16.mxu0 0
  %203 = vmatpush1.bf16.msra.mxu0 %v181
  %204 = vmatprep.subr.bf16.mxu0 0
  %205 = vmatpush1.bf16.msra.mxu0 %v182
  %206 = vmatprep.subr.bf16.mxu0 0
  %207 = vmatpush1.bf16.msra.mxu0 %v183
  %208 = vmatprep.subr.bf16.mxu0 0
  %209 = vmatpush1.bf16.msra.mxu0 0
  %210 = vmatprep.subr.bf16.mxu0 0
  %211 = vmatpush1.bf16.msra.mxu0 0
  %212 = vmatprep.subr.bf16.mxu0 0
  %213 = vmatpush1.bf16.msra.mxu0 0
  %214 = vmatprep.subr.bf16.mxu0 0
  %215 = vmatpush1.bf16.msra.mxu0 0
  %216 = vmatprep.subr.bf16.mxu0 0
  %217 = vmatpush1.bf16.msra.mxu0 0
  %218 = vmatprep.subr.bf16.mxu0 0
  %219 = vmatpush1.bf16.msra.mxu0 0
  %220 = vmatprep.subr.bf16.mxu0 0
  %221 = vmatpush1.bf16.msra.mxu0 0
  %222 = vmatprep.subr.bf16.mxu0 0
  %223 = vmatpush1.bf16.msra.mxu0 0
  %224 = vmatprep.mubr.bf16.mxu0 0
  %225 = vmatmul.mubr.bf16.gmra.mrb[0].mxu0 %v126
  %v226 = vpop.f32.mrb[0].mxu0
  %v227 = vadd.f32 0.0, %v226
  %v228 = vpop.f32.mrb[0].mxu0
  %v229 = vpop.f32.mrb[0].mxu0
  %v230 = vadd.f32 0.0, %v229
  %v231 = vpop.f32.mrb[0].mxu0
  %232 = vmatprep.mubr.bf16.mxu0 0
  %233 = vmatmul.mubr.bf16.gmra.mrb[0].mxu0 %v127
  %v234 = vpop.f32.mrb[0].mxu0
  %v235 = vadd.f32 0.0, %v234
  %v236 = vpop.f32.mrb[0].mxu0
  %v237 = vpop.f32.mrb[0].mxu0
  %v238 = vadd.f32 0.0, %v237
  %v239 = vpop.f32.mrb[0].mxu0
  %240 = vdwg.mxu0
  %v241 = vld [vmem:[%s3 + $0x40] sm:$0xf]
  %v242 = vld [vmem:[%s3 + $0x44] sm:$0xf]
  %v243 = vld [vmem:[%s3 + $0x48] sm:$0xf]
  %v244 = vld [vmem:[%s3 + $0x4c] sm:$0xf]
  %v245 = vld [vmem:[%s3 + $0x50] sm:$0xf]
  %v246 = vld [vmem:[%s3 + $0x54] sm:$0xf]
  %v247 = vld [vmem:[%s3 + $0x58] sm:$0xf]
  %v248 = vld [vmem:[%s3 + $0x5c] sm:$0xf]
  %v249 = vld [vmem:[%s3 + $0x60] sm:$0xf]
  %v250 = vld [vmem:[%s3 + $0x64] sm:$0xf]
  %v251 = vld [vmem:[%s3 + $0x68] sm:$0xf]
  %v252 = vld [vmem:[%s3 + $0x6c] sm:$0xf]
  %v253 = vld [vmem:[%s3 + $0x70] sm:$0xf]
  %v254 = vld [vmem:[%s3 + $0x74] sm:$0xf]
  %v255 = vld [vmem:[%s3 + $0x78] sm:$0xf]
  %v256 = vld [vmem:[%s3 + $0x7c] sm:$0xf]
  %v273 = vunpack.c.l.b16 %v241
  %v274 = vunpack.c.l.b16 %v242
  %v275 = vunpack.c.l.b16 %v243
  %v276 = vunpack.c.l.b16 %v244
  %v277 = vunpack.c.l.b16 %v245
  %v278 = vunpack.c.l.b16 %v246
  %v279 = vunpack.c.l.b16 %v247
  %v280 = vunpack.c.l.b16 %v248
  %v281 = vunpack.c.l.b16 %v249
  %v282 = vunpack.c.l.b16 %v250
  %v283 = vunpack.c.l.b16 %v251
  %v284 = vunpack.c.l.b16 %v252
  %v285 = vunpack.c.l.b16 %v253
  %v286 = vunpack.c.l.b16 %v254
  %v287 = vunpack.c.l.b16 %v255
  %v288 = vunpack.c.l.b16 %v256
  %v289 = vpack.c.b16 %v274, %v273
  %v290 = vpack.c.b16 %v276, %v275
  %v291 = vpack.c.b16 %v278, %v277
  %v292 = vpack.c.b16 %v280, %v279
  %v293 = vpack.c.b16 %v282, %v281
  %v294 = vpack.c.b16 %v284, %v283
  %v295 = vpack.c.b16 %v286, %v285
  %v296 = vpack.c.b16 %v288, %v287
  %305 = vmatprep.subr.bf16.mxu0 0
  %306 = vmatpush1.bf16.msra.mxu0 %v289
  %307 = vmatprep.subr.bf16.mxu0 0
  %308 = vmatpush1.bf16.msra.mxu0 %v290
  %309 = vmatprep.subr.bf16.mxu0 0
  %310 = vmatpush1.bf16.msra.mxu0 %v291
  %311 = vmatprep.subr.bf16.mxu0 0
  %312 = vmatpush1.bf16.msra.mxu0 %v292
  %313 = vmatprep.subr.bf16.mxu0 0
  %314 = vmatpush1.bf16.msra.mxu0 %v293
  %315 = vmatprep.subr.bf16.mxu0 0
  %316 = vmatpush1.bf16.msra.mxu0 %v294
  %317 = vmatprep.subr.bf16.mxu0 0
  %318 = vmatpush1.bf16.msra.mxu0 %v295
  %319 = vmatprep.subr.bf16.mxu0 0
  %320 = vmatpush1.bf16.msra.mxu0 %v296
  %321 = vmatprep.subr.bf16.mxu0 0
  %322 = vmatpush1.bf16.msra.mxu0 0
  %323 = vmatprep.subr.bf16.mxu0 0
  %324 = vmatpush1.bf16.msra.mxu0 0
  %325 = vmatprep.subr.bf16.mxu0 0
  %326 = vmatpush1.bf16.msra.mxu0 0
  %327 = vmatprep.subr.bf16.mxu0 0
  %328 = vmatpush1.bf16.msra.mxu0 0
  %329 = vmatprep.subr.bf16.mxu0 0
  %330 = vmatpush1.bf16.msra.mxu0 0
  %331 = vmatprep.subr.bf16.mxu0 0
  %332 = vmatpush1.bf16.msra.mxu0 0
  %333 = vmatprep.subr.bf16.mxu0 0
  %334 = vmatpush1.bf16.msra.mxu0 0
  %335 = vmatprep.subr.bf16.mxu0 0
  %336 = vmatpush1.bf16.msra.mxu0 0
  %337 = vmatprep.mubr.bf16.mxu0 0
  %338 = vmatmul.mubr.bf16.gmra.mrb[0].mxu0 %v126
  %v339 = vpop.f32.mrb[0].mxu0
  %v340 = vadd.f32 0.0, %v339
  %v341 = vpop.f32.mrb[0].mxu0
  %v342 = vpop.f32.mrb[0].mxu0
  %v343 = vadd.f32 0.0, %v342
  %v344 = vpop.f32.mrb[0].mxu0
  %345 = vmatprep.mubr.bf16.mxu0 0
  %346 = vmatmul.mubr.bf16.gmra.mrb[0].mxu0 %v127
  %v347 = vpop.f32.mrb[0].mxu0
  %v348 = vadd.f32 0.0, %v347
  %v349 = vpop.f32.mrb[0].mxu0
  %v350 = vpop.f32.mrb[0].mxu0
  %v351 = vadd.f32 0.0, %v350
  %v352 = vpop.f32.mrb[0].mxu0
  %353 = vdwg.mxu0
  %v354 = vld [vmem:[%s3 + $0x80] sm:$0xf]
  %v355 = vld [vmem:[%s3 + $0x84] sm:$0xf]
  %v356 = vld [vmem:[%s3 + $0x88] sm:$0xf]
  %v357 = vld [vmem:[%s3 + $0x8c] sm:$0xf]
  %v358 = vld [vmem:[%s3 + $0x90] sm:$0xf]
  %v359 = vld [vmem:[%s3 + $0x94] sm:$0xf]
  %v360 = vld [vmem:[%s3 + $0x98] sm:$0xf]
  %v361 = vld [vmem:[%s3 + $0x9c] sm:$0xf]
  %v362 = vld [vmem:[%s3 + $0xa0] sm:$0xf]
  %v363 = vld [vmem:[%s3 + $0xa4] sm:$0xf]
  %v364 = vld [vmem:[%s3 + $0xa8] sm:$0xf]
  %v365 = vld [vmem:[%s3 + $0xac] sm:$0xf]
  %v366 = vld [vmem:[%s3 + $0xb0] sm:$0xf]
  %v367 = vld [vmem:[%s3 + $0xb4] sm:$0xf]
  %v368 = vld [vmem:[%s3 + $0xb8] sm:$0xf]
  %v369 = vld [vmem:[%s3 + $0xbc] sm:$0xf]
  %v386 = vunpack.c.l.b16 %v354
  %v387 = vunpack.c.l.b16 %v355
  %v388 = vunpack.c.l.b16 %v356
  %v389 = vunpack.c.l.b16 %v357
  %v390 = vunpack.c.l.b16 %v358
  %v391 = vunpack.c.l.b16 %v359
  %v392 = vunpack.c.l.b16 %v360
  %v393 = vunpack.c.l.b16 %v361
  %v394 = vunpack.c.l.b16 %v362
  %v395 = vunpack.c.l.b16 %v363
  %v396 = vunpack.c.l.b16 %v364
  %v397 = vunpack.c.l.b16 %v365
  %v398 = vunpack.c.l.b16 %v366
  %v399 = vunpack.c.l.b16 %v367
  %v400 = vunpack.c.l.b16 %v368
  %v401 = vunpack.c.l.b16 %v369
  %v402 = vpack.c.b16 %v387, %v386
  %v403 = vpack.c.b16 %v389, %v388
  %v404 = vpack.c.b16 %v391, %v390
  %v405 = vpack.c.b16 %v393, %v392
  %v406 = vpack.c.b16 %v395, %v394
  %v407 = vpack.c.b16 %v397, %v396
  %v408 = vpack.c.b16 %v399, %v398
  %v409 = vpack.c.b16 %v401, %v400
  %418 = vmatprep.subr.bf16.mxu0 0
  %419 = vmatpush1.bf16.msra.mxu0 %v402
  %420 = vmatprep.subr.bf16.mxu0 0
  %421 = vmatpush1.bf16.msra.mxu0 %v403
  %422 = vmatprep.subr.bf16.mxu0 0
  %423 = vmatpush1.bf16.msra.mxu0 %v404
  %424 = vmatprep.subr.bf16.mxu0 0
  %425 = vmatpush1.bf16.msra.mxu0 %v405
  %426 = vmatprep.subr.bf16.mxu0 0
  %427 = vmatpush1.bf16.msra.mxu0 %v406
  %428 = vmatprep.subr.bf16.mxu0 0
  %429 = vmatpush1.bf16.msra.mxu0 %v407
  %430 = vmatprep.subr.bf16.mxu0 0
  %431 = vmatpush1.bf16.msra.mxu0 %v408
  %432 = vmatprep.subr.bf16.mxu0 0
  %433 = vmatpush1.bf16.msra.mxu0 %v409
  %434 = vmatprep.subr.bf16.mxu0 0
  %435 = vmatpush1.bf16.msra.mxu0 0
  %436 = vmatprep.subr.bf16.mxu0 0
  %437 = vmatpush1.bf16.msra.mxu0 0
  %438 = vmatprep.subr.bf16.mxu0 0
  %439 = vmatpush1.bf16.msra.mxu0 0
  %440 = vmatprep.subr.bf16.mxu0 0
  %441 = vmatpush1.bf16.msra.mxu0 0
  %442 = vmatprep.subr.bf16.mxu0 0
  %443 = vmatpush1.bf16.msra.mxu0 0
  %444 = vmatprep.subr.bf16.mxu0 0
  %445 = vmatpush1.bf16.msra.mxu0 0
  %446 = vmatprep.subr.bf16.mxu0 0
  %447 = vmatpush1.bf16.msra.mxu0 0
  %448 = vmatprep.subr.bf16.mxu0 0
  %449 = vmatpush1.bf16.msra.mxu0 0
  %450 = vmatprep.mubr.bf16.mxu0 0
  %451 = vmatmul.mubr.bf16.gmra.mrb[0].mxu0 %v126
  %v452 = vpop.f32.mrb[0].mxu0
  %v453 = vadd.f32 0.0, %v452
  %v454 = vpop.f32.mrb[0].mxu0
  %v455 = vpop.f32.mrb[0].mxu0
  %v456 = vadd.f32 0.0, %v455
  %v457 = vpop.f32.mrb[0].mxu0
  %458 = vmatprep.mubr.bf16.mxu0 0
  %459 = vmatmul.mubr.bf16.gmra.mrb[0].mxu0 %v127
  %v460 = vpop.f32.mrb[0].mxu0
  %v461 = vadd.f32 0.0, %v460
  %v462 = vpop.f32.mrb[0].mxu0
  %v463 = vpop.f32.mrb[0].mxu0
  %v464 = vadd.f32 0.0, %v463
  %v465 = vpop.f32.mrb[0].mxu0
  %466 = vdwg.mxu0
  %vm467 = vcmask 261120
  %v469 = vsel %vm467, %v20, 0
  %v472 = vsel %vm467, %v21, 0
  %v475 = vsel %vm467, %v22, 0
  %v478 = vsel %vm467, %v23, 0
  %480 = vmatprep.subr.mxu0 0.0
  %481 = vmatpush1.msra.mxu0 %v227
  %482 = vmatprep.subr.mxu0 0.0
  %483 = vmatpush1.msra.mxu0 %v230
  %484 = vmatprep.subr.mxu0 0.0
  %485 = vmatpush1.msra.mxu0 %v235
  %486 = vmatprep.subr.mxu0 0.0
  %487 = vmatpush1.msra.mxu0 %v238
  %488 = vmatprep.subr.mxu0 0.0
  %489 = vmatpush1.msra.mxu0 0.0
  %490 = vmatprep.subr.mxu0 0.0
  %491 = vmatpush1.msra.mxu0 0.0
  %492 = vmatprep.subr.mxu0 0.0
  %493 = vmatpush1.msra.mxu0 0.0
  %494 = vmatprep.subr.mxu0 0.0
  %495 = vmatpush1.msra.mxu0 0.0
  %496 = vmatprep.subr.mxu0 0.0
  %497 = vmatpush1.msra.mxu0 0.0
  %498 = vmatprep.subr.mxu0 0.0
  %499 = vmatpush1.msra.mxu0 0.0
  %500 = vmatprep.subr.mxu0 0.0
  %501 = vmatpush1.msra.mxu0 0.0
  %502 = vmatprep.subr.mxu0 0.0
  %503 = vmatpush1.msra.mxu0 0.0
  %504 = vmatprep.subr.mxu0 0.0
  %505 = vmatpush1.msra.mxu0 0.0
  %506 = vmatprep.subr.mxu0 0.0
  %507 = vmatpush1.msra.mxu0 0.0
  %508 = vmatprep.subr.mxu0 0.0
  %509 = vmatpush1.msra.mxu0 0.0
  %510 = vmatprep.subr.mxu0 0.0
  %511 = vmatpush1.msra.mxu0 0.0
  %512 = vmatprep.subr.mxu0 0.0
  %513 = vmatpush1.msra.mxu0 0.0
  %514 = vmatprep.subr.mxu0 0.0
  %515 = vmatpush1.msra.mxu0 0.0
  %516 = vmatprep.subr.mxu0 0.0
  %517 = vmatpush1.msra.mxu0 0.0
  %518 = vmatprep.subr.mxu0 0.0
  %519 = vmatpush1.msra.mxu0 0.0
  %520 = vmatprep.subr.mxu0 0.0
  %521 = vmatpush1.msra.mxu0 0.0
  %522 = vmatprep.subr.mxu0 0.0
  %523 = vmatpush1.msra.mxu0 0.0
  %524 = vmatprep.subr.mxu0 0.0
  %525 = vmatpush1.msra.mxu0 0.0
  %526 = vmatprep.subr.mxu0 0.0
  %527 = vmatpush1.msra.mxu0 0.0
  %528 = vmatprep.subr.mxu0 0.0
  %529 = vmatpush1.msra.mxu0 0.0
  %530 = vmatprep.subr.mxu0 0.0
  %531 = vmatpush1.msra.mxu0 0.0
  %532 = vmatprep.subr.mxu0 0.0
  %533 = vmatpush1.msra.mxu0 0.0
  %534 = vmatprep.subr.mxu0 0.0
  %535 = vmatpush1.msra.mxu0 0.0
  %536 = vmatprep.subr.mxu0 0.0
  %537 = vmatpush1.msra.mxu0 0.0
  %538 = vmatprep.subr.mxu0 0.0
  %539 = vmatpush1.msra.mxu0 0.0
  %540 = vmatprep.subr.mxu0 0.0
  %541 = vmatpush1.msra.mxu0 0.0
  %542 = vmatprep.subr.mxu0 0.0
  %543 = vmatpush1.msra.mxu0 0.0
  %544 = vmatprep.mubr.f32.mxu0 0.0
  %545 = vmatmul.mubr.f32.gmra.mrb[0].mxu0 %v469
  %v546 = vpop.f32.mrb[0].mxu0
  %v547 = vadd.f32 %v340, %v546
  %v548 = vpop.f32.mrb[0].mxu0
  %549 = vmatprep.mubr.f32.mxu0 0.0
  %550 = vmatmul.mubr.f32.gmra.mrb[0].mxu0 %v472
  %v551 = vpop.f32.mrb[0].mxu0
  %v552 = vadd.f32 %v343, %v551
  %v553 = vpop.f32.mrb[0].mxu0
  %554 = vmatprep.mubr.f32.mxu0 0.0
  %555 = vmatmul.mubr.f32.gmra.mrb[0].mxu0 %v475
  %v556 = vpop.f32.mrb[0].mxu0
  %v557 = vadd.f32 %v348, %v556
  %v558 = vpop.f32.mrb[0].mxu0
  %559 = vmatprep.mubr.f32.mxu0 0.0
  %560 = vmatmul.mubr.f32.gmra.mrb[0].mxu0 %v478
  %v561 = vpop.f32.mrb[0].mxu0
  %v562 = vadd.f32 %v351, %v561
  %v563 = vpop.f32.mrb[0].mxu0
  %564 = vdwg.mxu0
  %v566 = vsel %vm467, %v24, 0
  %v569 = vsel %vm467, %v25, 0
  %v572 = vsel %vm467, %v26, 0
  %v575 = vsel %vm467, %v27, 0
  %577 = vmatprep.subr.mxu0 0.0
  %578 = vmatpush1.msra.mxu0 %v453
  %579 = vmatprep.subr.mxu0 0.0
  %580 = vmatpush1.msra.mxu0 %v456
  %581 = vmatprep.subr.mxu0 0.0
  %582 = vmatpush1.msra.mxu0 %v461
  %583 = vmatprep.subr.mxu0 0.0
  %584 = vmatpush1.msra.mxu0 %v464
  %585 = vmatprep.subr.mxu0 0.0
  %586 = vmatpush1.msra.mxu0 0.0
  %587 = vmatprep.subr.mxu0 0.0
  %588 = vmatpush1.msra.mxu0 0.0
  %589 = vmatprep.subr.mxu0 0.0
  %590 = vmatpush1.msra.mxu0 0.0
  %591 = vmatprep.subr.mxu0 0.0
  %592 = vmatpush1.msra.mxu0 0.0
  %593 = vmatprep.subr.mxu0 0.0
  %594 = vmatpush1.msra.mxu0 0.0
  %595 = vmatprep.subr.mxu0 0.0
  %596 = vmatpush1.msra.mxu0 0.0
  %597 = vmatprep.subr.mxu0 0.0
  %598 = vmatpush1.msra.mxu0 0.0
  %599 = vmatprep.subr.mxu0 0.0
  %600 = vmatpush1.msra.mxu0 0.0
  %601 = vmatprep.subr.mxu0 0.0
  %602 = vmatpush1.msra.mxu0 0.0
  %603 = vmatprep.subr.mxu0 0.0
  %604 = vmatpush1.msra.mxu0 0.0
  %605 = vmatprep.subr.mxu0 0.0
  %606 = vmatpush1.msra.mxu0 0.0
  %607 = vmatprep.subr.mxu0 0.0
  %608 = vmatpush1.msra.mxu0 0.0
  %609 = vmatprep.subr.mxu0 0.0
  %610 = vmatpush1.msra.mxu0 0.0
  %611 = vmatprep.subr.mxu0 0.0
  %612 = vmatpush1.msra.mxu0 0.0
  %613 = vmatprep.subr.mxu0 0.0
  %614 = vmatpush1.msra.mxu0 0.0
  %615 = vmatprep.subr.mxu0 0.0
  %616 = vmatpush1.msra.mxu0 0.0
  %617 = vmatprep.subr.mxu0 0.0
  %618 = vmatpush1.msra.mxu0 0.0
  %619 = vmatprep.subr.mxu0 0.0
  %620 = vmatpush1.msra.mxu0 0.0
  %621 = vmatprep.subr.mxu0 0.0
  %622 = vmatpush1.msra.mxu0 0.0
  %623 = vmatprep.subr.mxu0 0.0
  %624 = vmatpush1.msra.mxu0 0.0
  %625 = vmatprep.subr.mxu0 0.0
  %626 = vmatpush1.msra.mxu0 0.0
  %627 = vmatprep.subr.mxu0 0.0
  %628 = vmatpush1.msra.mxu0 0.0
  %629 = vmatprep.subr.mxu0 0.0
  %630 = vmatpush1.msra.mxu0 0.0
  %631 = vmatprep.subr.mxu0 0.0
  %632 = vmatpush1.msra.mxu0 0.0
  %633 = vmatprep.subr.mxu0 0.0
  %634 = vmatpush1.msra.mxu0 0.0
  %635 = vmatprep.subr.mxu0 0.0
  %636 = vmatpush1.msra.mxu0 0.0
  %637 = vmatprep.subr.mxu0 0.0
  %638 = vmatpush1.msra.mxu0 0.0
  %639 = vmatprep.subr.mxu0 0.0
  %640 = vmatpush1.msra.mxu0 0.0
  %641 = vmatprep.mubr.f32.mxu0 0.0
  %642 = vmatmul.mubr.f32.gmra.mrb[0].mxu0 %v566
  %v643 = vpop.f32.mrb[0].mxu0
  %v644 = vadd.f32 0.0, %v643
  %v645 = vpop.f32.mrb[0].mxu0
  %646 = vmatprep.mubr.f32.mxu0 0.0
  %647 = vmatmul.mubr.f32.gmra.mrb[0].mxu0 %v569
  %v648 = vpop.f32.mrb[0].mxu0
  %v649 = vadd.f32 0.0, %v648
  %v650 = vpop.f32.mrb[0].mxu0
  %651 = vmatprep.mubr.f32.mxu0 0.0
  %652 = vmatmul.mubr.f32.gmra.mrb[0].mxu0 %v572
  %v653 = vpop.f32.mrb[0].mxu0
  %v654 = vadd.f32 0.0, %v653
  %v655 = vpop.f32.mrb[0].mxu0
  %656 = vmatprep.mubr.f32.mxu0 0.0
  %657 = vmatmul.mubr.f32.gmra.mrb[0].mxu0 %v575
  %v658 = vpop.f32.mrb[0].mxu0
  %v659 = vadd.f32 0.0, %v658
  %v660 = vpop.f32.mrb[0].mxu0
  %661 = vdwg.mxu0
  %v662 = vadd.f32 %v547, %v644
  %v663 = vadd.f32 %v552, %v649
  %v664 = vadd.f32 %v557, %v654
  %v665 = vadd.f32 %v562, %v659
  %v666 = vadd.f32 %v662, %v663
  %v667 = vadd.f32 %v666, %v664
  %v668 = vadd.f32 %v667, %v665
  %v669 = vrot.slane %v668, 4
  %v670 = vadd.f32 %v668, %v669
  %v671 = vrot.slane %v670, 2
  %v672 = vadd.f32 %v670, %v671
  %v673 = vrot.slane %v672, 1
  %v674 = vadd.f32 %v672, %v673
  %v675 = vmul.f32 %v662, %v662
  %v676 = vmul.f32 %v663, %v663
  %v677 = vmul.f32 %v664, %v664
  %v678 = vmul.f32 %v665, %v665
  %v679 = vadd.f32 %v675, %v676
  %v680 = vadd.f32 %v679, %v677
  %v681 = vadd.f32 %v680, %v678
  %v682 = vrot.slane %v681, 4
  %v683 = vadd.f32 %v681, %v682
  %v684 = vrot.slane %v683, 2
  %v685 = vadd.f32 %v683, %v684
  %v686 = vrot.slane %v685, 1
  %v687 = vadd.f32 %v685, %v686
  %688 = vrot.lane.b32.xlu0 %v674, 8
  %v689 = vpop.permute.xlu0 %688
  %v690 = vadd.f32 %v674, %v689
  %691 = vrot.lane.b32.xlu0 %v687, 8
  %v692 = vpop.permute.xlu0 %691
  %v693 = vadd.f32 %v687, %v692
  %694 = vrot.lane.b32.xlu0 %v690, 16
  %v695 = vpop.permute.xlu0 %694
  %v696 = vadd.f32 %v690, %v695
  %697 = vrot.lane.b32.xlu0 %v693, 16
  %v698 = vpop.permute.xlu0 %697
  %v699 = vadd.f32 %v693, %v698
  %700 = vrot.lane.b32.xlu0 %v696, 32
  %v701 = vpop.permute.xlu0 %700
  %v702 = vadd.f32 %v696, %v701
  %703 = vrot.lane.b32.xlu0 %v699, 32
  %v704 = vpop.permute.xlu0 %703
  %v705 = vadd.f32 %v699, %v704
  %706 = vrot.lane.b32.xlu0 %v702, 64
  %v707 = vpop.permute.xlu0 %706
  %v708 = vadd.f32 %v702, %v707
  %709 = vrot.lane.b32.xlu0 %v705, 64
  %v710 = vpop.permute.xlu0 %709
  %v711 = vadd.f32 %v705, %v710
  %v712 = vmul.f32 %v708, 0.001953125
  %v713 = vmul.f32 %v711, 0.001953125
  %v714 = vmul.f32 %v712, %v712
  %v715 = vsub.f32 %v713, %v714
  %v716 = vadd.f32 %v715, 0.0001
  %v717 = vrsqrt.pop %v716
  %v719 = vrot.slane %v18, 2
  %v721 = vmul.f32 %v717, %v719
  %v722 = vmul.f32 %v712, %v721
  %v724 = vrot.slane %v722, 5
  %v726 = vsub.f32 %v18, %v724
  %v727 = vlaneseq
  %v728 = vshrl.u32 %v727, 7
  %v729 = vsub.s32 0, %v728
  %v730 = vrot.slane %v721, %v729
  %v731 = vmul.f32 %v662, %v730
  %v732 = vmul.f32 %v663, %v730
  %v733 = vmul.f32 %v664, %v730
  %v734 = vmul.f32 %v665, %v730
  %v735 = vlaneseq
  %v736 = vshrl.u32 %v735, 7
  %v737 = vsub.s32 3, %v736
  %v738 = vrot.slane %v726, %v737
  %v739 = vadd.f32 %v731, %v738
  %v740 = vadd.f32 %v732, %v738
  %v741 = vadd.f32 %v733, %v738
  %v742 = vadd.f32 %v734, %v738
  %v743 = vmax.f32 %v739, 0.0
  %v744 = vmax.f32 %v740, 0.0
  %v745 = vmax.f32 %v741, 0.0
  %v746 = vmax.f32 %v742, 0.0
  %v747 = vpack.c.bf16 %v744, %v743
  %v748 = vpack.c.bf16 %v746, %v745
  %v749 = vld [vmem:[%s3 + $0xc0] sm:$0xf]
  %v750 = vld [vmem:[%s3 + $0xc4] sm:$0xf]
  %v751 = vld [vmem:[%s3 + $0xc8] sm:$0xf]
  %v752 = vld [vmem:[%s3 + $0xcc] sm:$0xf]
  %v753 = vld [vmem:[%s3 + $0xd0] sm:$0xf]
  %v754 = vld [vmem:[%s3 + $0xd4] sm:$0xf]
  %v755 = vld [vmem:[%s3 + $0xd8] sm:$0xf]
  %v756 = vld [vmem:[%s3 + $0xdc] sm:$0xf]
  %v757 = vld [vmem:[%s3 + $0xe0] sm:$0xf]
  %v758 = vld [vmem:[%s3 + $0xe4] sm:$0xf]
  %v759 = vld [vmem:[%s3 + $0xe8] sm:$0xf]
  %v760 = vld [vmem:[%s3 + $0xec] sm:$0xf]
  %v761 = vld [vmem:[%s3 + $0xf0] sm:$0xf]
  %v762 = vld [vmem:[%s3 + $0xf4] sm:$0xf]
  %v763 = vld [vmem:[%s3 + $0xf8] sm:$0xf]
  %v764 = vld [vmem:[%s3 + $0xfc] sm:$0xf]
  %v781 = vunpack.c.l.b16 %v749
  %v782 = vunpack.c.l.b16 %v750
  %v783 = vunpack.c.l.b16 %v751
  %v784 = vunpack.c.l.b16 %v752
  %v785 = vunpack.c.l.b16 %v753
  %v786 = vunpack.c.l.b16 %v754
  %v787 = vunpack.c.l.b16 %v755
  %v788 = vunpack.c.l.b16 %v756
  %v789 = vunpack.c.l.b16 %v757
  %v790 = vunpack.c.l.b16 %v758
  %v791 = vunpack.c.l.b16 %v759
  %v792 = vunpack.c.l.b16 %v760
  %v793 = vunpack.c.l.b16 %v761
  %v794 = vunpack.c.l.b16 %v762
  %v795 = vunpack.c.l.b16 %v763
  %v796 = vunpack.c.l.b16 %v764
  %v797 = vpack.c.b16 %v782, %v781
  %v798 = vpack.c.b16 %v784, %v783
  %v799 = vpack.c.b16 %v786, %v785
  %v800 = vpack.c.b16 %v788, %v787
  %v801 = vpack.c.b16 %v790, %v789
  %v802 = vpack.c.b16 %v792, %v791
  %v803 = vpack.c.b16 %v794, %v793
  %v804 = vpack.c.b16 %v796, %v795
  %813 = vmatprep.subr.bf16.mxu0 0
  %814 = vmatpush1.bf16.msra.mxu0 %v797
  %815 = vmatprep.subr.bf16.mxu0 0
  %816 = vmatpush1.bf16.msra.mxu0 %v798
  %817 = vmatprep.subr.bf16.mxu0 0
  %818 = vmatpush1.bf16.msra.mxu0 %v799
  %819 = vmatprep.subr.bf16.mxu0 0
  %820 = vmatpush1.bf16.msra.mxu0 %v800
  %821 = vmatprep.subr.bf16.mxu0 0
  %822 = vmatpush1.bf16.msra.mxu0 %v801
  %823 = vmatprep.subr.bf16.mxu0 0
  %824 = vmatpush1.bf16.msra.mxu0 %v802
  %825 = vmatprep.subr.bf16.mxu0 0
  %826 = vmatpush1.bf16.msra.mxu0 %v803
  %827 = vmatprep.subr.bf16.mxu0 0
  %828 = vmatpush1.bf16.msra.mxu0 %v804
  %829 = vmatprep.subr.bf16.mxu0 0
  %830 = vmatpush1.bf16.msra.mxu0 0
  %831 = vmatprep.subr.bf16.mxu0 0
  %832 = vmatpush1.bf16.msra.mxu0 0
  %833 = vmatprep.subr.bf16.mxu0 0
  %834 = vmatpush1.bf16.msra.mxu0 0
  %835 = vmatprep.subr.bf16.mxu0 0
  %836 = vmatpush1.bf16.msra.mxu0 0
  %837 = vmatprep.subr.bf16.mxu0 0
  %838 = vmatpush1.bf16.msra.mxu0 0
  %839 = vmatprep.subr.bf16.mxu0 0
  %840 = vmatpush1.bf16.msra.mxu0 0
  %841 = vmatprep.subr.bf16.mxu0 0
  %842 = vmatpush1.bf16.msra.mxu0 0
  %843 = vmatprep.subr.bf16.mxu0 0
  %844 = vmatpush1.bf16.msra.mxu0 0
  %845 = vmatprep.mubr.bf16.mxu0 0
  %846 = vmatmul.mubr.bf16.gmra.mrb[0].mxu0 %v747
  %v847 = vpop.f32.mrb[0].mxu0
  %v848 = vadd.f32 0.0, %v847
  %v849 = vpop.f32.mrb[0].mxu0
  %v850 = vpop.f32.mrb[0].mxu0
  %v851 = vadd.f32 0.0, %v850
  %v852 = vpop.f32.mrb[0].mxu0
  %853 = vmatprep.mubr.bf16.mxu0 0
  %854 = vmatmul.mubr.bf16.gmra.mrb[0].mxu0 %v748
  %v855 = vpop.f32.mrb[0].mxu0
  %v856 = vadd.f32 0.0, %v855
  %v857 = vpop.f32.mrb[0].mxu0
  %v858 = vpop.f32.mrb[0].mxu0
  %v859 = vadd.f32 0.0, %v858
  %v860 = vpop.f32.mrb[0].mxu0
  %861 = vdwg.mxu0
  %v862 = vld [vmem:[%s3 + $0x100] sm:$0xf]
  %v863 = vld [vmem:[%s3 + $0x104] sm:$0xf]
  %v864 = vld [vmem:[%s3 + $0x108] sm:$0xf]
  %v865 = vld [vmem:[%s3 + $0x10c] sm:$0xf]
  %v866 = vld [vmem:[%s3 + $0x110] sm:$0xf]
  %v867 = vld [vmem:[%s3 + $0x114] sm:$0xf]
  %v868 = vld [vmem:[%s3 + $0x118] sm:$0xf]
  %v869 = vld [vmem:[%s3 + $0x11c] sm:$0xf]
  %v870 = vld [vmem:[%s3 + $0x120] sm:$0xf]
  %v871 = vld [vmem:[%s3 + $0x124] sm:$0xf]
  %v872 = vld [vmem:[%s3 + $0x128] sm:$0xf]
  %v873 = vld [vmem:[%s3 + $0x12c] sm:$0xf]
  %v874 = vld [vmem:[%s3 + $0x130] sm:$0xf]
  %v875 = vld [vmem:[%s3 + $0x134] sm:$0xf]
  %v876 = vld [vmem:[%s3 + $0x138] sm:$0xf]
  %v877 = vld [vmem:[%s3 + $0x13c] sm:$0xf]
  %v894 = vunpack.c.l.b16 %v862
  %v895 = vunpack.c.l.b16 %v863
  %v896 = vunpack.c.l.b16 %v864
  %v897 = vunpack.c.l.b16 %v865
  %v898 = vunpack.c.l.b16 %v866
  %v899 = vunpack.c.l.b16 %v867
  %v900 = vunpack.c.l.b16 %v868
  %v901 = vunpack.c.l.b16 %v869
  %v902 = vunpack.c.l.b16 %v870
  %v903 = vunpack.c.l.b16 %v871
  %v904 = vunpack.c.l.b16 %v872
  %v905 = vunpack.c.l.b16 %v873
  %v906 = vunpack.c.l.b16 %v874
  %v907 = vunpack.c.l.b16 %v875
  %v908 = vunpack.c.l.b16 %v876
  %v909 = vunpack.c.l.b16 %v877
  %v910 = vpack.c.b16 %v895, %v894
  %v911 = vpack.c.b16 %v897, %v896
  %v912 = vpack.c.b16 %v899, %v898
  %v913 = vpack.c.b16 %v901, %v900
  %v914 = vpack.c.b16 %v903, %v902
  %v915 = vpack.c.b16 %v905, %v904
  %v916 = vpack.c.b16 %v907, %v906
  %v917 = vpack.c.b16 %v909, %v908
  %926 = vmatprep.subr.bf16.mxu0 0
  %927 = vmatpush1.bf16.msra.mxu0 %v910
  %928 = vmatprep.subr.bf16.mxu0 0
  %929 = vmatpush1.bf16.msra.mxu0 %v911
  %930 = vmatprep.subr.bf16.mxu0 0
  %931 = vmatpush1.bf16.msra.mxu0 %v912
  %932 = vmatprep.subr.bf16.mxu0 0
  %933 = vmatpush1.bf16.msra.mxu0 %v913
  %934 = vmatprep.subr.bf16.mxu0 0
  %935 = vmatpush1.bf16.msra.mxu0 %v914
  %936 = vmatprep.subr.bf16.mxu0 0
  %937 = vmatpush1.bf16.msra.mxu0 %v915
  %938 = vmatprep.subr.bf16.mxu0 0
  %939 = vmatpush1.bf16.msra.mxu0 %v916
  %940 = vmatprep.subr.bf16.mxu0 0
  %941 = vmatpush1.bf16.msra.mxu0 %v917
  %942 = vmatprep.subr.bf16.mxu0 0
  %943 = vmatpush1.bf16.msra.mxu0 0
  %944 = vmatprep.subr.bf16.mxu0 0
  %945 = vmatpush1.bf16.msra.mxu0 0
  %946 = vmatprep.subr.bf16.mxu0 0
  %947 = vmatpush1.bf16.msra.mxu0 0
  %948 = vmatprep.subr.bf16.mxu0 0
  %949 = vmatpush1.bf16.msra.mxu0 0
  %950 = vmatprep.subr.bf16.mxu0 0
  %951 = vmatpush1.bf16.msra.mxu0 0
  %952 = vmatprep.subr.bf16.mxu0 0
  %953 = vmatpush1.bf16.msra.mxu0 0
  %954 = vmatprep.subr.bf16.mxu0 0
  %955 = vmatpush1.bf16.msra.mxu0 0
  %956 = vmatprep.subr.bf16.mxu0 0
  %957 = vmatpush1.bf16.msra.mxu0 0
  %958 = vmatprep.mubr.bf16.mxu0 0
  %959 = vmatmul.mubr.bf16.gmra.mrb[0].mxu0 %v747
  %v960 = vpop.f32.mrb[0].mxu0
  %v961 = vadd.f32 0.0, %v960
  %v962 = vpop.f32.mrb[0].mxu0
  %v963 = vpop.f32.mrb[0].mxu0
  %v964 = vadd.f32 0.0, %v963
  %v965 = vpop.f32.mrb[0].mxu0
  %966 = vmatprep.mubr.bf16.mxu0 0
  %967 = vmatmul.mubr.bf16.gmra.mrb[0].mxu0 %v748
  %v968 = vpop.f32.mrb[0].mxu0
  %v969 = vadd.f32 0.0, %v968
  %v970 = vpop.f32.mrb[0].mxu0
  %v971 = vpop.f32.mrb[0].mxu0
  %v972 = vadd.f32 0.0, %v971
  %v973 = vpop.f32.mrb[0].mxu0
  %974 = vdwg.mxu0
  %v976 = vsel %vm467, %v30, 0
  %v979 = vsel %vm467, %v31, 0
  %981 = vmatprep.subr.mxu0 0.0
  %982 = vmatpush1.msra.mxu0 %v961
  %983 = vmatprep.subr.mxu0 0.0
  %984 = vmatpush1.msra.mxu0 %v964
  %985 = vmatprep.subr.mxu0 0.0
  %986 = vmatpush1.msra.mxu0 %v969
  %987 = vmatprep.subr.mxu0 0.0
  %988 = vmatpush1.msra.mxu0 %v972
  %989 = vmatprep.subr.mxu0 0.0
  %990 = vmatpush1.msra.mxu0 0.0
  %991 = vmatprep.subr.mxu0 0.0
  %992 = vmatpush1.msra.mxu0 0.0
  %993 = vmatprep.subr.mxu0 0.0
  %994 = vmatpush1.msra.mxu0 0.0
  %995 = vmatprep.subr.mxu0 0.0
  %996 = vmatpush1.msra.mxu0 0.0
  %997 = vmatprep.subr.mxu0 0.0
  %998 = vmatpush1.msra.mxu0 0.0
  %999 = vmatprep.subr.mxu0 0.0
  %1000 = vmatpush1.msra.mxu0 0.0
  %1001 = vmatprep.subr.mxu0 0.0
  %1002 = vmatpush1.msra.mxu0 0.0
  %1003 = vmatprep.subr.mxu0 0.0
  %1004 = vmatpush1.msra.mxu0 0.0
  %1005 = vmatprep.subr.mxu0 0.0
  %1006 = vmatpush1.msra.mxu0 0.0
  %1007 = vmatprep.subr.mxu0 0.0
  %1008 = vmatpush1.msra.mxu0 0.0
  %1009 = vmatprep.subr.mxu0 0.0
  %1010 = vmatpush1.msra.mxu0 0.0
  %1011 = vmatprep.subr.mxu0 0.0
  %1012 = vmatpush1.msra.mxu0 0.0
  %1013 = vmatprep.subr.mxu0 0.0
  %1014 = vmatpush1.msra.mxu0 0.0
  %1015 = vmatprep.subr.mxu0 0.0
  %1016 = vmatpush1.msra.mxu0 0.0
  %1017 = vmatprep.subr.mxu0 0.0
  %1018 = vmatpush1.msra.mxu0 0.0
  %1019 = vmatprep.subr.mxu0 0.0
  %1020 = vmatpush1.msra.mxu0 0.0
  %1021 = vmatprep.subr.mxu0 0.0
  %1022 = vmatpush1.msra.mxu0 0.0
  %1023 = vmatprep.subr.mxu0 0.0
  %1024 = vmatpush1.msra.mxu0 0.0
  %1025 = vmatprep.subr.mxu0 0.0
  %1026 = vmatpush1.msra.mxu0 0.0
  %1027 = vmatprep.subr.mxu0 0.0
  %1028 = vmatpush1.msra.mxu0 0.0
  %1029 = vmatprep.subr.mxu0 0.0
  %1030 = vmatpush1.msra.mxu0 0.0
  %1031 = vmatprep.subr.mxu0 0.0
  %1032 = vmatpush1.msra.mxu0 0.0
  %1033 = vmatprep.subr.mxu0 0.0
  %1034 = vmatpush1.msra.mxu0 0.0
  %1035 = vmatprep.subr.mxu0 0.0
  %1036 = vmatpush1.msra.mxu0 0.0
  %1037 = vmatprep.subr.mxu0 0.0
  %1038 = vmatpush1.msra.mxu0 0.0
  %1039 = vmatprep.subr.mxu0 0.0
  %1040 = vmatpush1.msra.mxu0 0.0
  %1041 = vmatprep.subr.mxu0 0.0
  %1042 = vmatpush1.msra.mxu0 0.0
  %1043 = vmatprep.subr.mxu0 0.0
  %1044 = vmatpush1.msra.mxu0 0.0
  %1045 = vmatprep.mubr.f32.mxu0 0.0
  %1046 = vmatmul.mubr.f32.gmra.mrb[0].mxu0 %v976
  %v1047 = vpop.f32.mrb[0].mxu0
  %v1048 = vadd.f32 0.0, %v1047
  %v1049 = vpop.f32.mrb[0].mxu0
  %1050 = vmatprep.mubr.f32.mxu0 0.0
  %1051 = vmatmul.mubr.f32.gmra.mrb[0].mxu0 %v979
  %v1052 = vpop.f32.mrb[0].mxu0
  %v1053 = vadd.f32 0.0, %v1052
  %v1054 = vpop.f32.mrb[0].mxu0
  %1055 = vdwg.mxu0
  %v1057 = vsel %vm467, %v28, 0
  %v1060 = vsel %vm467, %v29, 0
  %1062 = vmatprep.subr.mxu0 0.0
  %1063 = vmatpush1.msra.mxu0 %v848
  %1064 = vmatprep.subr.mxu0 0.0
  %1065 = vmatpush1.msra.mxu0 %v851
  %1066 = vmatprep.subr.mxu0 0.0
  %1067 = vmatpush1.msra.mxu0 %v856
  %1068 = vmatprep.subr.mxu0 0.0
  %1069 = vmatpush1.msra.mxu0 %v859
  %1070 = vmatprep.subr.mxu0 0.0
  %1071 = vmatpush1.msra.mxu0 0.0
  %1072 = vmatprep.subr.mxu0 0.0
  %1073 = vmatpush1.msra.mxu0 0.0
  %1074 = vmatprep.subr.mxu0 0.0
  %1075 = vmatpush1.msra.mxu0 0.0
  %1076 = vmatprep.subr.mxu0 0.0
  %1077 = vmatpush1.msra.mxu0 0.0
  %1078 = vmatprep.subr.mxu0 0.0
  %1079 = vmatpush1.msra.mxu0 0.0
  %1080 = vmatprep.subr.mxu0 0.0
  %1081 = vmatpush1.msra.mxu0 0.0
  %1082 = vmatprep.subr.mxu0 0.0
  %1083 = vmatpush1.msra.mxu0 0.0
  %1084 = vmatprep.subr.mxu0 0.0
  %1085 = vmatpush1.msra.mxu0 0.0
  %1086 = vmatprep.subr.mxu0 0.0
  %1087 = vmatpush1.msra.mxu0 0.0
  %1088 = vmatprep.subr.mxu0 0.0
  %1089 = vmatpush1.msra.mxu0 0.0
  %1090 = vmatprep.subr.mxu0 0.0
  %1091 = vmatpush1.msra.mxu0 0.0
  %1092 = vmatprep.subr.mxu0 0.0
  %1093 = vmatpush1.msra.mxu0 0.0
  %1094 = vmatprep.subr.mxu0 0.0
  %1095 = vmatpush1.msra.mxu0 0.0
  %1096 = vmatprep.subr.mxu0 0.0
  %1097 = vmatpush1.msra.mxu0 0.0
  %1098 = vmatprep.subr.mxu0 0.0
  %1099 = vmatpush1.msra.mxu0 0.0
  %1100 = vmatprep.subr.mxu0 0.0
  %1101 = vmatpush1.msra.mxu0 0.0
  %1102 = vmatprep.subr.mxu0 0.0
  %1103 = vmatpush1.msra.mxu0 0.0
  %1104 = vmatprep.subr.mxu0 0.0
  %1105 = vmatpush1.msra.mxu0 0.0
  %1106 = vmatprep.subr.mxu0 0.0
  %1107 = vmatpush1.msra.mxu0 0.0
  %1108 = vmatprep.subr.mxu0 0.0
  %1109 = vmatpush1.msra.mxu0 0.0
  %1110 = vmatprep.subr.mxu0 0.0
  %1111 = vmatpush1.msra.mxu0 0.0
  %1112 = vmatprep.subr.mxu0 0.0
  %1113 = vmatpush1.msra.mxu0 0.0
  %1114 = vmatprep.subr.mxu0 0.0
  %1115 = vmatpush1.msra.mxu0 0.0
  %1116 = vmatprep.subr.mxu0 0.0
  %1117 = vmatpush1.msra.mxu0 0.0
  %1118 = vmatprep.subr.mxu0 0.0
  %1119 = vmatpush1.msra.mxu0 0.0
  %1120 = vmatprep.subr.mxu0 0.0
  %1121 = vmatpush1.msra.mxu0 0.0
  %1122 = vmatprep.subr.mxu0 0.0
  %1123 = vmatpush1.msra.mxu0 0.0
  %1124 = vmatprep.subr.mxu0 0.0
  %1125 = vmatpush1.msra.mxu0 0.0
  %1126 = vmatprep.mubr.f32.mxu0 0.0
  %1127 = vmatmul.mubr.f32.gmra.mrb[0].mxu0 %v1057
  %v1128 = vpop.f32.mrb[0].mxu0
  %v1129 = vadd.f32 %v1048, %v1128
  %v1130 = vpop.f32.mrb[0].mxu0
  %1131 = vmatprep.mubr.f32.mxu0 0.0
  %1132 = vmatmul.mubr.f32.gmra.mrb[0].mxu0 %v1060
  %v1133 = vpop.f32.mrb[0].mxu0
  %v1134 = vadd.f32 %v1053, %v1133
  %v1135 = vpop.f32.mrb[0].mxu0
  %1136 = vdwg.mxu0
  %v1137 = vadd.f32 %v1129, %v1134
  %v1138 = vrot.slane %v1137, 4
  %v1139 = vadd.f32 %v1137, %v1138
  %v1140 = vrot.slane %v1139, 2
  %v1141 = vadd.f32 %v1139, %v1140
  %v1142 = vrot.slane %v1141, 1
  %v1143 = vadd.f32 %v1141, %v1142
  %v1144 = vmul.f32 %v1129, %v1129
  %v1145 = vmul.f32 %v1134, %v1134
  %v1146 = vadd.f32 %v1144, %v1145
  %v1147 = vrot.slane %v1146, 4
  %v1148 = vadd.f32 %v1146, %v1147
  %v1149 = vrot.slane %v1148, 2
  %v1150 = vadd.f32 %v1148, %v1149
  %v1151 = vrot.slane %v1150, 1
  %v1152 = vadd.f32 %v1150, %v1151
  %1153 = vrot.lane.b32.xlu0 %v1143, 16
  %v1154 = vpop.permute.xlu0 %1153
  %v1155 = vadd.f32 %v1143, %v1154
  %1156 = vrot.lane.b32.xlu0 %v1152, 16
  %v1157 = vpop.permute.xlu0 %1156
  %v1158 = vadd.f32 %v1152, %v1157
  %1159 = vrot.lane.b32.xlu0 %v1155, 32
  %v1160 = vpop.permute.xlu0 %1159
  %v1161 = vadd.f32 %v1155, %v1160
  %1162 = vrot.lane.b32.xlu0 %v1158, 32
  %v1163 = vpop.permute.xlu0 %1162
  %v1164 = vadd.f32 %v1158, %v1163
  %1165 = vrot.lane.b32.xlu0 %v1161, 64
  %v1166 = vpop.permute.xlu0 %1165
  %v1167 = vadd.f32 %v1161, %v1166
  %1168 = vrot.lane.b32.xlu0 %v1164, 64
  %v1169 = vpop.permute.xlu0 %1168
  %v1170 = vadd.f32 %v1164, %v1169
  %v1171 = vmul.f32 %v1167, 0.0078125
  %v1172 = vmul.f32 %v1170, 0.0078125
  %v1173 = vmul.f32 %v1171, %v1171
  %v1174 = vsub.f32 %v1172, %v1173
  %v1175 = vadd.f32 %v1174, 0.0001
  %v1176 = vrsqrt.pop %v1175
  %v1177 = vrot.slane %v18, 4
  %v1179 = vmul.f32 %v1176, %v1177
  %v1180 = vmul.f32 %v1171, %v1179
  %v1182 = vrot.slane %v1180, 3
  %v1184 = vsub.f32 %v18, %v1182
  %v1185 = vlaneseq
  %v1186 = vshrl.u32 %v1185, 7
  %v1187 = vsub.s32 0, %v1186
  %v1188 = vrot.slane %v1179, %v1187
  %v1189 = vmul.f32 %v1129, %v1188
  %v1190 = vmul.f32 %v1134, %v1188
  %v1191 = vlaneseq
  %v1192 = vshrl.u32 %v1191, 7
  %v1193 = vsub.s32 5, %v1192
  %v1194 = vrot.slane %v1184, %v1193
  %v1195 = vadd.f32 %v1189, %v1194
  %v1196 = vadd.f32 %v1190, %v1194
  %v1197 = vmax.f32 %v1195, 0.0
  %v1198 = vmax.f32 %v1196, 0.0
  %v1199 = vpack.c.bf16 %v1198, %v1197
  %v1200 = vld [vmem:[%s3 + $0x140] sm:$0xf]
  %v1201 = vld [vmem:[%s3 + $0x144] sm:$0xf]
  %v1202 = vld [vmem:[%s3 + $0x148] sm:$0xf]
  %v1203 = vld [vmem:[%s3 + $0x14c] sm:$0xf]
  %v1204 = vld [vmem:[%s3 + $0x150] sm:$0xf]
  %v1205 = vld [vmem:[%s3 + $0x154] sm:$0xf]
  %v1206 = vld [vmem:[%s3 + $0x158] sm:$0xf]
  %v1207 = vld [vmem:[%s3 + $0x15c] sm:$0xf]
  %v1208 = vld [vmem:[%s3 + $0x160] sm:$0xf]
  %v1209 = vld [vmem:[%s3 + $0x164] sm:$0xf]
  %v1210 = vld [vmem:[%s3 + $0x168] sm:$0xf]
  %v1211 = vld [vmem:[%s3 + $0x16c] sm:$0xf]
  %v1212 = vld [vmem:[%s3 + $0x170] sm:$0xf]
  %v1213 = vld [vmem:[%s3 + $0x174] sm:$0xf]
  %v1214 = vld [vmem:[%s3 + $0x178] sm:$0xf]
  %v1215 = vld [vmem:[%s3 + $0x17c] sm:$0xf]
  %v1232 = vunpack.c.l.b16 %v1200
  %v1233 = vunpack.c.l.b16 %v1201
  %v1234 = vunpack.c.l.b16 %v1202
  %v1235 = vunpack.c.l.b16 %v1203
  %v1236 = vunpack.c.l.b16 %v1204
  %v1237 = vunpack.c.l.b16 %v1205
  %v1238 = vunpack.c.l.b16 %v1206
  %v1239 = vunpack.c.l.b16 %v1207
  %v1240 = vunpack.c.l.b16 %v1208
  %v1241 = vunpack.c.l.b16 %v1209
  %v1242 = vunpack.c.l.b16 %v1210
  %v1243 = vunpack.c.l.b16 %v1211
  %v1244 = vunpack.c.l.b16 %v1212
  %v1245 = vunpack.c.l.b16 %v1213
  %v1246 = vunpack.c.l.b16 %v1214
  %v1247 = vunpack.c.l.b16 %v1215
  %v1248 = vpack.c.b16 %v1233, %v1232
  %v1249 = vpack.c.b16 %v1235, %v1234
  %v1250 = vpack.c.b16 %v1237, %v1236
  %v1251 = vpack.c.b16 %v1239, %v1238
  %v1252 = vpack.c.b16 %v1241, %v1240
  %v1253 = vpack.c.b16 %v1243, %v1242
  %v1254 = vpack.c.b16 %v1245, %v1244
  %v1255 = vpack.c.b16 %v1247, %v1246
  %1264 = vmatprep.subr.bf16.mxu0 0
  %1265 = vmatpush1.bf16.msra.mxu0 %v1248
  %1266 = vmatprep.subr.bf16.mxu0 0
  %1267 = vmatpush1.bf16.msra.mxu0 %v1249
  %1268 = vmatprep.subr.bf16.mxu0 0
  %1269 = vmatpush1.bf16.msra.mxu0 %v1250
  %1270 = vmatprep.subr.bf16.mxu0 0
  %1271 = vmatpush1.bf16.msra.mxu0 %v1251
  %1272 = vmatprep.subr.bf16.mxu0 0
  %1273 = vmatpush1.bf16.msra.mxu0 %v1252
  %1274 = vmatprep.subr.bf16.mxu0 0
  %1275 = vmatpush1.bf16.msra.mxu0 %v1253
  %1276 = vmatprep.subr.bf16.mxu0 0
  %1277 = vmatpush1.bf16.msra.mxu0 %v1254
  %1278 = vmatprep.subr.bf16.mxu0 0
  %1279 = vmatpush1.bf16.msra.mxu0 %v1255
  %1280 = vmatprep.subr.bf16.mxu0 0
  %1281 = vmatpush1.bf16.msra.mxu0 0
  %1282 = vmatprep.subr.bf16.mxu0 0
  %1283 = vmatpush1.bf16.msra.mxu0 0
  %1284 = vmatprep.subr.bf16.mxu0 0
  %1285 = vmatpush1.bf16.msra.mxu0 0
  %1286 = vmatprep.subr.bf16.mxu0 0
  %1287 = vmatpush1.bf16.msra.mxu0 0
  %1288 = vmatprep.subr.bf16.mxu0 0
  %1289 = vmatpush1.bf16.msra.mxu0 0
  %1290 = vmatprep.subr.bf16.mxu0 0
  %1291 = vmatpush1.bf16.msra.mxu0 0
  %1292 = vmatprep.subr.bf16.mxu0 0
  %1293 = vmatpush1.bf16.msra.mxu0 0
  %1294 = vmatprep.subr.bf16.mxu0 0
  %1295 = vmatpush1.bf16.msra.mxu0 0
  %1296 = vmatprep.mubr.bf16.mxu0 0
  %1297 = vmatmul.mubr.bf16.gmra.mrb[0].mxu0 %v1199
  %v1298 = vpop.f32.mrb[0].mxu0
  %v1299 = vadd.f32 0.0, %v1298
  %v1300 = vpop.f32.mrb[0].mxu0
  %v1301 = vpop.f32.mrb[0].mxu0
  %v1302 = vadd.f32 0.0, %v1301
  %v1303 = vpop.f32.mrb[0].mxu0
  %1304 = vdwg.mxu0
  %v1305 = vld [vmem:[%s3 + $0x180] sm:$0xf]
  %v1306 = vld [vmem:[%s3 + $0x184] sm:$0xf]
  %v1307 = vld [vmem:[%s3 + $0x188] sm:$0xf]
  %v1308 = vld [vmem:[%s3 + $0x18c] sm:$0xf]
  %v1309 = vld [vmem:[%s3 + $0x190] sm:$0xf]
  %v1310 = vld [vmem:[%s3 + $0x194] sm:$0xf]
  %v1311 = vld [vmem:[%s3 + $0x198] sm:$0xf]
  %v1312 = vld [vmem:[%s3 + $0x19c] sm:$0xf]
  %v1313 = vld [vmem:[%s3 + $0x1a0] sm:$0xf]
  %v1314 = vld [vmem:[%s3 + $0x1a4] sm:$0xf]
  %v1315 = vld [vmem:[%s3 + $0x1a8] sm:$0xf]
  %v1316 = vld [vmem:[%s3 + $0x1ac] sm:$0xf]
  %v1317 = vld [vmem:[%s3 + $0x1b0] sm:$0xf]
  %v1318 = vld [vmem:[%s3 + $0x1b4] sm:$0xf]
  %v1319 = vld [vmem:[%s3 + $0x1b8] sm:$0xf]
  %v1320 = vld [vmem:[%s3 + $0x1bc] sm:$0xf]
  %v1337 = vunpack.c.l.b16 %v1305
  %v1338 = vunpack.c.l.b16 %v1306
  %v1339 = vunpack.c.l.b16 %v1307
  %v1340 = vunpack.c.l.b16 %v1308
  %v1341 = vunpack.c.l.b16 %v1309
  %v1342 = vunpack.c.l.b16 %v1310
  %v1343 = vunpack.c.l.b16 %v1311
  %v1344 = vunpack.c.l.b16 %v1312
  %v1345 = vunpack.c.l.b16 %v1313
  %v1346 = vunpack.c.l.b16 %v1314
  %v1347 = vunpack.c.l.b16 %v1315
  %v1348 = vunpack.c.l.b16 %v1316
  %v1349 = vunpack.c.l.b16 %v1317
  %v1350 = vunpack.c.l.b16 %v1318
  %v1351 = vunpack.c.l.b16 %v1319
  %v1352 = vunpack.c.l.b16 %v1320
  %v1353 = vpack.c.b16 %v1338, %v1337
  %v1354 = vpack.c.b16 %v1340, %v1339
  %v1355 = vpack.c.b16 %v1342, %v1341
  %v1356 = vpack.c.b16 %v1344, %v1343
  %v1357 = vpack.c.b16 %v1346, %v1345
  %v1358 = vpack.c.b16 %v1348, %v1347
  %v1359 = vpack.c.b16 %v1350, %v1349
  %v1360 = vpack.c.b16 %v1352, %v1351
  %1369 = vmatprep.subr.bf16.mxu0 0
  %1370 = vmatpush1.bf16.msra.mxu0 %v1353
  %1371 = vmatprep.subr.bf16.mxu0 0
  %1372 = vmatpush1.bf16.msra.mxu0 %v1354
  %1373 = vmatprep.subr.bf16.mxu0 0
  %1374 = vmatpush1.bf16.msra.mxu0 %v1355
  %1375 = vmatprep.subr.bf16.mxu0 0
  %1376 = vmatpush1.bf16.msra.mxu0 %v1356
  %1377 = vmatprep.subr.bf16.mxu0 0
  %1378 = vmatpush1.bf16.msra.mxu0 %v1357
  %1379 = vmatprep.subr.bf16.mxu0 0
  %1380 = vmatpush1.bf16.msra.mxu0 %v1358
  %1381 = vmatprep.subr.bf16.mxu0 0
  %1382 = vmatpush1.bf16.msra.mxu0 %v1359
  %1383 = vmatprep.subr.bf16.mxu0 0
  %1384 = vmatpush1.bf16.msra.mxu0 %v1360
  %1385 = vmatprep.subr.bf16.mxu0 0
  %1386 = vmatpush1.bf16.msra.mxu0 0
  %1387 = vmatprep.subr.bf16.mxu0 0
  %1388 = vmatpush1.bf16.msra.mxu0 0
  %1389 = vmatprep.subr.bf16.mxu0 0
  %1390 = vmatpush1.bf16.msra.mxu0 0
  %1391 = vmatprep.subr.bf16.mxu0 0
  %1392 = vmatpush1.bf16.msra.mxu0 0
  %1393 = vmatprep.subr.bf16.mxu0 0
  %1394 = vmatpush1.bf16.msra.mxu0 0
  %1395 = vmatprep.subr.bf16.mxu0 0
  %1396 = vmatpush1.bf16.msra.mxu0 0
  %1397 = vmatprep.subr.bf16.mxu0 0
  %1398 = vmatpush1.bf16.msra.mxu0 0
  %1399 = vmatprep.subr.bf16.mxu0 0
  %1400 = vmatpush1.bf16.msra.mxu0 0
  %1401 = vmatprep.mubr.bf16.mxu0 0
  %1402 = vmatmul.mubr.bf16.gmra.mrb[0].mxu0 %v1199
  %v1403 = vpop.f32.mrb[0].mxu0
  %v1404 = vadd.f32 0.0, %v1403
  %v1405 = vpop.f32.mrb[0].mxu0
  %v1406 = vpop.f32.mrb[0].mxu0
  %v1407 = vadd.f32 0.0, %v1406
  %v1408 = vpop.f32.mrb[0].mxu0
  %1409 = vdwg.mxu0
  %v1410 = vld [vmem:[%s3 + $0x1c0] sm:$0xf]
  %v1411 = vld [vmem:[%s3 + $0x1c4] sm:$0xf]
  %v1412 = vld [vmem:[%s3 + $0x1c8] sm:$0xf]
  %v1413 = vld [vmem:[%s3 + $0x1cc] sm:$0xf]
  %v1414 = vld [vmem:[%s3 + $0x1d0] sm:$0xf]
  %v1415 = vld [vmem:[%s3 + $0x1d4] sm:$0xf]
  %v1416 = vld [vmem:[%s3 + $0x1d8] sm:$0xf]
  %v1417 = vld [vmem:[%s3 + $0x1dc] sm:$0xf]
  %v1418 = vld [vmem:[%s3 + $0x1e0] sm:$0xf]
  %v1419 = vld [vmem:[%s3 + $0x1e4] sm:$0xf]
  %v1420 = vld [vmem:[%s3 + $0x1e8] sm:$0xf]
  %v1421 = vld [vmem:[%s3 + $0x1ec] sm:$0xf]
  %v1422 = vld [vmem:[%s3 + $0x1f0] sm:$0xf]
  %v1423 = vld [vmem:[%s3 + $0x1f4] sm:$0xf]
  %v1424 = vld [vmem:[%s3 + $0x1f8] sm:$0xf]
  %v1425 = vld [vmem:[%s3 + $0x1fc] sm:$0xf]
  %v1442 = vunpack.c.l.b16 %v1410
  %v1443 = vunpack.c.l.b16 %v1411
  %v1444 = vunpack.c.l.b16 %v1412
  %v1445 = vunpack.c.l.b16 %v1413
  %v1446 = vunpack.c.l.b16 %v1414
  %v1447 = vunpack.c.l.b16 %v1415
  %v1448 = vunpack.c.l.b16 %v1416
  %v1449 = vunpack.c.l.b16 %v1417
  %v1450 = vunpack.c.l.b16 %v1418
  %v1451 = vunpack.c.l.b16 %v1419
  %v1452 = vunpack.c.l.b16 %v1420
  %v1453 = vunpack.c.l.b16 %v1421
  %v1454 = vunpack.c.l.b16 %v1422
  %v1455 = vunpack.c.l.b16 %v1423
  %v1456 = vunpack.c.l.b16 %v1424
  %v1457 = vunpack.c.l.b16 %v1425
  %v1458 = vpack.c.b16 %v1443, %v1442
  %v1459 = vpack.c.b16 %v1445, %v1444
  %v1460 = vpack.c.b16 %v1447, %v1446
  %v1461 = vpack.c.b16 %v1449, %v1448
  %v1462 = vpack.c.b16 %v1451, %v1450
  %v1463 = vpack.c.b16 %v1453, %v1452
  %v1464 = vpack.c.b16 %v1455, %v1454
  %v1465 = vpack.c.b16 %v1457, %v1456
  %1474 = vmatprep.subr.bf16.mxu0 0
  %1475 = vmatpush1.bf16.msra.mxu0 %v1458
  %1476 = vmatprep.subr.bf16.mxu0 0
  %1477 = vmatpush1.bf16.msra.mxu0 %v1459
  %1478 = vmatprep.subr.bf16.mxu0 0
  %1479 = vmatpush1.bf16.msra.mxu0 %v1460
  %1480 = vmatprep.subr.bf16.mxu0 0
  %1481 = vmatpush1.bf16.msra.mxu0 %v1461
  %1482 = vmatprep.subr.bf16.mxu0 0
  %1483 = vmatpush1.bf16.msra.mxu0 %v1462
  %1484 = vmatprep.subr.bf16.mxu0 0
  %1485 = vmatpush1.bf16.msra.mxu0 %v1463
  %1486 = vmatprep.subr.bf16.mxu0 0
  %1487 = vmatpush1.bf16.msra.mxu0 %v1464
  %1488 = vmatprep.subr.bf16.mxu0 0
  %1489 = vmatpush1.bf16.msra.mxu0 %v1465
  %1490 = vmatprep.subr.bf16.mxu0 0
  %1491 = vmatpush1.bf16.msra.mxu0 0
  %1492 = vmatprep.subr.bf16.mxu0 0
  %1493 = vmatpush1.bf16.msra.mxu0 0
  %1494 = vmatprep.subr.bf16.mxu0 0
  %1495 = vmatpush1.bf16.msra.mxu0 0
  %1496 = vmatprep.subr.bf16.mxu0 0
  %1497 = vmatpush1.bf16.msra.mxu0 0
  %1498 = vmatprep.subr.bf16.mxu0 0
  %1499 = vmatpush1.bf16.msra.mxu0 0
  %1500 = vmatprep.subr.bf16.mxu0 0
  %1501 = vmatpush1.bf16.msra.mxu0 0
  %1502 = vmatprep.subr.bf16.mxu0 0
  %1503 = vmatpush1.bf16.msra.mxu0 0
  %1504 = vmatprep.subr.bf16.mxu0 0
  %1505 = vmatpush1.bf16.msra.mxu0 0
  %1506 = vmatprep.mubr.bf16.mxu0 0
  %1507 = vmatmul.mubr.bf16.gmra.mrb[0].mxu0 %v1199
  %v1508 = vpop.f32.mrb[0].mxu0
  %v1509 = vadd.f32 0.0, %v1508
  %v1510 = vpop.f32.mrb[0].mxu0
  %v1511 = vpop.f32.mrb[0].mxu0
  %v1512 = vadd.f32 0.0, %v1511
  %v1513 = vpop.f32.mrb[0].mxu0
  %1514 = vdwg.mxu0
  %vm1515 = vcmask 130048
  %v1517 = vsel %vm1515, %v32, 0
  %v1520 = vsel %vm1515, %v33, 0
  %1522 = vmatprep.subr.mxu0 0.0
  %1523 = vmatpush1.msra.mxu0 %v1299
  %1524 = vmatprep.subr.mxu0 0.0
  %1525 = vmatpush1.msra.mxu0 %v1302
  %1526 = vmatprep.subr.mxu0 0.0
  %1527 = vmatpush1.msra.mxu0 0.0
  %1528 = vmatprep.subr.mxu0 0.0
  %1529 = vmatpush1.msra.mxu0 0.0
  %1530 = vmatprep.subr.mxu0 0.0
  %1531 = vmatpush1.msra.mxu0 0.0
  %1532 = vmatprep.subr.mxu0 0.0
  %1533 = vmatpush1.msra.mxu0 0.0
  %1534 = vmatprep.subr.mxu0 0.0
  %1535 = vmatpush1.msra.mxu0 0.0
  %1536 = vmatprep.subr.mxu0 0.0
  %1537 = vmatpush1.msra.mxu0 0.0
  %1538 = vmatprep.subr.mxu0 0.0
  %1539 = vmatpush1.msra.mxu0 0.0
  %1540 = vmatprep.subr.mxu0 0.0
  %1541 = vmatpush1.msra.mxu0 0.0
  %1542 = vmatprep.subr.mxu0 0.0
  %1543 = vmatpush1.msra.mxu0 0.0
  %1544 = vmatprep.subr.mxu0 0.0
  %1545 = vmatpush1.msra.mxu0 0.0
  %1546 = vmatprep.subr.mxu0 0.0
  %1547 = vmatpush1.msra.mxu0 0.0
  %1548 = vmatprep.subr.mxu0 0.0
  %1549 = vmatpush1.msra.mxu0 0.0
  %1550 = vmatprep.subr.mxu0 0.0
  %1551 = vmatpush1.msra.mxu0 0.0
  %1552 = vmatprep.subr.mxu0 0.0
  %1553 = vmatpush1.msra.mxu0 0.0
  %1554 = vmatprep.subr.mxu0 0.0
  %1555 = vmatpush1.msra.mxu0 0.0
  %1556 = vmatprep.subr.mxu0 0.0
  %1557 = vmatpush1.msra.mxu0 0.0
  %1558 = vmatprep.subr.mxu0 0.0
  %1559 = vmatpush1.msra.mxu0 0.0
  %1560 = vmatprep.subr.mxu0 0.0
  %1561 = vmatpush1.msra.mxu0 0.0
  %1562 = vmatprep.subr.mxu0 0.0
  %1563 = vmatpush1.msra.mxu0 0.0
  %1564 = vmatprep.subr.mxu0 0.0
  %1565 = vmatpush1.msra.mxu0 0.0
  %1566 = vmatprep.subr.mxu0 0.0
  %1567 = vmatpush1.msra.mxu0 0.0
  %1568 = vmatprep.subr.mxu0 0.0
  %1569 = vmatpush1.msra.mxu0 0.0
  %1570 = vmatprep.subr.mxu0 0.0
  %1571 = vmatpush1.msra.mxu0 0.0
  %1572 = vmatprep.subr.mxu0 0.0
  %1573 = vmatpush1.msra.mxu0 0.0
  %1574 = vmatprep.subr.mxu0 0.0
  %1575 = vmatpush1.msra.mxu0 0.0
  %1576 = vmatprep.subr.mxu0 0.0
  %1577 = vmatpush1.msra.mxu0 0.0
  %1578 = vmatprep.subr.mxu0 0.0
  %1579 = vmatpush1.msra.mxu0 0.0
  %1580 = vmatprep.subr.mxu0 0.0
  %1581 = vmatpush1.msra.mxu0 0.0
  %1582 = vmatprep.subr.mxu0 0.0
  %1583 = vmatpush1.msra.mxu0 0.0
  %1584 = vmatprep.subr.mxu0 0.0
  %1585 = vmatpush1.msra.mxu0 0.0
  %1586 = vmatprep.mubr.f32.mxu0 0.0
  %1587 = vmatmul.mubr.f32.gmra.mrb[0].mxu0 %v1517
  %v1588 = vpop.f32.mrb[0].mxu0
  %v1589 = vadd.f32 %v1404, %v1588
  %v1590 = vpop.f32.mrb[0].mxu0
  %1591 = vmatprep.mubr.f32.mxu0 0.0
  %1592 = vmatmul.mubr.f32.gmra.mrb[0].mxu0 %v1520
  %v1593 = vpop.f32.mrb[0].mxu0
  %v1594 = vadd.f32 %v1407, %v1593
  %v1595 = vpop.f32.mrb[0].mxu0
  %1596 = vdwg.mxu0
  %v1598 = vsel %vm1515, %v34, 0
  %v1601 = vsel %vm1515, %v35, 0
  %1603 = vmatprep.subr.mxu0 0.0
  %1604 = vmatpush1.msra.mxu0 %v1509
  %1605 = vmatprep.subr.mxu0 0.0
  %1606 = vmatpush1.msra.mxu0 %v1512
  %1607 = vmatprep.subr.mxu0 0.0
  %1608 = vmatpush1.msra.mxu0 0.0
  %1609 = vmatprep.subr.mxu0 0.0
  %1610 = vmatpush1.msra.mxu0 0.0
  %1611 = vmatprep.subr.mxu0 0.0
  %1612 = vmatpush1.msra.mxu0 0.0
  %1613 = vmatprep.subr.mxu0 0.0
  %1614 = vmatpush1.msra.mxu0 0.0
  %1615 = vmatprep.subr.mxu0 0.0
  %1616 = vmatpush1.msra.mxu0 0.0
  %1617 = vmatprep.subr.mxu0 0.0
  %1618 = vmatpush1.msra.mxu0 0.0
  %1619 = vmatprep.subr.mxu0 0.0
  %1620 = vmatpush1.msra.mxu0 0.0
  %1621 = vmatprep.subr.mxu0 0.0
  %1622 = vmatpush1.msra.mxu0 0.0
  %1623 = vmatprep.subr.mxu0 0.0
  %1624 = vmatpush1.msra.mxu0 0.0
  %1625 = vmatprep.subr.mxu0 0.0
  %1626 = vmatpush1.msra.mxu0 0.0
  %1627 = vmatprep.subr.mxu0 0.0
  %1628 = vmatpush1.msra.mxu0 0.0
  %1629 = vmatprep.subr.mxu0 0.0
  %1630 = vmatpush1.msra.mxu0 0.0
  %1631 = vmatprep.subr.mxu0 0.0
  %1632 = vmatpush1.msra.mxu0 0.0
  %1633 = vmatprep.subr.mxu0 0.0
  %1634 = vmatpush1.msra.mxu0 0.0
  %1635 = vmatprep.subr.mxu0 0.0
  %1636 = vmatpush1.msra.mxu0 0.0
  %1637 = vmatprep.subr.mxu0 0.0
  %1638 = vmatpush1.msra.mxu0 0.0
  %1639 = vmatprep.subr.mxu0 0.0
  %1640 = vmatpush1.msra.mxu0 0.0
  %1641 = vmatprep.subr.mxu0 0.0
  %1642 = vmatpush1.msra.mxu0 0.0
  %1643 = vmatprep.subr.mxu0 0.0
  %1644 = vmatpush1.msra.mxu0 0.0
  %1645 = vmatprep.subr.mxu0 0.0
  %1646 = vmatpush1.msra.mxu0 0.0
  %1647 = vmatprep.subr.mxu0 0.0
  %1648 = vmatpush1.msra.mxu0 0.0
  %1649 = vmatprep.subr.mxu0 0.0
  %1650 = vmatpush1.msra.mxu0 0.0
  %1651 = vmatprep.subr.mxu0 0.0
  %1652 = vmatpush1.msra.mxu0 0.0
  %1653 = vmatprep.subr.mxu0 0.0
  %1654 = vmatpush1.msra.mxu0 0.0
  %1655 = vmatprep.subr.mxu0 0.0
  %1656 = vmatpush1.msra.mxu0 0.0
  %1657 = vmatprep.subr.mxu0 0.0
  %1658 = vmatpush1.msra.mxu0 0.0
  %1659 = vmatprep.subr.mxu0 0.0
  %1660 = vmatpush1.msra.mxu0 0.0
  %1661 = vmatprep.subr.mxu0 0.0
  %1662 = vmatpush1.msra.mxu0 0.0
  %1663 = vmatprep.subr.mxu0 0.0
  %1664 = vmatpush1.msra.mxu0 0.0
  %1665 = vmatprep.subr.mxu0 0.0
  %1666 = vmatpush1.msra.mxu0 0.0
  %1667 = vmatprep.mubr.f32.mxu0 0.0
  %1668 = vmatmul.mubr.f32.gmra.mrb[0].mxu0 %v1598
  %v1669 = vpop.f32.mrb[0].mxu0
  %v1670 = vadd.f32 0.0, %v1669
  %v1671 = vpop.f32.mrb[0].mxu0
  %1672 = vmatprep.mubr.f32.mxu0 0.0
  %1673 = vmatmul.mubr.f32.gmra.mrb[0].mxu0 %v1601
  %v1674 = vpop.f32.mrb[0].mxu0
  %v1675 = vadd.f32 0.0, %v1674
  %v1676 = vpop.f32.mrb[0].mxu0
  %1677 = vdwg.mxu0
  %v1678 = vadd.f32 %v1589, %v1670
  %v1679 = vadd.f32 %v1594, %v1675
  %v1680 = vadd.f32 %v1678, %v1679
  %v1681 = vrot.slane %v1680, 4
  %v1682 = vadd.f32 %v1680, %v1681
  %v1683 = vrot.slane %v1682, 2
  %v1684 = vadd.f32 %v1682, %v1683
  %v1685 = vrot.slane %v1684, 1
  %v1686 = vadd.f32 %v1684, %v1685
  %v1687 = vmul.f32 %v1678, %v1678
  %v1688 = vmul.f32 %v1679, %v1679
  %v1689 = vadd.f32 %v1687, %v1688
  %v1690 = vrot.slane %v1689, 4
  %v1691 = vadd.f32 %v1689, %v1690
  %v1692 = vrot.slane %v1691, 2
  %v1693 = vadd.f32 %v1691, %v1692
  %v1694 = vrot.slane %v1693, 1
  %v1695 = vadd.f32 %v1693, %v1694
  %1696 = vrot.lane.b32.xlu0 %v1686, 16
  %v1697 = vpop.permute.xlu0 %1696
  %v1698 = vadd.f32 %v1686, %v1697
  %1699 = vrot.lane.b32.xlu0 %v1695, 16
  %v1700 = vpop.permute.xlu0 %1699
  %v1701 = vadd.f32 %v1695, %v1700
  %1702 = vrot.lane.b32.xlu0 %v1698, 32
  %v1703 = vpop.permute.xlu0 %1702
  %v1704 = vadd.f32 %v1698, %v1703
  %1705 = vrot.lane.b32.xlu0 %v1701, 32
  %v1706 = vpop.permute.xlu0 %1705
  %v1707 = vadd.f32 %v1701, %v1706
  %1708 = vrot.lane.b32.xlu0 %v1704, 64
  %v1709 = vpop.permute.xlu0 %1708
  %v1710 = vadd.f32 %v1704, %v1709
  %1711 = vrot.lane.b32.xlu0 %v1707, 64
  %v1712 = vpop.permute.xlu0 %1711
  %v1713 = vadd.f32 %v1707, %v1712
  %v1714 = vmul.f32 %v1710, 0.0078125
  %v1715 = vmul.f32 %v1713, 0.0078125
  %v1716 = vmul.f32 %v1714, %v1714
  %v1717 = vsub.f32 %v1715, %v1716
  %v1718 = vadd.f32 %v1717, 0.0001
  %v1719 = vrsqrt.pop %v1718
  %v1720 = vrot.slane %v18, 6
  %v1722 = vmul.f32 %v1719, %v1720
  %v1723 = vmul.f32 %v1714, %v1722
  %v1725 = vrot.slane %v1723, 1
  %v1727 = vsub.f32 %v18, %v1725
  %v1728 = vlaneseq
  %v1729 = vshrl.u32 %v1728, 7
  %v1730 = vsub.s32 0, %v1729
  %v1731 = vrot.slane %v1722, %v1730
  %v1732 = vmul.f32 %v1678, %v1731
  %v1733 = vmul.f32 %v1679, %v1731
  %v1734 = vlaneseq
  %v1735 = vshrl.u32 %v1734, 7
  %v1736 = vsub.s32 7, %v1735
  %v1737 = vrot.slane %v1727, %v1736
  %v1738 = vadd.f32 %v1732, %v1737
  %v1739 = vadd.f32 %v1733, %v1737
  %v1740 = vmax.f32 %v1738, 0.0
  %v1741 = vmax.f32 %v1739, 0.0
  %v1742 = vpack.c.bf16 %v1741, %v1740
  %v1743 = vld [vmem:[%s3 + $0x200] sm:$0xf]
  %v1744 = vld [vmem:[%s3 + $0x204] sm:$0xf]
  %v1745 = vld [vmem:[%s3 + $0x208] sm:$0xf]
  %v1746 = vld [vmem:[%s3 + $0x20c] sm:$0xf]
  %v1747 = vld [vmem:[%s3 + $0x210] sm:$0xf]
  %v1748 = vld [vmem:[%s3 + $0x214] sm:$0xf]
  %v1749 = vld [vmem:[%s3 + $0x218] sm:$0xf]
  %v1750 = vld [vmem:[%s3 + $0x21c] sm:$0xf]
  %v1751 = vld [vmem:[%s3 + $0x220] sm:$0xf]
  %v1752 = vld [vmem:[%s3 + $0x224] sm:$0xf]
  %v1753 = vld [vmem:[%s3 + $0x228] sm:$0xf]
  %v1754 = vld [vmem:[%s3 + $0x22c] sm:$0xf]
  %v1755 = vld [vmem:[%s3 + $0x230] sm:$0xf]
  %v1756 = vld [vmem:[%s3 + $0x234] sm:$0xf]
  %v1757 = vld [vmem:[%s3 + $0x238] sm:$0xf]
  %v1758 = vld [vmem:[%s3 + $0x23c] sm:$0xf]
  %v1775 = vunpack.c.l.b16 %v1743
  %v1776 = vunpack.c.l.b16 %v1744
  %v1777 = vunpack.c.l.b16 %v1745
  %v1778 = vunpack.c.l.b16 %v1746
  %v1779 = vunpack.c.l.b16 %v1747
  %v1780 = vunpack.c.l.b16 %v1748
  %v1781 = vunpack.c.l.b16 %v1749
  %v1782 = vunpack.c.l.b16 %v1750
  %v1783 = vunpack.c.l.b16 %v1751
  %v1784 = vunpack.c.l.b16 %v1752
  %v1785 = vunpack.c.l.b16 %v1753
  %v1786 = vunpack.c.l.b16 %v1754
  %v1787 = vunpack.c.l.b16 %v1755
  %v1788 = vunpack.c.l.b16 %v1756
  %v1789 = vunpack.c.l.b16 %v1757
  %v1790 = vunpack.c.l.b16 %v1758
  %v1791 = vpack.c.b16 %v1776, %v1775
  %v1792 = vpack.c.b16 %v1778, %v1777
  %v1793 = vpack.c.b16 %v1780, %v1779
  %v1794 = vpack.c.b16 %v1782, %v1781
  %v1795 = vpack.c.b16 %v1784, %v1783
  %v1796 = vpack.c.b16 %v1786, %v1785
  %v1797 = vpack.c.b16 %v1788, %v1787
  %v1798 = vpack.c.b16 %v1790, %v1789
  %1807 = vmatprep.subr.bf16.mxu0 0
  %1808 = vmatpush1.bf16.msra.mxu0 %v1791
  %1809 = vmatprep.subr.bf16.mxu0 0
  %1810 = vmatpush1.bf16.msra.mxu0 %v1792
  %1811 = vmatprep.subr.bf16.mxu0 0
  %1812 = vmatpush1.bf16.msra.mxu0 %v1793
  %1813 = vmatprep.subr.bf16.mxu0 0
  %1814 = vmatpush1.bf16.msra.mxu0 %v1794
  %1815 = vmatprep.subr.bf16.mxu0 0
  %1816 = vmatpush1.bf16.msra.mxu0 %v1795
  %1817 = vmatprep.subr.bf16.mxu0 0
  %1818 = vmatpush1.bf16.msra.mxu0 %v1796
  %1819 = vmatprep.subr.bf16.mxu0 0
  %1820 = vmatpush1.bf16.msra.mxu0 %v1797
  %1821 = vmatprep.subr.bf16.mxu0 0
  %1822 = vmatpush1.bf16.msra.mxu0 %v1798
  %1823 = vmatprep.subr.bf16.mxu0 0
  %1824 = vmatpush1.bf16.msra.mxu0 0
  %1825 = vmatprep.subr.bf16.mxu0 0
  %1826 = vmatpush1.bf16.msra.mxu0 0
  %1827 = vmatprep.subr.bf16.mxu0 0
  %1828 = vmatpush1.bf16.msra.mxu0 0
  %1829 = vmatprep.subr.bf16.mxu0 0
  %1830 = vmatpush1.bf16.msra.mxu0 0
  %1831 = vmatprep.subr.bf16.mxu0 0
  %1832 = vmatpush1.bf16.msra.mxu0 0
  %1833 = vmatprep.subr.bf16.mxu0 0
  %1834 = vmatpush1.bf16.msra.mxu0 0
  %1835 = vmatprep.subr.bf16.mxu0 0
  %1836 = vmatpush1.bf16.msra.mxu0 0
  %1837 = vmatprep.subr.bf16.mxu0 0
  %1838 = vmatpush1.bf16.msra.mxu0 0
  %1839 = vmatprep.mubr.bf16.mxu0 0
  %1840 = vmatmul.mubr.bf16.gmra.mrb[0].mxu0 %v1742
  %v1841 = vpop.f32.mrb[0].mxu0
  %v1842 = vadd.f32 0.0, %v1841
  %v1843 = vpop.f32.mrb[0].mxu0
  %v1844 = vpop.f32.mrb[0].mxu0
  %v1845 = vadd.f32 0.0, %v1844
  %v1846 = vpop.f32.mrb[0].mxu0
  %1847 = vdwg.mxu0
  %v1848 = vld [vmem:[%s3 + $0x240] sm:$0xf]
  %v1849 = vld [vmem:[%s3 + $0x244] sm:$0xf]
  %v1850 = vld [vmem:[%s3 + $0x248] sm:$0xf]
  %v1851 = vld [vmem:[%s3 + $0x24c] sm:$0xf]
  %v1852 = vld [vmem:[%s3 + $0x250] sm:$0xf]
  %v1853 = vld [vmem:[%s3 + $0x254] sm:$0xf]
  %v1854 = vld [vmem:[%s3 + $0x258] sm:$0xf]
  %v1855 = vld [vmem:[%s3 + $0x25c] sm:$0xf]
  %v1856 = vld [vmem:[%s3 + $0x260] sm:$0xf]
  %v1857 = vld [vmem:[%s3 + $0x264] sm:$0xf]
  %v1858 = vld [vmem:[%s3 + $0x268] sm:$0xf]
  %v1859 = vld [vmem:[%s3 + $0x26c] sm:$0xf]
  %v1860 = vld [vmem:[%s3 + $0x270] sm:$0xf]
  %v1861 = vld [vmem:[%s3 + $0x274] sm:$0xf]
  %v1862 = vld [vmem:[%s3 + $0x278] sm:$0xf]
  %v1863 = vld [vmem:[%s3 + $0x27c] sm:$0xf]
  %v1880 = vunpack.c.l.b16 %v1848
  %v1881 = vunpack.c.l.b16 %v1849
  %v1882 = vunpack.c.l.b16 %v1850
  %v1883 = vunpack.c.l.b16 %v1851
  %v1884 = vunpack.c.l.b16 %v1852
  %v1885 = vunpack.c.l.b16 %v1853
  %v1886 = vunpack.c.l.b16 %v1854
  %v1887 = vunpack.c.l.b16 %v1855
  %v1888 = vunpack.c.l.b16 %v1856
  %v1889 = vunpack.c.l.b16 %v1857
  %v1890 = vunpack.c.l.b16 %v1858
  %v1891 = vunpack.c.l.b16 %v1859
  %v1892 = vunpack.c.l.b16 %v1860
  %v1893 = vunpack.c.l.b16 %v1861
  %v1894 = vunpack.c.l.b16 %v1862
  %v1895 = vunpack.c.l.b16 %v1863
  %v1896 = vpack.c.b16 %v1881, %v1880
  %v1897 = vpack.c.b16 %v1883, %v1882
  %v1898 = vpack.c.b16 %v1885, %v1884
  %v1899 = vpack.c.b16 %v1887, %v1886
  %v1900 = vpack.c.b16 %v1889, %v1888
  %v1901 = vpack.c.b16 %v1891, %v1890
  %v1902 = vpack.c.b16 %v1893, %v1892
  %v1903 = vpack.c.b16 %v1895, %v1894
  %1912 = vmatprep.subr.bf16.mxu0 0
  %1913 = vmatpush1.bf16.msra.mxu0 %v1896
  %1914 = vmatprep.subr.bf16.mxu0 0
  %1915 = vmatpush1.bf16.msra.mxu0 %v1897
  %1916 = vmatprep.subr.bf16.mxu0 0
  %1917 = vmatpush1.bf16.msra.mxu0 %v1898
  %1918 = vmatprep.subr.bf16.mxu0 0
  %1919 = vmatpush1.bf16.msra.mxu0 %v1899
  %1920 = vmatprep.subr.bf16.mxu0 0
  %1921 = vmatpush1.bf16.msra.mxu0 %v1900
  %1922 = vmatprep.subr.bf16.mxu0 0
  %1923 = vmatpush1.bf16.msra.mxu0 %v1901
  %1924 = vmatprep.subr.bf16.mxu0 0
  %1925 = vmatpush1.bf16.msra.mxu0 %v1902
  %1926 = vmatprep.subr.bf16.mxu0 0
  %1927 = vmatpush1.bf16.msra.mxu0 %v1903
  %1928 = vmatprep.subr.bf16.mxu0 0
  %1929 = vmatpush1.bf16.msra.mxu0 0
  %1930 = vmatprep.subr.bf16.mxu0 0
  %1931 = vmatpush1.bf16.msra.mxu0 0
  %1932 = vmatprep.subr.bf16.mxu0 0
  %1933 = vmatpush1.bf16.msra.mxu0 0
  %1934 = vmatprep.subr.bf16.mxu0 0
  %1935 = vmatpush1.bf16.msra.mxu0 0
  %1936 = vmatprep.subr.bf16.mxu0 0
  %1937 = vmatpush1.bf16.msra.mxu0 0
  %1938 = vmatprep.subr.bf16.mxu0 0
  %1939 = vmatpush1.bf16.msra.mxu0 0
  %1940 = vmatprep.subr.bf16.mxu0 0
  %1941 = vmatpush1.bf16.msra.mxu0 0
  %1942 = vmatprep.subr.bf16.mxu0 0
  %1943 = vmatpush1.bf16.msra.mxu0 0
  %1944 = vmatprep.mubr.bf16.mxu0 0
  %1945 = vmatmul.mubr.bf16.gmra.mrb[0].mxu0 %v1742
  %v1946 = vpop.f32.mrb[0].mxu0
  %v1947 = vadd.f32 0.0, %v1946
  %v1948 = vpop.f32.mrb[0].mxu0
  %v1949 = vpop.f32.mrb[0].mxu0
  %v1950 = vadd.f32 0.0, %v1949
  %v1951 = vpop.f32.mrb[0].mxu0
  %1952 = vdwg.mxu0
  %v1954 = vsel %vm1515, %v40, 0
  %v1957 = vsel %vm1515, %v41, 0
  %v1960 = vsel %vm1515, %v42, 0
  %v1963 = vsel %vm1515, %v43, 0
  %1965 = vmatprep.subr.mxu0 0.0
  %1966 = vmatpush1.msra.mxu0 %v1947
  %1967 = vmatprep.subr.mxu0 0.0
  %1968 = vmatpush1.msra.mxu0 %v1950
  %1969 = vmatprep.subr.mxu0 0.0
  %1970 = vmatpush1.msra.mxu0 0.0
  %1971 = vmatprep.subr.mxu0 0.0
  %1972 = vmatpush1.msra.mxu0 0.0
  %1973 = vmatprep.subr.mxu0 0.0
  %1974 = vmatpush1.msra.mxu0 0.0
  %1975 = vmatprep.subr.mxu0 0.0
  %1976 = vmatpush1.msra.mxu0 0.0
  %1977 = vmatprep.subr.mxu0 0.0
  %1978 = vmatpush1.msra.mxu0 0.0
  %1979 = vmatprep.subr.mxu0 0.0
  %1980 = vmatpush1.msra.mxu0 0.0
  %1981 = vmatprep.subr.mxu0 0.0
  %1982 = vmatpush1.msra.mxu0 0.0
  %1983 = vmatprep.subr.mxu0 0.0
  %1984 = vmatpush1.msra.mxu0 0.0
  %1985 = vmatprep.subr.mxu0 0.0
  %1986 = vmatpush1.msra.mxu0 0.0
  %1987 = vmatprep.subr.mxu0 0.0
  %1988 = vmatpush1.msra.mxu0 0.0
  %1989 = vmatprep.subr.mxu0 0.0
  %1990 = vmatpush1.msra.mxu0 0.0
  %1991 = vmatprep.subr.mxu0 0.0
  %1992 = vmatpush1.msra.mxu0 0.0
  %1993 = vmatprep.subr.mxu0 0.0
  %1994 = vmatpush1.msra.mxu0 0.0
  %1995 = vmatprep.subr.mxu0 0.0
  %1996 = vmatpush1.msra.mxu0 0.0
  %1997 = vmatprep.subr.mxu0 0.0
  %1998 = vmatpush1.msra.mxu0 0.0
  %1999 = vmatprep.subr.mxu0 0.0
  %2000 = vmatpush1.msra.mxu0 0.0
  %2001 = vmatprep.subr.mxu0 0.0
  %2002 = vmatpush1.msra.mxu0 0.0
  %2003 = vmatprep.subr.mxu0 0.0
  %2004 = vmatpush1.msra.mxu0 0.0
  %2005 = vmatprep.subr.mxu0 0.0
  %2006 = vmatpush1.msra.mxu0 0.0
  %2007 = vmatprep.subr.mxu0 0.0
  %2008 = vmatpush1.msra.mxu0 0.0
  %2009 = vmatprep.subr.mxu0 0.0
  %2010 = vmatpush1.msra.mxu0 0.0
  %2011 = vmatprep.subr.mxu0 0.0
  %2012 = vmatpush1.msra.mxu0 0.0
  %2013 = vmatprep.subr.mxu0 0.0
  %2014 = vmatpush1.msra.mxu0 0.0
  %2015 = vmatprep.subr.mxu0 0.0
  %2016 = vmatpush1.msra.mxu0 0.0
  %2017 = vmatprep.subr.mxu0 0.0
  %2018 = vmatpush1.msra.mxu0 0.0
  %2019 = vmatprep.subr.mxu0 0.0
  %2020 = vmatpush1.msra.mxu0 0.0
  %2021 = vmatprep.subr.mxu0 0.0
  %2022 = vmatpush1.msra.mxu0 0.0
  %2023 = vmatprep.subr.mxu0 0.0
  %2024 = vmatpush1.msra.mxu0 0.0
  %2025 = vmatprep.subr.mxu0 0.0
  %2026 = vmatpush1.msra.mxu0 0.0
  %2027 = vmatprep.subr.mxu0 0.0
  %2028 = vmatpush1.msra.mxu0 0.0
  %2029 = vmatprep.mubr.f32.mxu0 0.0
  %2030 = vmatmul.mubr.f32.gmra.mrb[0].mxu0 %v1954
  %v2031 = vpop.f32.mrb[0].mxu0
  %v2032 = vadd.f32 0.0, %v2031
  %v2033 = vpop.f32.mrb[0].mxu0
  %2034 = vmatprep.mubr.f32.mxu0 0.0
  %2035 = vmatmul.mubr.f32.gmra.mrb[0].mxu0 %v1957
  %v2036 = vpop.f32.mrb[0].mxu0
  %v2037 = vadd.f32 0.0, %v2036
  %v2038 = vpop.f32.mrb[0].mxu0
  %2039 = vmatprep.mubr.f32.mxu0 0.0
  %2040 = vmatmul.mubr.f32.gmra.mrb[0].mxu0 %v1960
  %v2041 = vpop.f32.mrb[0].mxu0
  %v2042 = vadd.f32 0.0, %v2041
  %v2043 = vpop.f32.mrb[0].mxu0
  %2044 = vmatprep.mubr.f32.mxu0 0.0
  %2045 = vmatmul.mubr.f32.gmra.mrb[0].mxu0 %v1963
  %v2046 = vpop.f32.mrb[0].mxu0
  %v2047 = vadd.f32 0.0, %v2046
  %v2048 = vpop.f32.mrb[0].mxu0
  %2049 = vdwg.mxu0
  %v2051 = vsel %vm1515, %v36, 0
  %v2054 = vsel %vm1515, %v37, 0
  %v2057 = vsel %vm1515, %v38, 0
  %v2060 = vsel %vm1515, %v39, 0
  %2062 = vmatprep.subr.mxu0 0.0
  %2063 = vmatpush1.msra.mxu0 %v1842
  %2064 = vmatprep.subr.mxu0 0.0
  %2065 = vmatpush1.msra.mxu0 %v1845
  %2066 = vmatprep.subr.mxu0 0.0
  %2067 = vmatpush1.msra.mxu0 0.0
  %2068 = vmatprep.subr.mxu0 0.0
  %2069 = vmatpush1.msra.mxu0 0.0
  %2070 = vmatprep.subr.mxu0 0.0
  %2071 = vmatpush1.msra.mxu0 0.0
  %2072 = vmatprep.subr.mxu0 0.0
  %2073 = vmatpush1.msra.mxu0 0.0
  %2074 = vmatprep.subr.mxu0 0.0
  %2075 = vmatpush1.msra.mxu0 0.0
  %2076 = vmatprep.subr.mxu0 0.0
  %2077 = vmatpush1.msra.mxu0 0.0
  %2078 = vmatprep.subr.mxu0 0.0
  %2079 = vmatpush1.msra.mxu0 0.0
  %2080 = vmatprep.subr.mxu0 0.0
  %2081 = vmatpush1.msra.mxu0 0.0
  %2082 = vmatprep.subr.mxu0 0.0
  %2083 = vmatpush1.msra.mxu0 0.0
  %2084 = vmatprep.subr.mxu0 0.0
  %2085 = vmatpush1.msra.mxu0 0.0
  %2086 = vmatprep.subr.mxu0 0.0
  %2087 = vmatpush1.msra.mxu0 0.0
  %2088 = vmatprep.subr.mxu0 0.0
  %2089 = vmatpush1.msra.mxu0 0.0
  %2090 = vmatprep.subr.mxu0 0.0
  %2091 = vmatpush1.msra.mxu0 0.0
  %2092 = vmatprep.subr.mxu0 0.0
  %2093 = vmatpush1.msra.mxu0 0.0
  %2094 = vmatprep.subr.mxu0 0.0
  %2095 = vmatpush1.msra.mxu0 0.0
  %2096 = vmatprep.subr.mxu0 0.0
  %2097 = vmatpush1.msra.mxu0 0.0
  %2098 = vmatprep.subr.mxu0 0.0
  %2099 = vmatpush1.msra.mxu0 0.0
  %2100 = vmatprep.subr.mxu0 0.0
  %2101 = vmatpush1.msra.mxu0 0.0
  %2102 = vmatprep.subr.mxu0 0.0
  %2103 = vmatpush1.msra.mxu0 0.0
  %2104 = vmatprep.subr.mxu0 0.0
  %2105 = vmatpush1.msra.mxu0 0.0
  %2106 = vmatprep.subr.mxu0 0.0
  %2107 = vmatpush1.msra.mxu0 0.0
  %2108 = vmatprep.subr.mxu0 0.0
  %2109 = vmatpush1.msra.mxu0 0.0
  %2110 = vmatprep.subr.mxu0 0.0
  %2111 = vmatpush1.msra.mxu0 0.0
  %2112 = vmatprep.subr.mxu0 0.0
  %2113 = vmatpush1.msra.mxu0 0.0
  %2114 = vmatprep.subr.mxu0 0.0
  %2115 = vmatpush1.msra.mxu0 0.0
  %2116 = vmatprep.subr.mxu0 0.0
  %2117 = vmatpush1.msra.mxu0 0.0
  %2118 = vmatprep.subr.mxu0 0.0
  %2119 = vmatpush1.msra.mxu0 0.0
  %2120 = vmatprep.subr.mxu0 0.0
  %2121 = vmatpush1.msra.mxu0 0.0
  %2122 = vmatprep.subr.mxu0 0.0
  %2123 = vmatpush1.msra.mxu0 0.0
  %2124 = vmatprep.subr.mxu0 0.0
  %2125 = vmatpush1.msra.mxu0 0.0
  %2126 = vmatprep.mubr.f32.mxu0 0.0
  %2127 = vmatmul.mubr.f32.gmra.mrb[0].mxu0 %v2051
  %v2128 = vpop.f32.mrb[0].mxu0
  %v2129 = vadd.f32 %v2032, %v2128
  %v2130 = vpop.f32.mrb[0].mxu0
  %2131 = vmatprep.mubr.f32.mxu0 0.0
  %2132 = vmatmul.mubr.f32.gmra.mrb[0].mxu0 %v2054
  %v2133 = vpop.f32.mrb[0].mxu0
  %v2134 = vadd.f32 %v2037, %v2133
  %v2135 = vpop.f32.mrb[0].mxu0
  %2136 = vmatprep.mubr.f32.mxu0 0.0
  %2137 = vmatmul.mubr.f32.gmra.mrb[0].mxu0 %v2057
  %v2138 = vpop.f32.mrb[0].mxu0
  %v2139 = vadd.f32 %v2042, %v2138
  %v2140 = vpop.f32.mrb[0].mxu0
  %2141 = vmatprep.mubr.f32.mxu0 0.0
  %2142 = vmatmul.mubr.f32.gmra.mrb[0].mxu0 %v2060
  %v2143 = vpop.f32.mrb[0].mxu0
  %v2144 = vadd.f32 %v2047, %v2143
  %v2145 = vpop.f32.mrb[0].mxu0
  %2146 = vdwg.mxu0
  %v2147 = vmul.f32 %v717, %v19
  %v2148 = vmul.f32 %v712, %v2147
  %v2150 = vrot.slane %v2148, 7
  %v2152 = vsub.f32 %v19, %v2150
  %v2153 = vlaneseq
  %v2154 = vshrl.u32 %v2153, 7
  %v2155 = vsub.s32 0, %v2154
  %v2156 = vrot.slane %v2147, %v2155
  %v2157 = vmul.f32 %v662, %v2156
  %v2158 = vmul.f32 %v663, %v2156
  %v2159 = vmul.f32 %v664, %v2156
  %v2160 = vmul.f32 %v665, %v2156
  %v2161 = vlaneseq
  %v2162 = vshrl.u32 %v2161, 7
  %v2163 = vsub.s32 1, %v2162
  %v2164 = vrot.slane %v2152, %v2163
  %v2165 = vadd.f32 %v2157, %v2164
  %v2166 = vadd.f32 %v2158, %v2164
  %v2167 = vadd.f32 %v2159, %v2164
  %v2168 = vadd.f32 %v2160, %v2164
  %v2169 = vmax.f32 %v2165, 0.0
  %v2170 = vmax.f32 %v2166, 0.0
  %v2171 = vmax.f32 %v2167, 0.0
  %v2172 = vmax.f32 %v2168, 0.0
  %v2173 = vpack.c.bf16 %v2170, %v2169
  %v2174 = vpack.c.bf16 %v2172, %v2171
  %v2175 = vld [vmem:[%s3 + $0x280] sm:$0xf]
  %v2176 = vld [vmem:[%s3 + $0x284] sm:$0xf]
  %v2177 = vld [vmem:[%s3 + $0x288] sm:$0xf]
  %v2178 = vld [vmem:[%s3 + $0x28c] sm:$0xf]
  %v2179 = vld [vmem:[%s3 + $0x290] sm:$0xf]
  %v2180 = vld [vmem:[%s3 + $0x294] sm:$0xf]
  %v2181 = vld [vmem:[%s3 + $0x298] sm:$0xf]
  %v2182 = vld [vmem:[%s3 + $0x29c] sm:$0xf]
  %v2183 = vld [vmem:[%s3 + $0x2a0] sm:$0xf]
  %v2184 = vld [vmem:[%s3 + $0x2a4] sm:$0xf]
  %v2185 = vld [vmem:[%s3 + $0x2a8] sm:$0xf]
  %v2186 = vld [vmem:[%s3 + $0x2ac] sm:$0xf]
  %v2187 = vld [vmem:[%s3 + $0x2b0] sm:$0xf]
  %v2188 = vld [vmem:[%s3 + $0x2b4] sm:$0xf]
  %v2189 = vld [vmem:[%s3 + $0x2b8] sm:$0xf]
  %v2190 = vld [vmem:[%s3 + $0x2bc] sm:$0xf]
  %v2207 = vunpack.c.l.b16 %v2175
  %v2208 = vunpack.c.l.b16 %v2176
  %v2209 = vunpack.c.l.b16 %v2177
  %v2210 = vunpack.c.l.b16 %v2178
  %v2211 = vunpack.c.l.b16 %v2179
  %v2212 = vunpack.c.l.b16 %v2180
  %v2213 = vunpack.c.l.b16 %v2181
  %v2214 = vunpack.c.l.b16 %v2182
  %v2215 = vunpack.c.l.b16 %v2183
  %v2216 = vunpack.c.l.b16 %v2184
  %v2217 = vunpack.c.l.b16 %v2185
  %v2218 = vunpack.c.l.b16 %v2186
  %v2219 = vunpack.c.l.b16 %v2187
  %v2220 = vunpack.c.l.b16 %v2188
  %v2221 = vunpack.c.l.b16 %v2189
  %v2222 = vunpack.c.l.b16 %v2190
  %v2223 = vpack.c.b16 %v2208, %v2207
  %v2224 = vpack.c.b16 %v2210, %v2209
  %v2225 = vpack.c.b16 %v2212, %v2211
  %v2226 = vpack.c.b16 %v2214, %v2213
  %v2227 = vpack.c.b16 %v2216, %v2215
  %v2228 = vpack.c.b16 %v2218, %v2217
  %v2229 = vpack.c.b16 %v2220, %v2219
  %v2230 = vpack.c.b16 %v2222, %v2221
  %2239 = vmatprep.subr.bf16.mxu0 0
  %2240 = vmatpush1.bf16.msra.mxu0 %v2223
  %2241 = vmatprep.subr.bf16.mxu0 0
  %2242 = vmatpush1.bf16.msra.mxu0 %v2224
  %2243 = vmatprep.subr.bf16.mxu0 0
  %2244 = vmatpush1.bf16.msra.mxu0 %v2225
  %2245 = vmatprep.subr.bf16.mxu0 0
  %2246 = vmatpush1.bf16.msra.mxu0 %v2226
  %2247 = vmatprep.subr.bf16.mxu0 0
  %2248 = vmatpush1.bf16.msra.mxu0 %v2227
  %2249 = vmatprep.subr.bf16.mxu0 0
  %2250 = vmatpush1.bf16.msra.mxu0 %v2228
  %2251 = vmatprep.subr.bf16.mxu0 0
  %2252 = vmatpush1.bf16.msra.mxu0 %v2229
  %2253 = vmatprep.subr.bf16.mxu0 0
  %2254 = vmatpush1.bf16.msra.mxu0 %v2230
  %2255 = vmatprep.subr.bf16.mxu0 0
  %2256 = vmatpush1.bf16.msra.mxu0 0
  %2257 = vmatprep.subr.bf16.mxu0 0
  %2258 = vmatpush1.bf16.msra.mxu0 0
  %2259 = vmatprep.subr.bf16.mxu0 0
  %2260 = vmatpush1.bf16.msra.mxu0 0
  %2261 = vmatprep.subr.bf16.mxu0 0
  %2262 = vmatpush1.bf16.msra.mxu0 0
  %2263 = vmatprep.subr.bf16.mxu0 0
  %2264 = vmatpush1.bf16.msra.mxu0 0
  %2265 = vmatprep.subr.bf16.mxu0 0
  %2266 = vmatpush1.bf16.msra.mxu0 0
  %2267 = vmatprep.subr.bf16.mxu0 0
  %2268 = vmatpush1.bf16.msra.mxu0 0
  %2269 = vmatprep.subr.bf16.mxu0 0
  %2270 = vmatpush1.bf16.msra.mxu0 0
  %2271 = vmatprep.mubr.bf16.mxu0 0
  %2272 = vmatmul.mubr.bf16.gmra.mrb[0].mxu0 %v2173
  %v2273 = vpop.f32.mrb[0].mxu0
  %v2274 = vadd.f32 0.0, %v2273
  %v2275 = vpop.f32.mrb[0].mxu0
  %v2276 = vpop.f32.mrb[0].mxu0
  %v2277 = vadd.f32 0.0, %v2276
  %v2278 = vpop.f32.mrb[0].mxu0
  %2279 = vmatprep.mubr.bf16.mxu0 0
  %2280 = vmatmul.mubr.bf16.gmra.mrb[0].mxu0 %v2174
  %v2281 = vpop.f32.mrb[0].mxu0
  %v2282 = vadd.f32 0.0, %v2281
  %v2283 = vpop.f32.mrb[0].mxu0
  %v2284 = vpop.f32.mrb[0].mxu0
  %v2285 = vadd.f32 0.0, %v2284
  %v2286 = vpop.f32.mrb[0].mxu0
  %2287 = vdwg.mxu0
  %v2288 = vld [vmem:[%s3 + $0x2c0] sm:$0xf]
  %v2289 = vld [vmem:[%s3 + $0x2c4] sm:$0xf]
  %v2290 = vld [vmem:[%s3 + $0x2c8] sm:$0xf]
  %v2291 = vld [vmem:[%s3 + $0x2cc] sm:$0xf]
  %v2292 = vld [vmem:[%s3 + $0x2d0] sm:$0xf]
  %v2293 = vld [vmem:[%s3 + $0x2d4] sm:$0xf]
  %v2294 = vld [vmem:[%s3 + $0x2d8] sm:$0xf]
  %v2295 = vld [vmem:[%s3 + $0x2dc] sm:$0xf]
  %v2296 = vld [vmem:[%s3 + $0x2e0] sm:$0xf]
  %v2297 = vld [vmem:[%s3 + $0x2e4] sm:$0xf]
  %v2298 = vld [vmem:[%s3 + $0x2e8] sm:$0xf]
  %v2299 = vld [vmem:[%s3 + $0x2ec] sm:$0xf]
  %v2300 = vld [vmem:[%s3 + $0x2f0] sm:$0xf]
  %v2301 = vld [vmem:[%s3 + $0x2f4] sm:$0xf]
  %v2302 = vld [vmem:[%s3 + $0x2f8] sm:$0xf]
  %v2303 = vld [vmem:[%s3 + $0x2fc] sm:$0xf]
  %v2320 = vunpack.c.l.b16 %v2288
  %v2321 = vunpack.c.l.b16 %v2289
  %v2322 = vunpack.c.l.b16 %v2290
  %v2323 = vunpack.c.l.b16 %v2291
  %v2324 = vunpack.c.l.b16 %v2292
  %v2325 = vunpack.c.l.b16 %v2293
  %v2326 = vunpack.c.l.b16 %v2294
  %v2327 = vunpack.c.l.b16 %v2295
  %v2328 = vunpack.c.l.b16 %v2296
  %v2329 = vunpack.c.l.b16 %v2297
  %v2330 = vunpack.c.l.b16 %v2298
  %v2331 = vunpack.c.l.b16 %v2299
  %v2332 = vunpack.c.l.b16 %v2300
  %v2333 = vunpack.c.l.b16 %v2301
  %v2334 = vunpack.c.l.b16 %v2302
  %v2335 = vunpack.c.l.b16 %v2303
  %v2336 = vpack.c.b16 %v2321, %v2320
  %v2337 = vpack.c.b16 %v2323, %v2322
  %v2338 = vpack.c.b16 %v2325, %v2324
  %v2339 = vpack.c.b16 %v2327, %v2326
  %v2340 = vpack.c.b16 %v2329, %v2328
  %v2341 = vpack.c.b16 %v2331, %v2330
  %v2342 = vpack.c.b16 %v2333, %v2332
  %v2343 = vpack.c.b16 %v2335, %v2334
  %2352 = vmatprep.subr.bf16.mxu0 0
  %2353 = vmatpush1.bf16.msra.mxu0 %v2336
  %2354 = vmatprep.subr.bf16.mxu0 0
  %2355 = vmatpush1.bf16.msra.mxu0 %v2337
  %2356 = vmatprep.subr.bf16.mxu0 0
  %2357 = vmatpush1.bf16.msra.mxu0 %v2338
  %2358 = vmatprep.subr.bf16.mxu0 0
  %2359 = vmatpush1.bf16.msra.mxu0 %v2339
  %2360 = vmatprep.subr.bf16.mxu0 0
  %2361 = vmatpush1.bf16.msra.mxu0 %v2340
  %2362 = vmatprep.subr.bf16.mxu0 0
  %2363 = vmatpush1.bf16.msra.mxu0 %v2341
  %2364 = vmatprep.subr.bf16.mxu0 0
  %2365 = vmatpush1.bf16.msra.mxu0 %v2342
  %2366 = vmatprep.subr.bf16.mxu0 0
  %2367 = vmatpush1.bf16.msra.mxu0 %v2343
  %2368 = vmatprep.subr.bf16.mxu0 0
  %2369 = vmatpush1.bf16.msra.mxu0 0
  %2370 = vmatprep.subr.bf16.mxu0 0
  %2371 = vmatpush1.bf16.msra.mxu0 0
  %2372 = vmatprep.subr.bf16.mxu0 0
  %2373 = vmatpush1.bf16.msra.mxu0 0
  %2374 = vmatprep.subr.bf16.mxu0 0
  %2375 = vmatpush1.bf16.msra.mxu0 0
  %2376 = vmatprep.subr.bf16.mxu0 0
  %2377 = vmatpush1.bf16.msra.mxu0 0
  %2378 = vmatprep.subr.bf16.mxu0 0
  %2379 = vmatpush1.bf16.msra.mxu0 0
  %2380 = vmatprep.subr.bf16.mxu0 0
  %2381 = vmatpush1.bf16.msra.mxu0 0
  %2382 = vmatprep.subr.bf16.mxu0 0
  %2383 = vmatpush1.bf16.msra.mxu0 0
  %2384 = vmatprep.mubr.bf16.mxu0 0
  %2385 = vmatmul.mubr.bf16.gmra.mrb[0].mxu0 %v2173
  %v2386 = vpop.f32.mrb[0].mxu0
  %v2387 = vadd.f32 0.0, %v2386
  %v2388 = vpop.f32.mrb[0].mxu0
  %v2389 = vpop.f32.mrb[0].mxu0
  %v2390 = vadd.f32 0.0, %v2389
  %v2391 = vpop.f32.mrb[0].mxu0
  %2392 = vmatprep.mubr.bf16.mxu0 0
  %2393 = vmatmul.mubr.bf16.gmra.mrb[0].mxu0 %v2174
  %v2394 = vpop.f32.mrb[0].mxu0
  %v2395 = vadd.f32 0.0, %v2394
  %v2396 = vpop.f32.mrb[0].mxu0
  %v2397 = vpop.f32.mrb[0].mxu0
  %v2398 = vadd.f32 0.0, %v2397
  %v2399 = vpop.f32.mrb[0].mxu0
  %2400 = vdwg.mxu0
  %v2401 = vld [vmem:[%s3 + $0x300] sm:$0xf]
  %v2402 = vld [vmem:[%s3 + $0x304] sm:$0xf]
  %v2403 = vld [vmem:[%s3 + $0x308] sm:$0xf]
  %v2404 = vld [vmem:[%s3 + $0x30c] sm:$0xf]
  %v2405 = vld [vmem:[%s3 + $0x310] sm:$0xf]
  %v2406 = vld [vmem:[%s3 + $0x314] sm:$0xf]
  %v2407 = vld [vmem:[%s3 + $0x318] sm:$0xf]
  %v2408 = vld [vmem:[%s3 + $0x31c] sm:$0xf]
  %v2409 = vld [vmem:[%s3 + $0x320] sm:$0xf]
  %v2410 = vld [vmem:[%s3 + $0x324] sm:$0xf]
  %v2411 = vld [vmem:[%s3 + $0x328] sm:$0xf]
  %v2412 = vld [vmem:[%s3 + $0x32c] sm:$0xf]
  %v2413 = vld [vmem:[%s3 + $0x330] sm:$0xf]
  %v2414 = vld [vmem:[%s3 + $0x334] sm:$0xf]
  %v2415 = vld [vmem:[%s3 + $0x338] sm:$0xf]
  %v2416 = vld [vmem:[%s3 + $0x33c] sm:$0xf]
  %v2433 = vunpack.c.l.b16 %v2401
  %v2434 = vunpack.c.l.b16 %v2402
  %v2435 = vunpack.c.l.b16 %v2403
  %v2436 = vunpack.c.l.b16 %v2404
  %v2437 = vunpack.c.l.b16 %v2405
  %v2438 = vunpack.c.l.b16 %v2406
  %v2439 = vunpack.c.l.b16 %v2407
  %v2440 = vunpack.c.l.b16 %v2408
  %v2441 = vunpack.c.l.b16 %v2409
  %v2442 = vunpack.c.l.b16 %v2410
  %v2443 = vunpack.c.l.b16 %v2411
  %v2444 = vunpack.c.l.b16 %v2412
  %v2445 = vunpack.c.l.b16 %v2413
  %v2446 = vunpack.c.l.b16 %v2414
  %v2447 = vunpack.c.l.b16 %v2415
  %v2448 = vunpack.c.l.b16 %v2416
  %v2449 = vpack.c.b16 %v2434, %v2433
  %v2450 = vpack.c.b16 %v2436, %v2435
  %v2451 = vpack.c.b16 %v2438, %v2437
  %v2452 = vpack.c.b16 %v2440, %v2439
  %v2453 = vpack.c.b16 %v2442, %v2441
  %v2454 = vpack.c.b16 %v2444, %v2443
  %v2455 = vpack.c.b16 %v2446, %v2445
  %v2456 = vpack.c.b16 %v2448, %v2447
  %2465 = vmatprep.subr.bf16.mxu0 0
  %2466 = vmatpush1.bf16.msra.mxu0 %v2449
  %2467 = vmatprep.subr.bf16.mxu0 0
  %2468 = vmatpush1.bf16.msra.mxu0 %v2450
  %2469 = vmatprep.subr.bf16.mxu0 0
  %2470 = vmatpush1.bf16.msra.mxu0 %v2451
  %2471 = vmatprep.subr.bf16.mxu0 0
  %2472 = vmatpush1.bf16.msra.mxu0 %v2452
  %2473 = vmatprep.subr.bf16.mxu0 0
  %2474 = vmatpush1.bf16.msra.mxu0 %v2453
  %2475 = vmatprep.subr.bf16.mxu0 0
  %2476 = vmatpush1.bf16.msra.mxu0 %v2454
  %2477 = vmatprep.subr.bf16.mxu0 0
  %2478 = vmatpush1.bf16.msra.mxu0 %v2455
  %2479 = vmatprep.subr.bf16.mxu0 0
  %2480 = vmatpush1.bf16.msra.mxu0 %v2456
  %2481 = vmatprep.subr.bf16.mxu0 0
  %2482 = vmatpush1.bf16.msra.mxu0 0
  %2483 = vmatprep.subr.bf16.mxu0 0
  %2484 = vmatpush1.bf16.msra.mxu0 0
  %2485 = vmatprep.subr.bf16.mxu0 0
  %2486 = vmatpush1.bf16.msra.mxu0 0
  %2487 = vmatprep.subr.bf16.mxu0 0
  %2488 = vmatpush1.bf16.msra.mxu0 0
  %2489 = vmatprep.subr.bf16.mxu0 0
  %2490 = vmatpush1.bf16.msra.mxu0 0
  %2491 = vmatprep.subr.bf16.mxu0 0
  %2492 = vmatpush1.bf16.msra.mxu0 0
  %2493 = vmatprep.subr.bf16.mxu0 0
  %2494 = vmatpush1.bf16.msra.mxu0 0
  %2495 = vmatprep.subr.bf16.mxu0 0
  %2496 = vmatpush1.bf16.msra.mxu0 0
  %2497 = vmatprep.mubr.bf16.mxu0 0
  %2498 = vmatmul.mubr.bf16.gmra.mrb[0].mxu0 %v2173
  %v2499 = vpop.f32.mrb[0].mxu0
  %v2500 = vadd.f32 0.0, %v2499
  %v2501 = vpop.f32.mrb[0].mxu0
  %v2502 = vpop.f32.mrb[0].mxu0
  %v2503 = vadd.f32 0.0, %v2502
  %v2504 = vpop.f32.mrb[0].mxu0
  %2505 = vmatprep.mubr.bf16.mxu0 0
  %2506 = vmatmul.mubr.bf16.gmra.mrb[0].mxu0 %v2174
  %v2507 = vpop.f32.mrb[0].mxu0
  %v2508 = vadd.f32 0.0, %v2507
  %v2509 = vpop.f32.mrb[0].mxu0
  %v2510 = vpop.f32.mrb[0].mxu0
  %v2511 = vadd.f32 0.0, %v2510
  %v2512 = vpop.f32.mrb[0].mxu0
  %2513 = vdwg.mxu0
  %2514 = vmatprep.subr.mxu0 0.0
  %2515 = vmatpush1.msra.mxu0 %v2274
  %2516 = vmatprep.subr.mxu0 0.0
  %2517 = vmatpush1.msra.mxu0 %v2277
  %2518 = vmatprep.subr.mxu0 0.0
  %2519 = vmatpush1.msra.mxu0 %v2282
  %2520 = vmatprep.subr.mxu0 0.0
  %2521 = vmatpush1.msra.mxu0 %v2285
  %2522 = vmatprep.subr.mxu0 0.0
  %2523 = vmatpush1.msra.mxu0 0.0
  %2524 = vmatprep.subr.mxu0 0.0
  %2525 = vmatpush1.msra.mxu0 0.0
  %2526 = vmatprep.subr.mxu0 0.0
  %2527 = vmatpush1.msra.mxu0 0.0
  %2528 = vmatprep.subr.mxu0 0.0
  %2529 = vmatpush1.msra.mxu0 0.0
  %2530 = vmatprep.subr.mxu0 0.0
  %2531 = vmatpush1.msra.mxu0 0.0
  %2532 = vmatprep.subr.mxu0 0.0
  %2533 = vmatpush1.msra.mxu0 0.0
  %2534 = vmatprep.subr.mxu0 0.0
  %2535 = vmatpush1.msra.mxu0 0.0
  %2536 = vmatprep.subr.mxu0 0.0
  %2537 = vmatpush1.msra.mxu0 0.0
  %2538 = vmatprep.subr.mxu0 0.0
  %2539 = vmatpush1.msra.mxu0 0.0
  %2540 = vmatprep.subr.mxu0 0.0
  %2541 = vmatpush1.msra.mxu0 0.0
  %2542 = vmatprep.subr.mxu0 0.0
  %2543 = vmatpush1.msra.mxu0 0.0
  %2544 = vmatprep.subr.mxu0 0.0
  %2545 = vmatpush1.msra.mxu0 0.0
  %2546 = vmatprep.subr.mxu0 0.0
  %2547 = vmatpush1.msra.mxu0 0.0
  %2548 = vmatprep.subr.mxu0 0.0
  %2549 = vmatpush1.msra.mxu0 0.0
  %2550 = vmatprep.subr.mxu0 0.0
  %2551 = vmatpush1.msra.mxu0 0.0
  %2552 = vmatprep.subr.mxu0 0.0
  %2553 = vmatpush1.msra.mxu0 0.0
  %2554 = vmatprep.subr.mxu0 0.0
  %2555 = vmatpush1.msra.mxu0 0.0
  %2556 = vmatprep.subr.mxu0 0.0
  %2557 = vmatpush1.msra.mxu0 0.0
  %2558 = vmatprep.subr.mxu0 0.0
  %2559 = vmatpush1.msra.mxu0 0.0
  %2560 = vmatprep.subr.mxu0 0.0
  %2561 = vmatpush1.msra.mxu0 0.0
  %2562 = vmatprep.subr.mxu0 0.0
  %2563 = vmatpush1.msra.mxu0 0.0
  %2564 = vmatprep.subr.mxu0 0.0
  %2565 = vmatpush1.msra.mxu0 0.0
  %2566 = vmatprep.subr.mxu0 0.0
  %2567 = vmatpush1.msra.mxu0 0.0
  %2568 = vmatprep.subr.mxu0 0.0
  %2569 = vmatpush1.msra.mxu0 0.0
  %2570 = vmatprep.subr.mxu0 0.0
  %2571 = vmatpush1.msra.mxu0 0.0
  %2572 = vmatprep.subr.mxu0 0.0
  %2573 = vmatpush1.msra.mxu0 0.0
  %2574 = vmatprep.subr.mxu0 0.0
  %2575 = vmatpush1.msra.mxu0 0.0
  %2576 = vmatprep.subr.mxu0 0.0
  %2577 = vmatpush1.msra.mxu0 0.0
  %2578 = vmatprep.mubr.f32.mxu0 0.0
  %2579 = vmatmul.mubr.f32.gmra.mrb[0].mxu0 %v469
  %v2580 = vpop.f32.mrb[0].mxu0
  %v2581 = vadd.f32 %v2387, %v2580
  %v2582 = vpop.f32.mrb[0].mxu0
  %2583 = vmatprep.mubr.f32.mxu0 0.0
  %2584 = vmatmul.mubr.f32.gmra.mrb[0].mxu0 %v472
  %v2585 = vpop.f32.mrb[0].mxu0
  %v2586 = vadd.f32 %v2390, %v2585
  %v2587 = vpop.f32.mrb[0].mxu0
  %2588 = vmatprep.mubr.f32.mxu0 0.0
  %2589 = vmatmul.mubr.f32.gmra.mrb[0].mxu0 %v475
  %v2590 = vpop.f32.mrb[0].mxu0
  %v2591 = vadd.f32 %v2395, %v2590
  %v2592 = vpop.f32.mrb[0].mxu0
  %2593 = vmatprep.mubr.f32.mxu0 0.0
  %2594 = vmatmul.mubr.f32.gmra.mrb[0].mxu0 %v478
  %v2595 = vpop.f32.mrb[0].mxu0
  %v2596 = vadd.f32 %v2398, %v2595
  %v2597 = vpop.f32.mrb[0].mxu0
  %2598 = vdwg.mxu0
  %2599 = vmatprep.subr.mxu0 0.0
  %2600 = vmatpush1.msra.mxu0 %v2500
  %2601 = vmatprep.subr.mxu0 0.0
  %2602 = vmatpush1.msra.mxu0 %v2503
  %2603 = vmatprep.subr.mxu0 0.0
  %2604 = vmatpush1.msra.mxu0 %v2508
  %2605 = vmatprep.subr.mxu0 0.0
  %2606 = vmatpush1.msra.mxu0 %v2511
  %2607 = vmatprep.subr.mxu0 0.0
  %2608 = vmatpush1.msra.mxu0 0.0
  %2609 = vmatprep.subr.mxu0 0.0
  %2610 = vmatpush1.msra.mxu0 0.0
  %2611 = vmatprep.subr.mxu0 0.0
  %2612 = vmatpush1.msra.mxu0 0.0
  %2613 = vmatprep.subr.mxu0 0.0
  %2614 = vmatpush1.msra.mxu0 0.0
  %2615 = vmatprep.subr.mxu0 0.0
  %2616 = vmatpush1.msra.mxu0 0.0
  %2617 = vmatprep.subr.mxu0 0.0
  %2618 = vmatpush1.msra.mxu0 0.0
  %2619 = vmatprep.subr.mxu0 0.0
  %2620 = vmatpush1.msra.mxu0 0.0
  %2621 = vmatprep.subr.mxu0 0.0
  %2622 = vmatpush1.msra.mxu0 0.0
  %2623 = vmatprep.subr.mxu0 0.0
  %2624 = vmatpush1.msra.mxu0 0.0
  %2625 = vmatprep.subr.mxu0 0.0
  %2626 = vmatpush1.msra.mxu0 0.0
  %2627 = vmatprep.subr.mxu0 0.0
  %2628 = vmatpush1.msra.mxu0 0.0
  %2629 = vmatprep.subr.mxu0 0.0
  %2630 = vmatpush1.msra.mxu0 0.0
  %2631 = vmatprep.subr.mxu0 0.0
  %2632 = vmatpush1.msra.mxu0 0.0
  %2633 = vmatprep.subr.mxu0 0.0
  %2634 = vmatpush1.msra.mxu0 0.0
  %2635 = vmatprep.subr.mxu0 0.0
  %2636 = vmatpush1.msra.mxu0 0.0
  %2637 = vmatprep.subr.mxu0 0.0
  %2638 = vmatpush1.msra.mxu0 0.0
  %2639 = vmatprep.subr.mxu0 0.0
  %2640 = vmatpush1.msra.mxu0 0.0
  %2641 = vmatprep.subr.mxu0 0.0
  %2642 = vmatpush1.msra.mxu0 0.0
  %2643 = vmatprep.subr.mxu0 0.0
  %2644 = vmatpush1.msra.mxu0 0.0
  %2645 = vmatprep.subr.mxu0 0.0
  %2646 = vmatpush1.msra.mxu0 0.0
  %2647 = vmatprep.subr.mxu0 0.0
  %2648 = vmatpush1.msra.mxu0 0.0
  %2649 = vmatprep.subr.mxu0 0.0
  %2650 = vmatpush1.msra.mxu0 0.0
  %2651 = vmatprep.subr.mxu0 0.0
  %2652 = vmatpush1.msra.mxu0 0.0
  %2653 = vmatprep.subr.mxu0 0.0
  %2654 = vmatpush1.msra.mxu0 0.0
  %2655 = vmatprep.subr.mxu0 0.0
  %2656 = vmatpush1.msra.mxu0 0.0
  %2657 = vmatprep.subr.mxu0 0.0
  %2658 = vmatpush1.msra.mxu0 0.0
  %2659 = vmatprep.subr.mxu0 0.0
  %2660 = vmatpush1.msra.mxu0 0.0
  %2661 = vmatprep.subr.mxu0 0.0
  %2662 = vmatpush1.msra.mxu0 0.0
  %2663 = vmatprep.mubr.f32.mxu0 0.0
  %2664 = vmatmul.mubr.f32.gmra.mrb[0].mxu0 %v566
  %v2665 = vpop.f32.mrb[0].mxu0
  %v2666 = vadd.f32 0.0, %v2665
  %v2667 = vpop.f32.mrb[0].mxu0
  %2668 = vmatprep.mubr.f32.mxu0 0.0
  %2669 = vmatmul.mubr.f32.gmra.mrb[0].mxu0 %v569
  %v2670 = vpop.f32.mrb[0].mxu0
  %v2671 = vadd.f32 0.0, %v2670
  %v2672 = vpop.f32.mrb[0].mxu0
  %2673 = vmatprep.mubr.f32.mxu0 0.0
  %2674 = vmatmul.mubr.f32.gmra.mrb[0].mxu0 %v572
  %v2675 = vpop.f32.mrb[0].mxu0
  %v2676 = vadd.f32 0.0, %v2675
  %v2677 = vpop.f32.mrb[0].mxu0
  %2678 = vmatprep.mubr.f32.mxu0 0.0
  %2679 = vmatmul.mubr.f32.gmra.mrb[0].mxu0 %v575
  %v2680 = vpop.f32.mrb[0].mxu0
  %v2681 = vadd.f32 0.0, %v2680
  %v2682 = vpop.f32.mrb[0].mxu0
  %2683 = vdwg.mxu0
  %v2684 = vadd.f32 %v2581, %v2666
  %v2685 = vadd.f32 %v2586, %v2671
  %v2686 = vadd.f32 %v2591, %v2676
  %v2687 = vadd.f32 %v2596, %v2681
  %v2688 = vadd.f32 %v2129, %v2134
  %v2689 = vadd.f32 %v2688, %v2139
  %v2690 = vadd.f32 %v2689, %v2144
  %v2691 = vrot.slane %v2690, 4
  %v2692 = vadd.f32 %v2690, %v2691
  %v2693 = vrot.slane %v2692, 2
  %v2694 = vadd.f32 %v2692, %v2693
  %v2695 = vrot.slane %v2694, 1
  %v2696 = vadd.f32 %v2694, %v2695
  %v2697 = vmul.f32 %v2129, %v2129
  %v2698 = vmul.f32 %v2134, %v2134
  %v2699 = vmul.f32 %v2139, %v2139
  %v2700 = vmul.f32 %v2144, %v2144
  %v2701 = vadd.f32 %v2697, %v2698
  %v2702 = vadd.f32 %v2701, %v2699
  %v2703 = vadd.f32 %v2702, %v2700
  %v2704 = vrot.slane %v2703, 4
  %v2705 = vadd.f32 %v2703, %v2704
  %v2706 = vrot.slane %v2705, 2
  %v2707 = vadd.f32 %v2705, %v2706
  %v2708 = vrot.slane %v2707, 1
  %v2709 = vadd.f32 %v2707, %v2708
  %2710 = vrot.lane.b32.xlu0 %v2696, 8
  %v2711 = vpop.permute.xlu0 %2710
  %v2712 = vadd.f32 %v2696, %v2711
  %2713 = vrot.lane.b32.xlu0 %v2709, 8
  %v2714 = vpop.permute.xlu0 %2713
  %v2715 = vadd.f32 %v2709, %v2714
  %2716 = vrot.lane.b32.xlu0 %v2712, 16
  %v2717 = vpop.permute.xlu0 %2716
  %v2718 = vadd.f32 %v2712, %v2717
  %2719 = vrot.lane.b32.xlu0 %v2715, 16
  %v2720 = vpop.permute.xlu0 %2719
  %v2721 = vadd.f32 %v2715, %v2720
  %2722 = vrot.lane.b32.xlu0 %v2718, 32
  %v2723 = vpop.permute.xlu0 %2722
  %v2724 = vadd.f32 %v2718, %v2723
  %2725 = vrot.lane.b32.xlu0 %v2721, 32
  %v2726 = vpop.permute.xlu0 %2725
  %v2727 = vadd.f32 %v2721, %v2726
  %2728 = vrot.lane.b32.xlu0 %v2724, 64
  %v2729 = vpop.permute.xlu0 %2728
  %v2730 = vadd.f32 %v2724, %v2729
  %2731 = vrot.lane.b32.xlu0 %v2727, 64
  %v2732 = vpop.permute.xlu0 %2731
  %v2733 = vadd.f32 %v2727, %v2732
  %v2734 = vmul.f32 %v2730, 0.001953125
  %v2735 = vmul.f32 %v2733, 0.001953125
  %v2736 = vmul.f32 %v2734, %v2734
  %v2737 = vsub.f32 %v2735, %v2736
  %v2738 = vadd.f32 %v2737, 0.0001
  %v2739 = vrsqrt.pop %v2738
  %v2741 = vrot.slane %v19, 2
  %v2743 = vmul.f32 %v2739, %v2741
  %v2744 = vmul.f32 %v2734, %v2743
  %v2746 = vrot.slane %v2744, 5
  %v2748 = vsub.f32 %v19, %v2746
  %v2749 = vlaneseq
  %v2750 = vshrl.u32 %v2749, 7
  %v2751 = vsub.s32 0, %v2750
  %v2752 = vrot.slane %v2743, %v2751
  %v2753 = vmul.f32 %v2129, %v2752
  %v2754 = vmul.f32 %v2134, %v2752
  %v2755 = vmul.f32 %v2139, %v2752
  %v2756 = vmul.f32 %v2144, %v2752
  %v2757 = vlaneseq
  %v2758 = vshrl.u32 %v2757, 7
  %v2759 = vsub.s32 3, %v2758
  %v2760 = vrot.slane %v2748, %v2759
  %v2761 = vadd.f32 %v2753, %v2760
  %v2762 = vadd.f32 %v2754, %v2760
  %v2763 = vadd.f32 %v2755, %v2760
  %v2764 = vadd.f32 %v2756, %v2760
  %v2765 = vmax.f32 %v2761, 0.0
  %v2766 = vmax.f32 %v2762, 0.0
  %v2767 = vmax.f32 %v2763, 0.0
  %v2768 = vmax.f32 %v2764, 0.0
  %v2769 = vpack.c.bf16 %v2766, %v2765
  %v2770 = vpack.c.bf16 %v2768, %v2767
  %v2771 = vld [vmem:[%s3 + $0x340] sm:$0xf]
  %v2772 = vld [vmem:[%s3 + $0x344] sm:$0xf]
  %v2773 = vld [vmem:[%s3 + $0x348] sm:$0xf]
  %v2774 = vld [vmem:[%s3 + $0x34c] sm:$0xf]
  %v2775 = vld [vmem:[%s3 + $0x350] sm:$0xf]
  %v2776 = vld [vmem:[%s3 + $0x354] sm:$0xf]
  %v2777 = vld [vmem:[%s3 + $0x358] sm:$0xf]
  %v2778 = vld [vmem:[%s3 + $0x35c] sm:$0xf]
  %v2779 = vld [vmem:[%s3 + $0x360] sm:$0xf]
  %v2780 = vld [vmem:[%s3 + $0x364] sm:$0xf]
  %v2781 = vld [vmem:[%s3 + $0x368] sm:$0xf]
  %v2782 = vld [vmem:[%s3 + $0x36c] sm:$0xf]
  %v2783 = vld [vmem:[%s3 + $0x370] sm:$0xf]
  %v2784 = vld [vmem:[%s3 + $0x374] sm:$0xf]
  %v2785 = vld [vmem:[%s3 + $0x378] sm:$0xf]
  %v2786 = vld [vmem:[%s3 + $0x37c] sm:$0xf]
  %v2803 = vunpack.c.l.b16 %v2771
  %v2804 = vunpack.c.l.b16 %v2772
  %v2805 = vunpack.c.l.b16 %v2773
  %v2806 = vunpack.c.l.b16 %v2774
  %v2807 = vunpack.c.l.b16 %v2775
  %v2808 = vunpack.c.l.b16 %v2776
  %v2809 = vunpack.c.l.b16 %v2777
  %v2810 = vunpack.c.l.b16 %v2778
  %v2811 = vunpack.c.l.b16 %v2779
  %v2812 = vunpack.c.l.b16 %v2780
  %v2813 = vunpack.c.l.b16 %v2781
  %v2814 = vunpack.c.l.b16 %v2782
  %v2815 = vunpack.c.l.b16 %v2783
  %v2816 = vunpack.c.l.b16 %v2784
  %v2817 = vunpack.c.l.b16 %v2785
  %v2818 = vunpack.c.l.b16 %v2786
  %v2819 = vpack.c.b16 %v2804, %v2803
  %v2820 = vpack.c.b16 %v2806, %v2805
  %v2821 = vpack.c.b16 %v2808, %v2807
  %v2822 = vpack.c.b16 %v2810, %v2809
  %v2823 = vpack.c.b16 %v2812, %v2811
  %v2824 = vpack.c.b16 %v2814, %v2813
  %v2825 = vpack.c.b16 %v2816, %v2815
  %v2826 = vpack.c.b16 %v2818, %v2817
  %2835 = vmatprep.subr.bf16.mxu0 0
  %2836 = vmatpush1.bf16.msra.mxu0 %v2819
  %2837 = vmatprep.subr.bf16.mxu0 0
  %2838 = vmatpush1.bf16.msra.mxu0 %v2820
  %2839 = vmatprep.subr.bf16.mxu0 0
  %2840 = vmatpush1.bf16.msra.mxu0 %v2821
  %2841 = vmatprep.subr.bf16.mxu0 0
  %2842 = vmatpush1.bf16.msra.mxu0 %v2822
  %2843 = vmatprep.subr.bf16.mxu0 0
  %2844 = vmatpush1.bf16.msra.mxu0 %v2823
  %2845 = vmatprep.subr.bf16.mxu0 0
  %2846 = vmatpush1.bf16.msra.mxu0 %v2824
  %2847 = vmatprep.subr.bf16.mxu0 0
  %2848 = vmatpush1.bf16.msra.mxu0 %v2825
  %2849 = vmatprep.subr.bf16.mxu0 0
  %2850 = vmatpush1.bf16.msra.mxu0 %v2826
  %2851 = vmatprep.subr.bf16.mxu0 0
  %2852 = vmatpush1.bf16.msra.mxu0 0
  %2853 = vmatprep.subr.bf16.mxu0 0
  %2854 = vmatpush1.bf16.msra.mxu0 0
  %2855 = vmatprep.subr.bf16.mxu0 0
  %2856 = vmatpush1.bf16.msra.mxu0 0
  %2857 = vmatprep.subr.bf16.mxu0 0
  %2858 = vmatpush1.bf16.msra.mxu0 0
  %2859 = vmatprep.subr.bf16.mxu0 0
  %2860 = vmatpush1.bf16.msra.mxu0 0
  %2861 = vmatprep.subr.bf16.mxu0 0
  %2862 = vmatpush1.bf16.msra.mxu0 0
  %2863 = vmatprep.subr.bf16.mxu0 0
  %2864 = vmatpush1.bf16.msra.mxu0 0
  %2865 = vmatprep.subr.bf16.mxu0 0
  %2866 = vmatpush1.bf16.msra.mxu0 0
  %2867 = vmatprep.mubr.bf16.mxu0 0
  %2868 = vmatmul.mubr.bf16.gmra.mrb[0].mxu0 %v2769
  %v2869 = vpop.f32.mrb[0].mxu0
  %v2870 = vadd.f32 0.0, %v2869
  %v2871 = vpop.f32.mrb[0].mxu0
  %v2872 = vpop.f32.mrb[0].mxu0
  %v2873 = vadd.f32 0.0, %v2872
  %v2874 = vpop.f32.mrb[0].mxu0
  %2875 = vmatprep.mubr.bf16.mxu0 0
  %2876 = vmatmul.mubr.bf16.gmra.mrb[0].mxu0 %v2770
  %v2877 = vpop.f32.mrb[0].mxu0
  %v2878 = vadd.f32 0.0, %v2877
  %v2879 = vpop.f32.mrb[0].mxu0
  %v2880 = vpop.f32.mrb[0].mxu0
  %v2881 = vadd.f32 0.0, %v2880
  %v2882 = vpop.f32.mrb[0].mxu0
  %2883 = vdwg.mxu0
  %v2884 = vld [vmem:[%s3 + $0x380] sm:$0xf]
  %v2885 = vld [vmem:[%s3 + $0x384] sm:$0xf]
  %v2886 = vld [vmem:[%s3 + $0x388] sm:$0xf]
  %v2887 = vld [vmem:[%s3 + $0x38c] sm:$0xf]
  %v2888 = vld [vmem:[%s3 + $0x390] sm:$0xf]
  %v2889 = vld [vmem:[%s3 + $0x394] sm:$0xf]
  %v2890 = vld [vmem:[%s3 + $0x398] sm:$0xf]
  %v2891 = vld [vmem:[%s3 + $0x39c] sm:$0xf]
  %v2892 = vld [vmem:[%s3 + $0x3a0] sm:$0xf]
  %v2893 = vld [vmem:[%s3 + $0x3a4] sm:$0xf]
  %v2894 = vld [vmem:[%s3 + $0x3a8] sm:$0xf]
  %v2895 = vld [vmem:[%s3 + $0x3ac] sm:$0xf]
  %v2896 = vld [vmem:[%s3 + $0x3b0] sm:$0xf]
  %v2897 = vld [vmem:[%s3 + $0x3b4] sm:$0xf]
  %v2898 = vld [vmem:[%s3 + $0x3b8] sm:$0xf]
  %v2899 = vld [vmem:[%s3 + $0x3bc] sm:$0xf]
  %v2916 = vunpack.c.l.b16 %v2884
  %v2917 = vunpack.c.l.b16 %v2885
  %v2918 = vunpack.c.l.b16 %v2886
  %v2919 = vunpack.c.l.b16 %v2887
  %v2920 = vunpack.c.l.b16 %v2888
  %v2921 = vunpack.c.l.b16 %v2889
  %v2922 = vunpack.c.l.b16 %v2890
  %v2923 = vunpack.c.l.b16 %v2891
  %v2924 = vunpack.c.l.b16 %v2892
  %v2925 = vunpack.c.l.b16 %v2893
  %v2926 = vunpack.c.l.b16 %v2894
  %v2927 = vunpack.c.l.b16 %v2895
  %v2928 = vunpack.c.l.b16 %v2896
  %v2929 = vunpack.c.l.b16 %v2897
  %v2930 = vunpack.c.l.b16 %v2898
  %v2931 = vunpack.c.l.b16 %v2899
  %v2932 = vpack.c.b16 %v2917, %v2916
  %v2933 = vpack.c.b16 %v2919, %v2918
  %v2934 = vpack.c.b16 %v2921, %v2920
  %v2935 = vpack.c.b16 %v2923, %v2922
  %v2936 = vpack.c.b16 %v2925, %v2924
  %v2937 = vpack.c.b16 %v2927, %v2926
  %v2938 = vpack.c.b16 %v2929, %v2928
  %v2939 = vpack.c.b16 %v2931, %v2930
  %2948 = vmatprep.subr.bf16.mxu0 0
  %2949 = vmatpush1.bf16.msra.mxu0 %v2932
  %2950 = vmatprep.subr.bf16.mxu0 0
  %2951 = vmatpush1.bf16.msra.mxu0 %v2933
  %2952 = vmatprep.subr.bf16.mxu0 0
  %2953 = vmatpush1.bf16.msra.mxu0 %v2934
  %2954 = vmatprep.subr.bf16.mxu0 0
  %2955 = vmatpush1.bf16.msra.mxu0 %v2935
  %2956 = vmatprep.subr.bf16.mxu0 0
  %2957 = vmatpush1.bf16.msra.mxu0 %v2936
  %2958 = vmatprep.subr.bf16.mxu0 0
  %2959 = vmatpush1.bf16.msra.mxu0 %v2937
  %2960 = vmatprep.subr.bf16.mxu0 0
  %2961 = vmatpush1.bf16.msra.mxu0 %v2938
  %2962 = vmatprep.subr.bf16.mxu0 0
  %2963 = vmatpush1.bf16.msra.mxu0 %v2939
  %2964 = vmatprep.subr.bf16.mxu0 0
  %2965 = vmatpush1.bf16.msra.mxu0 0
  %2966 = vmatprep.subr.bf16.mxu0 0
  %2967 = vmatpush1.bf16.msra.mxu0 0
  %2968 = vmatprep.subr.bf16.mxu0 0
  %2969 = vmatpush1.bf16.msra.mxu0 0
  %2970 = vmatprep.subr.bf16.mxu0 0
  %2971 = vmatpush1.bf16.msra.mxu0 0
  %2972 = vmatprep.subr.bf16.mxu0 0
  %2973 = vmatpush1.bf16.msra.mxu0 0
  %2974 = vmatprep.subr.bf16.mxu0 0
  %2975 = vmatpush1.bf16.msra.mxu0 0
  %2976 = vmatprep.subr.bf16.mxu0 0
  %2977 = vmatpush1.bf16.msra.mxu0 0
  %2978 = vmatprep.subr.bf16.mxu0 0
  %2979 = vmatpush1.bf16.msra.mxu0 0
  %2980 = vmatprep.mubr.bf16.mxu0 0
  %2981 = vmatmul.mubr.bf16.gmra.mrb[0].mxu0 %v2769
  %v2982 = vpop.f32.mrb[0].mxu0
  %v2983 = vadd.f32 0.0, %v2982
  %v2984 = vpop.f32.mrb[0].mxu0
  %v2985 = vpop.f32.mrb[0].mxu0
  %v2986 = vadd.f32 0.0, %v2985
  %v2987 = vpop.f32.mrb[0].mxu0
  %2988 = vmatprep.mubr.bf16.mxu0 0
  %2989 = vmatmul.mubr.bf16.gmra.mrb[0].mxu0 %v2770
  %v2990 = vpop.f32.mrb[0].mxu0
  %v2991 = vadd.f32 0.0, %v2990
  %v2992 = vpop.f32.mrb[0].mxu0
  %v2993 = vpop.f32.mrb[0].mxu0
  %v2994 = vadd.f32 0.0, %v2993
  %v2995 = vpop.f32.mrb[0].mxu0
  %2996 = vdwg.mxu0
  %v2997 = vld [vmem:[%s3 + $0x3c0] sm:$0xf]
  %v2998 = vld [vmem:[%s3 + $0x3c4] sm:$0xf]
  %v2999 = vld [vmem:[%s3 + $0x3c8] sm:$0xf]
  %v3000 = vld [vmem:[%s3 + $0x3cc] sm:$0xf]
  %v3001 = vld [vmem:[%s3 + $0x3d0] sm:$0xf]
  %v3002 = vld [vmem:[%s3 + $0x3d4] sm:$0xf]
  %v3003 = vld [vmem:[%s3 + $0x3d8] sm:$0xf]
  %v3004 = vld [vmem:[%s3 + $0x3dc] sm:$0xf]
  %v3005 = vld [vmem:[%s3 + $0x3e0] sm:$0xf]
  %v3006 = vld [vmem:[%s3 + $0x3e4] sm:$0xf]
  %v3007 = vld [vmem:[%s3 + $0x3e8] sm:$0xf]
  %v3008 = vld [vmem:[%s3 + $0x3ec] sm:$0xf]
  %v3009 = vld [vmem:[%s3 + $0x3f0] sm:$0xf]
  %v3010 = vld [vmem:[%s3 + $0x3f4] sm:$0xf]
  %v3011 = vld [vmem:[%s3 + $0x3f8] sm:$0xf]
  %v3012 = vld [vmem:[%s3 + $0x3fc] sm:$0xf]
  %v3029 = vunpack.c.l.b16 %v2997
  %v3030 = vunpack.c.l.b16 %v2998
  %v3031 = vunpack.c.l.b16 %v2999
  %v3032 = vunpack.c.l.b16 %v3000
  %v3033 = vunpack.c.l.b16 %v3001
  %v3034 = vunpack.c.l.b16 %v3002
  %v3035 = vunpack.c.l.b16 %v3003
  %v3036 = vunpack.c.l.b16 %v3004
  %v3037 = vunpack.c.l.b16 %v3005
  %v3038 = vunpack.c.l.b16 %v3006
  %v3039 = vunpack.c.l.b16 %v3007
  %v3040 = vunpack.c.l.b16 %v3008
  %v3041 = vunpack.c.l.b16 %v3009
  %v3042 = vunpack.c.l.b16 %v3010
  %v3043 = vunpack.c.l.b16 %v3011
  %v3044 = vunpack.c.l.b16 %v3012
  %v3045 = vpack.c.b16 %v3030, %v3029
  %v3046 = vpack.c.b16 %v3032, %v3031
  %v3047 = vpack.c.b16 %v3034, %v3033
  %v3048 = vpack.c.b16 %v3036, %v3035
  %v3049 = vpack.c.b16 %v3038, %v3037
  %v3050 = vpack.c.b16 %v3040, %v3039
  %v3051 = vpack.c.b16 %v3042, %v3041
  %v3052 = vpack.c.b16 %v3044, %v3043
  %3061 = vmatprep.subr.bf16.mxu0 0
  %3062 = vmatpush1.bf16.msra.mxu0 %v3045
  %3063 = vmatprep.subr.bf16.mxu0 0
  %3064 = vmatpush1.bf16.msra.mxu0 %v3046
  %3065 = vmatprep.subr.bf16.mxu0 0
  %3066 = vmatpush1.bf16.msra.mxu0 %v3047
  %3067 = vmatprep.subr.bf16.mxu0 0
  %3068 = vmatpush1.bf16.msra.mxu0 %v3048
  %3069 = vmatprep.subr.bf16.mxu0 0
  %3070 = vmatpush1.bf16.msra.mxu0 %v3049
  %3071 = vmatprep.subr.bf16.mxu0 0
  %3072 = vmatpush1.bf16.msra.mxu0 %v3050
  %3073 = vmatprep.subr.bf16.mxu0 0
  %3074 = vmatpush1.bf16.msra.mxu0 %v3051
  %3075 = vmatprep.subr.bf16.mxu0 0
  %3076 = vmatpush1.bf16.msra.mxu0 %v3052
  %3077 = vmatprep.subr.bf16.mxu0 0
  %3078 = vmatpush1.bf16.msra.mxu0 0
  %3079 = vmatprep.subr.bf16.mxu0 0
  %3080 = vmatpush1.bf16.msra.mxu0 0
  %3081 = vmatprep.subr.bf16.mxu0 0
  %3082 = vmatpush1.bf16.msra.mxu0 0
  %3083 = vmatprep.subr.bf16.mxu0 0
  %3084 = vmatpush1.bf16.msra.mxu0 0
  %3085 = vmatprep.subr.bf16.mxu0 0
  %3086 = vmatpush1.bf16.msra.mxu0 0
  %3087 = vmatprep.subr.bf16.mxu0 0
  %3088 = vmatpush1.bf16.msra.mxu0 0
  %3089 = vmatprep.subr.bf16.mxu0 0
  %3090 = vmatpush1.bf16.msra.mxu0 0
  %3091 = vmatprep.subr.bf16.mxu0 0
  %3092 = vmatpush1.bf16.msra.mxu0 0
  %3093 = vmatprep.mubr.bf16.mxu0 0
  %3094 = vmatmul.mubr.bf16.gmra.mrb[0].mxu0 %v2769
  %v3095 = vpop.f32.mrb[0].mxu0
  %v3096 = vadd.f32 0.0, %v3095
  %v3097 = vpop.f32.mrb[0].mxu0
  %v3098 = vpop.f32.mrb[0].mxu0
  %v3099 = vadd.f32 0.0, %v3098
  %v3100 = vpop.f32.mrb[0].mxu0
  %3101 = vmatprep.mubr.bf16.mxu0 0
  %3102 = vmatmul.mubr.bf16.gmra.mrb[0].mxu0 %v2770
  %v3103 = vpop.f32.mrb[0].mxu0
  %v3104 = vadd.f32 0.0, %v3103
  %v3105 = vpop.f32.mrb[0].mxu0
  %v3106 = vpop.f32.mrb[0].mxu0
  %v3107 = vadd.f32 0.0, %v3106
  %v3108 = vpop.f32.mrb[0].mxu0
  %3109 = vdwg.mxu0
  %3110 = vmatprep.subr.mxu0 0.0
  %3111 = vmatpush1.msra.mxu0 %v2870
  %3112 = vmatprep.subr.mxu0 0.0
  %3113 = vmatpush1.msra.mxu0 %v2873
  %3114 = vmatprep.subr.mxu0 0.0
  %3115 = vmatpush1.msra.mxu0 %v2878
  %3116 = vmatprep.subr.mxu0 0.0
  %3117 = vmatpush1.msra.mxu0 %v2881
  %3118 = vmatprep.subr.mxu0 0.0
  %3119 = vmatpush1.msra.mxu0 0.0
  %3120 = vmatprep.subr.mxu0 0.0
  %3121 = vmatpush1.msra.mxu0 0.0
  %3122 = vmatprep.subr.mxu0 0.0
  %3123 = vmatpush1.msra.mxu0 0.0
  %3124 = vmatprep.subr.mxu0 0.0
  %3125 = vmatpush1.msra.mxu0 0.0
  %3126 = vmatprep.subr.mxu0 0.0
  %3127 = vmatpush1.msra.mxu0 0.0
  %3128 = vmatprep.subr.mxu0 0.0
  %3129 = vmatpush1.msra.mxu0 0.0
  %3130 = vmatprep.subr.mxu0 0.0
  %3131 = vmatpush1.msra.mxu0 0.0
  %3132 = vmatprep.subr.mxu0 0.0
  %3133 = vmatpush1.msra.mxu0 0.0
  %3134 = vmatprep.subr.mxu0 0.0
  %3135 = vmatpush1.msra.mxu0 0.0
  %3136 = vmatprep.subr.mxu0 0.0
  %3137 = vmatpush1.msra.mxu0 0.0
  %3138 = vmatprep.subr.mxu0 0.0
  %3139 = vmatpush1.msra.mxu0 0.0
  %3140 = vmatprep.subr.mxu0 0.0
  %3141 = vmatpush1.msra.mxu0 0.0
  %3142 = vmatprep.subr.mxu0 0.0
  %3143 = vmatpush1.msra.mxu0 0.0
  %3144 = vmatprep.subr.mxu0 0.0
  %3145 = vmatpush1.msra.mxu0 0.0
  %3146 = vmatprep.subr.mxu0 0.0
  %3147 = vmatpush1.msra.mxu0 0.0
  %3148 = vmatprep.subr.mxu0 0.0
  %3149 = vmatpush1.msra.mxu0 0.0
  %3150 = vmatprep.subr.mxu0 0.0
  %3151 = vmatpush1.msra.mxu0 0.0
  %3152 = vmatprep.subr.mxu0 0.0
  %3153 = vmatpush1.msra.mxu0 0.0
  %3154 = vmatprep.subr.mxu0 0.0
  %3155 = vmatpush1.msra.mxu0 0.0
  %3156 = vmatprep.subr.mxu0 0.0
  %3157 = vmatpush1.msra.mxu0 0.0
  %3158 = vmatprep.subr.mxu0 0.0
  %3159 = vmatpush1.msra.mxu0 0.0
  %3160 = vmatprep.subr.mxu0 0.0
  %3161 = vmatpush1.msra.mxu0 0.0
  %3162 = vmatprep.subr.mxu0 0.0
  %3163 = vmatpush1.msra.mxu0 0.0
  %3164 = vmatprep.subr.mxu0 0.0
  %3165 = vmatpush1.msra.mxu0 0.0
  %3166 = vmatprep.subr.mxu0 0.0
  %3167 = vmatpush1.msra.mxu0 0.0
  %3168 = vmatprep.subr.mxu0 0.0
  %3169 = vmatpush1.msra.mxu0 0.0
  %3170 = vmatprep.subr.mxu0 0.0
  %3171 = vmatpush1.msra.mxu0 0.0
  %3172 = vmatprep.subr.mxu0 0.0
  %3173 = vmatpush1.msra.mxu0 0.0
  %3174 = vmatprep.mubr.f32.mxu0 0.0
  %3175 = vmatmul.mubr.f32.gmra.mrb[0].mxu0 %v469
  %v3176 = vpop.f32.mrb[0].mxu0
  %v3177 = vadd.f32 %v2983, %v3176
  %v3178 = vpop.f32.mrb[0].mxu0
  %3179 = vmatprep.mubr.f32.mxu0 0.0
  %3180 = vmatmul.mubr.f32.gmra.mrb[0].mxu0 %v472
  %v3181 = vpop.f32.mrb[0].mxu0
  %v3182 = vadd.f32 %v2986, %v3181
  %v3183 = vpop.f32.mrb[0].mxu0
  %3184 = vmatprep.mubr.f32.mxu0 0.0
  %3185 = vmatmul.mubr.f32.gmra.mrb[0].mxu0 %v475
  %v3186 = vpop.f32.mrb[0].mxu0
  %v3187 = vadd.f32 %v2991, %v3186
  %v3188 = vpop.f32.mrb[0].mxu0
  %3189 = vmatprep.mubr.f32.mxu0 0.0
  %3190 = vmatmul.mubr.f32.gmra.mrb[0].mxu0 %v478
  %v3191 = vpop.f32.mrb[0].mxu0
  %v3192 = vadd.f32 %v2994, %v3191
  %v3193 = vpop.f32.mrb[0].mxu0
  %3194 = vdwg.mxu0
  %3195 = vmatprep.subr.mxu0 0.0
  %3196 = vmatpush1.msra.mxu0 %v3096
  %3197 = vmatprep.subr.mxu0 0.0
  %3198 = vmatpush1.msra.mxu0 %v3099
  %3199 = vmatprep.subr.mxu0 0.0
  %3200 = vmatpush1.msra.mxu0 %v3104
  %3201 = vmatprep.subr.mxu0 0.0
  %3202 = vmatpush1.msra.mxu0 %v3107
  %3203 = vmatprep.subr.mxu0 0.0
  %3204 = vmatpush1.msra.mxu0 0.0
  %3205 = vmatprep.subr.mxu0 0.0
  %3206 = vmatpush1.msra.mxu0 0.0
  %3207 = vmatprep.subr.mxu0 0.0
  %3208 = vmatpush1.msra.mxu0 0.0
  %3209 = vmatprep.subr.mxu0 0.0
  %3210 = vmatpush1.msra.mxu0 0.0
  %3211 = vmatprep.subr.mxu0 0.0
  %3212 = vmatpush1.msra.mxu0 0.0
  %3213 = vmatprep.subr.mxu0 0.0
  %3214 = vmatpush1.msra.mxu0 0.0
  %3215 = vmatprep.subr.mxu0 0.0
  %3216 = vmatpush1.msra.mxu0 0.0
  %3217 = vmatprep.subr.mxu0 0.0
  %3218 = vmatpush1.msra.mxu0 0.0
  %3219 = vmatprep.subr.mxu0 0.0
  %3220 = vmatpush1.msra.mxu0 0.0
  %3221 = vmatprep.subr.mxu0 0.0
  %3222 = vmatpush1.msra.mxu0 0.0
  %3223 = vmatprep.subr.mxu0 0.0
  %3224 = vmatpush1.msra.mxu0 0.0
  %3225 = vmatprep.subr.mxu0 0.0
  %3226 = vmatpush1.msra.mxu0 0.0
  %3227 = vmatprep.subr.mxu0 0.0
  %3228 = vmatpush1.msra.mxu0 0.0
  %3229 = vmatprep.subr.mxu0 0.0
  %3230 = vmatpush1.msra.mxu0 0.0
  %3231 = vmatprep.subr.mxu0 0.0
  %3232 = vmatpush1.msra.mxu0 0.0
  %3233 = vmatprep.subr.mxu0 0.0
  %3234 = vmatpush1.msra.mxu0 0.0
  %3235 = vmatprep.subr.mxu0 0.0
  %3236 = vmatpush1.msra.mxu0 0.0
  %3237 = vmatprep.subr.mxu0 0.0
  %3238 = vmatpush1.msra.mxu0 0.0
  %3239 = vmatprep.subr.mxu0 0.0
  %3240 = vmatpush1.msra.mxu0 0.0
  %3241 = vmatprep.subr.mxu0 0.0
  %3242 = vmatpush1.msra.mxu0 0.0
  %3243 = vmatprep.subr.mxu0 0.0
  %3244 = vmatpush1.msra.mxu0 0.0
  %3245 = vmatprep.subr.mxu0 0.0
  %3246 = vmatpush1.msra.mxu0 0.0
  %3247 = vmatprep.subr.mxu0 0.0
  %3248 = vmatpush1.msra.mxu0 0.0
  %3249 = vmatprep.subr.mxu0 0.0
  %3250 = vmatpush1.msra.mxu0 0.0
  %3251 = vmatprep.subr.mxu0 0.0
  %3252 = vmatpush1.msra.mxu0 0.0
  %3253 = vmatprep.subr.mxu0 0.0
  %3254 = vmatpush1.msra.mxu0 0.0
  %3255 = vmatprep.subr.mxu0 0.0
  %3256 = vmatpush1.msra.mxu0 0.0
  %3257 = vmatprep.subr.mxu0 0.0
  %3258 = vmatpush1.msra.mxu0 0.0
  %3259 = vmatprep.mubr.f32.mxu0 0.0
  %3260 = vmatmul.mubr.f32.gmra.mrb[0].mxu0 %v566
  %v3261 = vpop.f32.mrb[0].mxu0
  %v3262 = vadd.f32 0.0, %v3261
  %v3263 = vpop.f32.mrb[0].mxu0
  %3264 = vmatprep.mubr.f32.mxu0 0.0
  %3265 = vmatmul.mubr.f32.gmra.mrb[0].mxu0 %v569
  %v3266 = vpop.f32.mrb[0].mxu0
  %v3267 = vadd.f32 0.0, %v3266
  %v3268 = vpop.f32.mrb[0].mxu0
  %3269 = vmatprep.mubr.f32.mxu0 0.0
  %3270 = vmatmul.mubr.f32.gmra.mrb[0].mxu0 %v572
  %v3271 = vpop.f32.mrb[0].mxu0
  %v3272 = vadd.f32 0.0, %v3271
  %v3273 = vpop.f32.mrb[0].mxu0
  %3274 = vmatprep.mubr.f32.mxu0 0.0
  %3275 = vmatmul.mubr.f32.gmra.mrb[0].mxu0 %v575
  %v3276 = vpop.f32.mrb[0].mxu0
  %v3277 = vadd.f32 0.0, %v3276
  %v3278 = vpop.f32.mrb[0].mxu0
  %3279 = vdwg.mxu0
  %v3280 = vadd.f32 %v3177, %v3262
  %v3281 = vadd.f32 %v3182, %v3267
  %v3282 = vadd.f32 %v3187, %v3272
  %v3283 = vadd.f32 %v3192, %v3277
  %v3284 = vadd.f32 %v2684, %v3280
  %v3285 = vadd.f32 %v2685, %v3281
  %v3286 = vadd.f32 %v2686, %v3282
  %v3287 = vadd.f32 %v2687, %v3283
  %3288 = vst [vmem:[%s4] sm:$0xff] %v3284
  %3289 = vst [vmem:[%s4 + $0x8] sm:$0xff] %v3285
  %3290 = vst [vmem:[%s4 + $0x10] sm:$0xff] %v3286
  %3291 = vst [vmem:[%s4 + $0x18] sm:$0xff] %v3287
  // Predicated region
  $region18: #{concat_unet_forward.1} parent=0 // pred_check
    _
  $region19: #{concat_unet_forward.1} parent=0 // pred_check_branch
    %3293 = sbr.rel (0) target = $region21
  $region20: #{concat_unet_forward.1} parent=0 // pred_region
    _
  $region21: #{concat_unet_forward.1} parent=0 // pred_fallthru
    _
  // Predicated region
  $region22: #{concat_unet_forward.1} parent=0 // pred_check
    _
  $region23: #{concat_unet_forward.1} parent=0 // pred_check_branch
    %3295 = sbr.rel (0) target = $region25
  $region24: #{concat_unet_forward.1} parent=0 // pred_region
    _
  $region25: #{concat_unet_forward.1} parent=0 // pred_fallthru
    _

</llo_original>
